<compile_context>
chip_gen: v6e
topology: v6e:2x2x1
jax: 0.10.0
libtpu: 0.0.40
codegen_flags: <defaults>
</compile_context>

<pallas_src>
import jax
import jax.numpy as jnp
from jax.experimental import pallas as pl
from jax.experimental.pallas import tpu as pltpu

# ----------------------------- model geometry ------------------------------ #
KH = KW = 5
PAD = 1
H_IN = W_IN = 16                     # input_size used for the test
C_IN, C1, C2 = 3, 5, 10
OC1 = H_IN - KH + 2 * PAD + 1        # 14 : conv1 output spatial size
OH1 = OC1 // 2                       # 7  : pooled conv1 spatial size
GP = OH1 + 2 * PAD                   # 9  : zero-padded grid for conv2
OC2_USED = 4                         # conv2 rows/cols actually consumed by the 2x2 floor pool
OH2 = OC2_USED // 2                  # 2  : pooled conv2 spatial size
K1 = KH * KW * C_IN                  # 75 : conv1 im2col depth (lane = ky*15 + kx*3 + cin)
K2 = KW * C1                         # 25 : conv2 per-ky depth (lane = kx*5 + cin)


# --------------------------------------------------------------------------- #
# The single fused Pallas kernel
# --------------------------------------------------------------------------- #
def fused_forward_kernel(xk_ref, w1_ref, b1_ref, w2_ref, b2_ref,
                         wf1_ref, bf1_ref, wf2_ref, bf2_ref,
                         out_ref, h1_ref):
    """Whole forward pass in VMEM.

    xk_ref : (4*49*Bp, 75) bf16  -- conv1 im2col, phase-major rows
                                    row = ((phase*7 + i1)*7 + j1)*Bp + b, lane = ky*15+kx*3+cin
    w1_ref : (75, 5)   bf16      -- conv1 weight * BN1 scale, rows (ky, kx, cin)
    b1_ref : (1, 5)    f32       -- folded conv1 bias + BN1 shift
    w2_ref : (5, 25, 10) bf16    -- conv2 weight * BN2 scale, block ky, rows (kx, cin)
    b2_ref : (1, 10)   f32
    wf1_ref: (4, 10, 15) bf16    -- fc1 weight, block = pool position s, rows = channel
    bf1_ref: (1, 15)   f32
    wf2_ref: (15, nc)  bf16
    bf2_ref: (1, nc)   f32
    out_ref: (Bp, nc)  f32
    h1_ref : (81*Bp, 25) f32 VMEM scratch -- kx-unfolded, zero-padded pooled conv1 output:
                                             h1[s*Bp+b, kx*5+cin] = h1pad_flat[s+kx]
    """
    f32 = jnp.float32
    bf16 = jnp.bfloat16
    Bp = out_ref.shape[0]
    R = OH1 * OH1 * Bp                              # rows per pool phase (49*Bp)

    # ------------- conv1 (+folded BN1): ONE dot (K=75) over all 4 phases ---- #
    y1 = jnp.dot(xk_ref[...], w1_ref[...], preferred_element_type=f32)     # (4R, 5)
    # 2x2 max-pool = max over the 4 phase row-blocks; bias+ReLU applied once after
    # the max (valid because the bias is per-channel and ReLU/max are monotone).
    m = jnp.maximum(jnp.maximum(y1[0:R, :], y1[R:2 * R, :]),
                    jnp.maximum(y1[2 * R:3 * R, :], y1[3 * R:4 * R, :]))
    p1 = jnp.maximum(m + b1_ref[...], 0.0)                                  # (R, 5) f32

    # ------------- zero ONLY the padded-border entries that conv2 reads ----- #
    # row 0 of the padded grid (s = 0..8) and column 0 (s = 9,18,...,63); everything
    # else that conv2 reads is overwritten by the scatter below.
    h1_ref[0:GP * Bp, :] = jnp.zeros((GP * Bp, K2), f32)
    for r in range(1, OH1 + 1):
        h1_ref[r * GP * Bp:r * GP * Bp + Bp, :] = jnp.zeros((Bp, K2), f32)

    # ------------- scatter pooled conv1 output, kx-unfolded ----------------- #
    # For lane block kx, flat spatial position s holds h1pad_flat[s + kx]; the pooled
    # value at padded position ((i1+1), (j1+1)) therefore lands at s = (i1+1)*9+1+j1-kx.
    # All destinations are in-bounds; "wrapped" writes (kx > j1+1) land in extended
    # columns that valid conv2 outputs never read.
    for i1 in range(OH1):
        blk = p1[i1 * OH1 * Bp:(i1 + 1) * OH1 * Bp, :]                      # j1 = 0..6
        for kx in range(KW):
            dst = ((i1 + 1) * GP + 1 - kx) * Bp
            h1_ref[dst:dst + OH1 * Bp, kx * C1:(kx + 1) * C1] = blk

    # ------------- conv2 (+folded BN2): 5 accumulating dots (K=25) ---------- #
    # acc2 row ((oi2*9 + oj2)*Bp + b); only oi2,oj2 in 0..3 are read by the pool.
    rows2 = OC2_USED * GP * Bp                                              # 36*Bp
    acc2 = jnp.dot(h1_ref[0:rows2, :].astype(bf16), w2_ref[0],
                   preferred_element_type=f32)
    for ky in range(1, KH):
        lhs = h1_ref[ky * GP * Bp:ky * GP * Bp + rows2, :].astype(bf16)
        acc2 = acc2 + jnp.dot(lhs, w2_ref[ky], preferred_element_type=f32)

    # --------- 2x2 pool + bias + ReLU + fc1 (flatten absorbed into wf1) ----- #
    # TODO(synk): Dropout(p=0.6) is eval-mode identity here (no training-mode RNG mask).
    b2 = b2_ref[...]
    h = jnp.zeros((Bp, wf1_ref.shape[2]), f32)
    for i2 in range(OH2):
        for j2 in range(OH2):
            s = i2 * OH2 + j2
            v = []
            for dy in range(2):
                for dx in range(2):
                    r0 = ((2 * i2 + dy) * GP + (2 * j2 + dx)) * Bp
                    v.append(acc2[r0:r0 + Bp, :])
            q = jnp.maximum(jnp.maximum(v[0], v[1]), jnp.maximum(v[2], v[3]))
            q = jnp.maximum(q + b2, 0.0).astype(bf16)                       # (Bp, 10)
            h = h + jnp.dot(q, wf1_ref[s], preferred_element_type=f32)
    h = jnp.maximum(h + bf1_ref[...], 0.0)

    out = jnp.dot(h.astype(bf16), wf2_ref[...],
                  preferred_element_type=f32) + bf2_ref[...]
    out_ref[...] = out


# --------------------------------------------------------------------------- #
# Wrapper: cheap XLA glue + the single pallas_call
# --------------------------------------------------------------------------- #
def prim_model_forward(params, x_nchw):
    B = x_nchw.shape[0]
    assert x_nchw.shape[1:] == (C_IN, H_IN, W_IN), x_nchw.shape
    Bp = ((B + 7) // 8) * 8            # pad batch so every in-kernel row offset is 8-aligned

    x = jnp.transpose(x_nchw, (2, 3, 0, 1)).astype(jnp.bfloat16)            # (H, W, B, C)
    if Bp != B:
        x = jnp.pad(x, ((0, 0), (0, 0), (0, Bp - B), (0, 0)))
    xpad = jnp.pad(x, ((PAD, PAD), (PAD, PAD), (0, 0), (0, 0)))             # (18, 18, Bp, 3)

    # full conv1 im2col on the 14x14 conv-output grid, lane = ky*15 + kx*3 + cin (75)
    patches = jnp.concatenate(
        [xpad[ky:ky + OC1, kx:kx + OC1] for ky in range(KH) for kx in range(KW)],
        axis=-1)                                                            # (14, 14, Bp, 75)
    # split into the 4 (dy, dx) max-pool phases; phase-major rows
    xk = jnp.stack([patches[dy::2, dx::2] for dy in range(2) for dx in range(2)],
                   axis=0)                                                  # (4, 7, 7, Bp, 75)
    xk = xk.reshape(4 * OH1 * OH1 * Bp, K1)                                 # (4R, 75) bf16

    args = (xk, params["w1"], params["b1"], params["w2"], params["b2"],
            params["wf1"], params["bf1"], params["wf2"], params["bf2"])
    in_specs = [pl.BlockSpec(a.shape, lambda i, nd=a.ndim: (0,) * nd) for a in args]

    nc = params["wf2"].shape[1]
    out = pl.pallas_call(
        fused_forward_kernel,
        grid=(1,),
        in_specs=in_specs,
        out_specs=pl.BlockSpec((Bp, nc), lambda i: (0, 0)),
        out_shape=jax.ShapeDtypeStruct((Bp, nc), jnp.float32),
        scratch_shapes=[pltpu.VMEM((GP * GP * Bp, K2), jnp.float32)],
        compiler_params=pltpu.CompilerParams(dimension_semantics=("arbitrary",)),
    )(*args)
    return out[:B]     # torch's .squeeze(1) is a no-op for num_classes=3


# --------------------------------------------------------------------------- #
# Parameter init (raw PyTorch-layout params) + folding into kernel layout
# --------------------------------------------------------------------------- #
def init_params(key, num_classes=3, input_size=(16, 16)):
    ks = jax.random.split(key, 16)
    p = {}
    p["conv1_w"] = 0.1 * jax.random.normal(ks[0], (C1, C_IN, KH, KW), jnp.float32)   # OIHW
    p["conv1_b"] = 0.1 * jax.random.normal(ks[1], (C1,), jnp.float32)
    p["bn1_g"] = 1.0 + 0.1 * jax.random.normal(ks[2], (C1,), jnp.float32)
    p["bn1_b"] = 0.1 * jax.random.normal(ks[3], (C1,), jnp.float32)
    p["bn1_rm"] = 0.1 * jax.random.normal(ks[4], (C1,), jnp.float32)
    p["bn1_rv"] = 1.0 + 0.1 * jnp.abs(jax.random.normal(ks[5], (C1,), jnp.float32))
    p["conv2_w"] = 0.1 * jax.random.normal(ks[6], (C2, C1, KH, KW), jnp.float32)      # OIHW
    p["conv2_b"] = 0.1 * jax.random.normal(ks[7], (C2,), jnp.float32)
    p["bn2_g"] = 1.0 + 0.1 * jax.random.normal(ks[8], (C2,), jnp.float32)
    p["bn2_b"] = 0.1 * jax.random.normal(ks[9], (C2,), jnp.float32)
    p["bn2_rm"] = 0.1 * jax.random.normal(ks[10], (C2,), jnp.float32)
    p["bn2_rv"] = 1.0 + 0.1 * jnp.abs(jax.random.normal(ks[11], (C2,), jnp.float32))

    def conv_pool_size(s):
        return ((s - KH + 2 * PAD) // 1 + 1) // 2

    hx = conv_pool_size(conv_pool_size(input_size[0]))
    wy = conv_pool_size(conv_pool_size(input_size[1]))
    fc_in = C2 * hx * wy                                   # 40 for 16x16

    # fc1_w rows are in the PyTorch flatten order (c*H*W + i*W + j)
    p["fc1_w"] = jax.random.normal(ks[12], (fc_in, 15), jnp.float32) / jnp.sqrt(float(fc_in))
    p["fc1_b"] = 0.1 * jax.random.normal(ks[13], (1, 15), jnp.float32)
    p["fc2_w"] = jax.random.normal(ks[14], (15, num_classes), jnp.float32) / jnp.sqrt(15.0)
    p["fc2_b"] = 0.1 * jax.random.normal(ks[15], (1, num_classes), jnp.float32)
    return p


def prepare_kernel_params(p):
    """Fold eval-mode BN + conv bias into the weights and lay weights out for the kernel
    (pre-split on the host so the kernel never slices a weight array)."""
    eps = 1e-5
    s1 = p["bn1_g"] / jnp.sqrt(p["bn1_rv"] + eps)
    s2 = p["bn2_g"] / jnp.sqrt(p["bn2_rv"] + eps)
    b1 = (p["conv1_b"] - p["bn1_rm"]) * s1 + p["bn1_b"]
    b2 = (p["conv2_b"] - p["bn2_rm"]) * s2 + p["bn2_b"]

    # conv1: OIHW -> (ky, kx, cin, cout) -> (75, 5), BN scale folded into the columns
    w1 = (jnp.transpose(p["conv1_w"], (2, 3, 1, 0)).reshape(K1, C1)
          * s1[None, :]).astype(jnp.bfloat16)
    # conv2: OIHW -> (ky, kx, cin, cout) -> (5 ky-blocks, 25 rows = kx*5+cin, 10)
    w2 = (jnp.transpose(p["conv2_w"], (2, 3, 1, 0)).reshape(KH, K2, C2)
          * s2[None, None, :]).astype(jnp.bfloat16)
    # fc1: regroup rows from torch flat order (c*4 + s) to per-pool-position blocks (s, c)
    wf1 = (p["fc1_w"].reshape(C2, OH2 * OH2, -1).transpose(1, 0, 2)).astype(jnp.bfloat16)

    return {
        "w1": w1, "b1": b1.reshape(1, C1).astype(jnp.float32),
        "w2": w2, "b2": b2.reshape(1, C2).astype(jnp.float32),
        "wf1": wf1, "bf1": p["fc1_b"].reshape(1, -1).astype(jnp.float32),
        "wf2": p["fc2_w"].astype(jnp.bfloat16),
        "bf2": p["fc2_b"].reshape(1, -1).astype(jnp.float32),
    }


# --------------------------------------------------------------------------- #
# Pure-JAX f32 reference (eval mode), used as a sanity check
# --------------------------------------------------------------------------- #
def reference_forward(p, x_nchw):
    eps = 1e-5

    def conv(x, w, b):
        y = jax.lax.conv_general_dilated(
            x, w, (1, 1), [(PAD, PAD), (PAD, PAD)],
            dimension_numbers=("NCHW", "OIHW", "NCHW"),
            precision=jax.lax.Precision.HIGHEST)
        return y + b[None, :, None, None]

    def bn(x, g, beta, rm, rv):
        return (x - rm[None, :, None, None]) / jnp.sqrt(rv[None, :, None, None] + eps) \
            * g[None, :, None, None] + beta[None, :, None, None]

    def pool(x):
        return jax.lax.reduce_window(x, -jnp.inf, jax.lax.max,
                                     (1, 1, 2, 2), (1, 1, 2, 2), "VALID")

    h = pool(jax.nn.relu(bn(conv(x_nchw, p["conv1_w"], p["conv1_b"]),
                            p["bn1_g"], p["bn1_b"], p["bn1_rm"], p["bn1_rv"])))
    h = pool(jax.nn.relu(bn(conv(h, p["conv2_w"], p["conv2_b"]),
                            p["bn2_g"], p["bn2_b"], p["bn2_rm"], p["bn2_rv"])))
    flat = h.reshape(h.shape[0], -1)
    h = jax.nn.relu(flat @ p["fc1_w"] + p["fc1_b"])
    return h @ p["fc2_w"] + p["fc2_b"]


if __name__ == "__main__":
    key = jax.random.PRNGKey(0)
    pkey, xkey = jax.random.split(key)
    raw_params = init_params(pkey, num_classes=3, input_size=(16, 16))
    params = prepare_kernel_params(raw_params)
    x = jax.random.normal(xkey, (2, 3, 16, 16), jnp.float32)    # NCHW, like PyTorch

    fwd = jax.jit(prim_model_forward)
    out = fwd(params, x)
    jax.block_until_ready(out)

    assert out.shape == (2, 3), out.shape
    ref = reference_forward(raw_params, x)
    assert jnp.allclose(out, ref, rtol=5e-2, atol=5e-2), (out, ref)

    print("KERNEL_OK")
</pallas_src>

<mosaic_0001>
module attributes {stable_mosaic.version = 11 : i64} {
  func.func @fused_forward_kernel(%arg0: i32, %arg1: memref<1568x75xbf16, #tpu.memory_space<vmem>>, %arg2: memref<75x5xbf16, #tpu.memory_space<vmem>>, %arg3: memref<1x5xf32, #tpu.memory_space<vmem>>, %arg4: memref<5x25x10xbf16, #tpu.memory_space<vmem>>, %arg5: memref<1x10xf32, #tpu.memory_space<vmem>>, %arg6: memref<4x10x15xbf16, #tpu.memory_space<vmem>>, %arg7: memref<1x15xf32, #tpu.memory_space<vmem>>, %arg8: memref<15x3xbf16, #tpu.memory_space<vmem>>, %arg9: memref<1x3xf32, #tpu.memory_space<vmem>>, %arg10: memref<8x3xf32, #tpu.memory_space<vmem>>, %arg11: memref<648x25xf32, #tpu.memory_space<vmem>>) attributes {dimension_semantics = [#tpu.dimension_semantics<arbitrary>], iteration_bounds = array<i64: 1>, scalar_prefetch = 0 : i64, scratch_operands = 1 : i64, tpu.core_type = #tpu.core_type<tc>, window_params = [{pipeline_mode = #tpu.pipeline_mode<synchronous>, transform_indices = @transform_0, window_bounds = array<i64: 1568, 75>}, {pipeline_mode = #tpu.pipeline_mode<synchronous>, transform_indices = @transform_1, window_bounds = array<i64: 75, 5>}, {pipeline_mode = #tpu.pipeline_mode<synchronous>, transform_indices = @transform_2, window_bounds = array<i64: 1, 5>}, {pipeline_mode = #tpu.pipeline_mode<synchronous>, transform_indices = @transform_3, window_bounds = array<i64: 5, 25, 10>}, {pipeline_mode = #tpu.pipeline_mode<synchronous>, transform_indices = @transform_4, window_bounds = array<i64: 1, 10>}, {pipeline_mode = #tpu.pipeline_mode<synchronous>, transform_indices = @transform_5, window_bounds = array<i64: 4, 10, 15>}, {pipeline_mode = #tpu.pipeline_mode<synchronous>, transform_indices = @transform_6, window_bounds = array<i64: 1, 15>}, {pipeline_mode = #tpu.pipeline_mode<synchronous>, transform_indices = @transform_7, window_bounds = array<i64: 15, 3>}, {pipeline_mode = #tpu.pipeline_mode<synchronous>, transform_indices = @transform_8, window_bounds = array<i64: 1, 3>}, {pipeline_mode = #tpu.pipeline_mode<synchronous>, transform_indices = @transform_9, window_bounds = array<i64: 8, 3>}]} {
    %c0 = arith.constant 0 : index
    %c0_0 = arith.constant 0 : index
    %0 = vector.load %arg1[%c0, %c0_0] : memref<1568x75xbf16, #tpu.memory_space<vmem>>, vector<1568x75xbf16>
    %c0_1 = arith.constant 0 : index
    %c0_2 = arith.constant 0 : index
    %1 = vector.load %arg2[%c0_1, %c0_2] : memref<75x5xbf16, #tpu.memory_space<vmem>>, vector<75x5xbf16>
    %cst = arith.constant dense<0.000000e+00> : vector<1568x5xf32>
    %2 = tpu.matmul %0, %1, %cst {dimension_numbers = #tpu.dot_dimension_numbers<[1], [0], [0], [1], [0, 0, 1, 1], [], []>} : vector<1568x75xbf16>, vector<75x5xbf16>, vector<1568x5xf32> -> vector<1568x5xf32>
    %3 = vector.extract_strided_slice %2 {offsets = [0, 0], sizes = [392, 5], strides = [1, 1]} : vector<1568x5xf32> to vector<392x5xf32>
    %4 = vector.extract_strided_slice %2 {offsets = [392, 0], sizes = [392, 5], strides = [1, 1]} : vector<1568x5xf32> to vector<392x5xf32>
    %5 = arith.maximumf %3, %4 : vector<392x5xf32>
    %6 = vector.extract_strided_slice %2 {offsets = [784, 0], sizes = [392, 5], strides = [1, 1]} : vector<1568x5xf32> to vector<392x5xf32>
    %7 = vector.extract_strided_slice %2 {offsets = [1176, 0], sizes = [392, 5], strides = [1, 1]} : vector<1568x5xf32> to vector<392x5xf32>
    %8 = arith.maximumf %6, %7 : vector<392x5xf32>
    %9 = arith.maximumf %5, %8 : vector<392x5xf32>
    %c0_3 = arith.constant 0 : index
    %c0_4 = arith.constant 0 : index
    %10 = vector.load %arg3[%c0_3, %c0_4] : memref<1x5xf32, #tpu.memory_space<vmem>>, vector<1x5xf32>
    %11 = vector.broadcast %10 : vector<1x5xf32> to vector<392x5xf32>
    %12 = arith.addf %9, %11 : vector<392x5xf32>
    %cst_5 = arith.constant 0.000000e+00 : f32
    %13 = vector.broadcast %cst_5 : f32 to vector<392x5xf32>
    %14 = arith.maximumf %12, %13 : vector<392x5xf32>
    %cst_6 = arith.constant 0.000000e+00 : f32
    %15 = vector.broadcast %cst_6 : f32 to vector<72x25xf32>
    %c0_7 = arith.constant 0 : index
    %c0_8 = arith.constant 0 : index
    %16 = vector.load %arg11[%c0_7, %c0_8] : memref<648x25xf32, #tpu.memory_space<vmem>>, vector<72x25xf32>
    tpu.vector_store %arg11[%c0_7, %c0_8], %15 {strides = array<i32>} : memref<648x25xf32, #tpu.memory_space<vmem>>, vector<72x25xf32>,
    %cst_9 = arith.constant 0.000000e+00 : f32
    %17 = vector.broadcast %cst_9 : f32 to vector<8x25xf32>
    %c72 = arith.constant 72 : index
    %c0_10 = arith.constant 0 : index
    %18 = vector.load %arg11[%c72, %c0_10] : memref<648x25xf32, #tpu.memory_space<vmem>>, vector<8x25xf32>
    tpu.vector_store %arg11[%c72, %c0_10], %17 {strides = array<i32>} : memref<648x25xf32, #tpu.memory_space<vmem>>, vector<8x25xf32>,
    %cst_11 = arith.constant 0.000000e+00 : f32
    %19 = vector.broadcast %cst_11 : f32 to vector<8x25xf32>
    %c144 = arith.constant 144 : index
    %c0_12 = arith.constant 0 : index
    %20 = vector.load %arg11[%c144, %c0_12] : memref<648x25xf32, #tpu.memory_space<vmem>>, vector<8x25xf32>
    tpu.vector_store %arg11[%c144, %c0_12], %19 {strides = array<i32>} : memref<648x25xf32, #tpu.memory_space<vmem>>, vector<8x25xf32>,
    %cst_13 = arith.constant 0.000000e+00 : f32
    %21 = vector.broadcast %cst_13 : f32 to vector<8x25xf32>
    %c216 = arith.constant 216 : index
    %c0_14 = arith.constant 0 : index
    %22 = vector.load %arg11[%c216, %c0_14] : memref<648x25xf32, #tpu.memory_space<vmem>>, vector<8x25xf32>
    tpu.vector_store %arg11[%c216, %c0_14], %21 {strides = array<i32>} : memref<648x25xf32, #tpu.memory_space<vmem>>, vector<8x25xf32>,
    %cst_15 = arith.constant 0.000000e+00 : f32
    %23 = vector.broadcast %cst_15 : f32 to vector<8x25xf32>
    %c288 = arith.constant 288 : index
    %c0_16 = arith.constant 0 : index
    %24 = vector.load %arg11[%c288, %c0_16] : memref<648x25xf32, #tpu.memory_space<vmem>>, vector<8x25xf32>
    tpu.vector_store %arg11[%c288, %c0_16], %23 {strides = array<i32>} : memref<648x25xf32, #tpu.memory_space<vmem>>, vector<8x25xf32>,
    %cst_17 = arith.constant 0.000000e+00 : f32
    %25 = vector.broadcast %cst_17 : f32 to vector<8x25xf32>
    %c360 = arith.constant 360 : index
    %c0_18 = arith.constant 0 : index
    %26 = vector.load %arg11[%c360, %c0_18] : memref<648x25xf32, #tpu.memory_space<vmem>>, vector<8x25xf32>
    tpu.vector_store %arg11[%c360, %c0_18], %25 {strides = array<i32>} : memref<648x25xf32, #tpu.memory_space<vmem>>, vector<8x25xf32>,
    %cst_19 = arith.constant 0.000000e+00 : f32
    %27 = vector.broadcast %cst_19 : f32 to vector<8x25xf32>
    %c432 = arith.constant 432 : index
    %c0_20 = arith.constant 0 : index
    %28 = vector.load %arg11[%c432, %c0_20] : memref<648x25xf32, #tpu.memory_space<vmem>>, vector<8x25xf32>
    tpu.vector_store %arg11[%c432, %c0_20], %27 {strides = array<i32>} : memref<648x25xf32, #tpu.memory_space<vmem>>, vector<8x25xf32>,
    %cst_21 = arith.constant 0.000000e+00 : f32
    %29 = vector.broadcast %cst_21 : f32 to vector<8x25xf32>
    %c504 = arith.constant 504 : index
    %c0_22 = arith.constant 0 : index
    %30 = vector.load %arg11[%c504, %c0_22] : memref<648x25xf32, #tpu.memory_space<vmem>>, vector<8x25xf32>
    tpu.vector_store %arg11[%c504, %c0_22], %29 {strides = array<i32>} : memref<648x25xf32, #tpu.memory_space<vmem>>, vector<8x25xf32>,
    %31 = vector.extract_strided_slice %14 {offsets = [0, 0], sizes = [56, 5], strides = [1, 1]} : vector<392x5xf32> to vector<56x5xf32>
    %c80 = arith.constant 80 : index
    %c0_23 = arith.constant 0 : index
    %32 = vector.load %arg11[%c80, %c0_23] : memref<648x25xf32, #tpu.memory_space<vmem>>, vector<56x5xf32>
    tpu.vector_store %arg11[%c80, %c0_23], %31 {strides = array<i32>} : memref<648x25xf32, #tpu.memory_space<vmem>>, vector<56x5xf32>,
    %c72_24 = arith.constant 72 : index
    %c5 = arith.constant 5 : index
    %33 = vector.load %arg11[%c72_24, %c5] : memref<648x25xf32, #tpu.memory_space<vmem>>, vector<56x5xf32>
    tpu.vector_store %arg11[%c72_24, %c5], %31 {strides = array<i32>} : memref<648x25xf32, #tpu.memory_space<vmem>>, vector<56x5xf32>,
    %c64 = arith.constant 64 : index
    %c10 = arith.constant 10 : index
    %34 = vector.load %arg11[%c64, %c10] : memref<648x25xf32, #tpu.memory_space<vmem>>, vector<56x5xf32>
    tpu.vector_store %arg11[%c64, %c10], %31 {strides = array<i32>} : memref<648x25xf32, #tpu.memory_space<vmem>>, vector<56x5xf32>,
    %c56 = arith.constant 56 : index
    %c15 = arith.constant 15 : index
    %35 = vector.load %arg11[%c56, %c15] : memref<648x25xf32, #tpu.memory_space<vmem>>, vector<56x5xf32>
    tpu.vector_store %arg11[%c56, %c15], %31 {strides = array<i32>} : memref<648x25xf32, #tpu.memory_space<vmem>>, vector<56x5xf32>,
    %c48 = arith.constant 48 : index
    %c20 = arith.constant 20 : index
    %36 = vector.load %arg11[%c48, %c20] : memref<648x25xf32, #tpu.memory_space<vmem>>, vector<56x5xf32>
    tpu.vector_store %arg11[%c48, %c20], %31 {strides = array<i32>} : memref<648x25xf32, #tpu.memory_space<vmem>>, vector<56x5xf32>,
    %37 = vector.extract_strided_slice %14 {offsets = [56, 0], sizes = [56, 5], strides = [1, 1]} : vector<392x5xf32> to vector<56x5xf32>
    %c152 = arith.constant 152 : index
    %c0_25 = arith.constant 0 : index
    %38 = vector.load %arg11[%c152, %c0_25] : memref<648x25xf32, #tpu.memory_space<vmem>>, vector<56x5xf32>
    tpu.vector_store %arg11[%c152, %c0_25], %37 {strides = array<i32>} : memref<648x25xf32, #tpu.memory_space<vmem>>, vector<56x5xf32>,
    %c144_26 = arith.constant 144 : index
    %c5_27 = arith.constant 5 : index
    %39 = vector.load %arg11[%c144_26, %c5_27] : memref<648x25xf32, #tpu.memory_space<vmem>>, vector<56x5xf32>
    tpu.vector_store %arg11[%c144_26, %c5_27], %37 {strides = array<i32>} : memref<648x25xf32, #tpu.memory_space<vmem>>, vector<56x5xf32>,
    %c136 = arith.constant 136 : index
    %c10_28 = arith.constant 10 : index
    %40 = vector.load %arg11[%c136, %c10_28] : memref<648x25xf32, #tpu.memory_space<vmem>>, vector<56x5xf32>
    tpu.vector_store %arg11[%c136, %c10_28], %37 {strides = array<i32>} : memref<648x25xf32, #tpu.memory_space<vmem>>, vector<56x5xf32>,
    %c128 = arith.constant 128 : index
    %c15_29 = arith.constant 15 : index
    %41 = vector.load %arg11[%c128, %c15_29] : memref<648x25xf32, #tpu.memory_space<vmem>>, vector<56x5xf32>
    tpu.vector_store %arg11[%c128, %c15_29], %37 {strides = array<i32>} : memref<648x25xf32, #tpu.memory_space<vmem>>, vector<56x5xf32>,
    %c120 = arith.constant 120 : index
    %c20_30 = arith.constant 20 : index
    %42 = vector.load %arg11[%c120, %c20_30] : memref<648x25xf32, #tpu.memory_space<vmem>>, vector<56x5xf32>
    tpu.vector_store %arg11[%c120, %c20_30], %37 {strides = array<i32>} : memref<648x25xf32, #tpu.memory_space<vmem>>, vector<56x5xf32>,
    %43 = vector.extract_strided_slice %14 {offsets = [112, 0], sizes = [56, 5], strides = [1, 1]} : vector<392x5xf32> to vector<56x5xf32>
    %c224 = arith.constant 224 : index
    %c0_31 = arith.constant 0 : index
    %44 = vector.load %arg11[%c224, %c0_31] : memref<648x25xf32, #tpu.memory_space<vmem>>, vector<56x5xf32>
    tpu.vector_store %arg11[%c224, %c0_31], %43 {strides = array<i32>} : memref<648x25xf32, #tpu.memory_space<vmem>>, vector<56x5xf32>,
    %c216_32 = arith.constant 216 : index
    %c5_33 = arith.constant 5 : index
    %45 = vector.load %arg11[%c216_32, %c5_33] : memref<648x25xf32, #tpu.memory_space<vmem>>, vector<56x5xf32>
    tpu.vector_store %arg11[%c216_32, %c5_33], %43 {strides = array<i32>} : memref<648x25xf32, #tpu.memory_space<vmem>>, vector<56x5xf32>,
    %c208 = arith.constant 208 : index
    %c10_34 = arith.constant 10 : index
    %46 = vector.load %arg11[%c208, %c10_34] : memref<648x25xf32, #tpu.memory_space<vmem>>, vector<56x5xf32>
    tpu.vector_store %arg11[%c208, %c10_34], %43 {strides = array<i32>} : memref<648x25xf32, #tpu.memory_space<vmem>>, vector<56x5xf32>,
    %c200 = arith.constant 200 : index
    %c15_35 = arith.constant 15 : index
    %47 = vector.load %arg11[%c200, %c15_35] : memref<648x25xf32, #tpu.memory_space<vmem>>, vector<56x5xf32>
    tpu.vector_store %arg11[%c200, %c15_35], %43 {strides = array<i32>} : memref<648x25xf32, #tpu.memory_space<vmem>>, vector<56x5xf32>,
    %c192 = arith.constant 192 : index
    %c20_36 = arith.constant 20 : index
    %48 = vector.load %arg11[%c192, %c20_36] : memref<648x25xf32, #tpu.memory_space<vmem>>, vector<56x5xf32>
    tpu.vector_store %arg11[%c192, %c20_36], %43 {strides = array<i32>} : memref<648x25xf32, #tpu.memory_space<vmem>>, vector<56x5xf32>,
    %49 = vector.extract_strided_slice %14 {offsets = [168, 0], sizes = [56, 5], strides = [1, 1]} : vector<392x5xf32> to vector<56x5xf32>
    %c296 = arith.constant 296 : index
    %c0_37 = arith.constant 0 : index
    %50 = vector.load %arg11[%c296, %c0_37] : memref<648x25xf32, #tpu.memory_space<vmem>>, vector<56x5xf32>
    tpu.vector_store %arg11[%c296, %c0_37], %49 {strides = array<i32>} : memref<648x25xf32, #tpu.memory_space<vmem>>, vector<56x5xf32>,
    %c288_38 = arith.constant 288 : index
    %c5_39 = arith.constant 5 : index
    %51 = vector.load %arg11[%c288_38, %c5_39] : memref<648x25xf32, #tpu.memory_space<vmem>>, vector<56x5xf32>
    tpu.vector_store %arg11[%c288_38, %c5_39], %49 {strides = array<i32>} : memref<648x25xf32, #tpu.memory_space<vmem>>, vector<56x5xf32>,
    %c280 = arith.constant 280 : index
    %c10_40 = arith.constant 10 : index
    %52 = vector.load %arg11[%c280, %c10_40] : memref<648x25xf32, #tpu.memory_space<vmem>>, vector<56x5xf32>
    tpu.vector_store %arg11[%c280, %c10_40], %49 {strides = array<i32>} : memref<648x25xf32, #tpu.memory_space<vmem>>, vector<56x5xf32>,
    %c272 = arith.constant 272 : index
    %c15_41 = arith.constant 15 : index
    %53 = vector.load %arg11[%c272, %c15_41] : memref<648x25xf32, #tpu.memory_space<vmem>>, vector<56x5xf32>
    tpu.vector_store %arg11[%c272, %c15_41], %49 {strides = array<i32>} : memref<648x25xf32, #tpu.memory_space<vmem>>, vector<56x5xf32>,
    %c264 = arith.constant 264 : index
    %c20_42 = arith.constant 20 : index
    %54 = vector.load %arg11[%c264, %c20_42] : memref<648x25xf32, #tpu.memory_space<vmem>>, vector<56x5xf32>
    tpu.vector_store %arg11[%c264, %c20_42], %49 {strides = array<i32>} : memref<648x25xf32, #tpu.memory_space<vmem>>, vector<56x5xf32>,
    %55 = vector.extract_strided_slice %14 {offsets = [224, 0], sizes = [56, 5], strides = [1, 1]} : vector<392x5xf32> to vector<56x5xf32>
    %c368 = arith.constant 368 : index
    %c0_43 = arith.constant 0 : index
    %56 = vector.load %arg11[%c368, %c0_43] : memref<648x25xf32, #tpu.memory_space<vmem>>, vector<56x5xf32>
    tpu.vector_store %arg11[%c368, %c0_43], %55 {strides = array<i32>} : memref<648x25xf32, #tpu.memory_space<vmem>>, vector<56x5xf32>,
    %c360_44 = arith.constant 360 : index
    %c5_45 = arith.constant 5 : index
    %57 = vector.load %arg11[%c360_44, %c5_45] : memref<648x25xf32, #tpu.memory_space<vmem>>, vector<56x5xf32>
    tpu.vector_store %arg11[%c360_44, %c5_45], %55 {strides = array<i32>} : memref<648x25xf32, #tpu.memory_space<vmem>>, vector<56x5xf32>,
    %c352 = arith.constant 352 : index
    %c10_46 = arith.constant 10 : index
    %58 = vector.load %arg11[%c352, %c10_46] : memref<648x25xf32, #tpu.memory_space<vmem>>, vector<56x5xf32>
    tpu.vector_store %arg11[%c352, %c10_46], %55 {strides = array<i32>} : memref<648x25xf32, #tpu.memory_space<vmem>>, vector<56x5xf32>,
    %c344 = arith.constant 344 : index
    %c15_47 = arith.constant 15 : index
    %59 = vector.load %arg11[%c344, %c15_47] : memref<648x25xf32, #tpu.memory_space<vmem>>, vector<56x5xf32>
    tpu.vector_store %arg11[%c344, %c15_47], %55 {strides = array<i32>} : memref<648x25xf32, #tpu.memory_space<vmem>>, vector<56x5xf32>,
    %c336 = arith.constant 336 : index
    %c20_48 = arith.constant 20 : index
    %60 = vector.load %arg11[%c336, %c20_48] : memref<648x25xf32, #tpu.memory_space<vmem>>, vector<56x5xf32>
    tpu.vector_store %arg11[%c336, %c20_48], %55 {strides = array<i32>} : memref<648x25xf32, #tpu.memory_space<vmem>>, vector<56x5xf32>,
    %61 = vector.extract_strided_slice %14 {offsets = [280, 0], sizes = [56, 5], strides = [1, 1]} : vector<392x5xf32> to vector<56x5xf32>
    %c440 = arith.constant 440 : index
    %c0_49 = arith.constant 0 : index
    %62 = vector.load %arg11[%c440, %c0_49] : memref<648x25xf32, #tpu.memory_space<vmem>>, vector<56x5xf32>
    tpu.vector_store %arg11[%c440, %c0_49], %61 {strides = array<i32>} : memref<648x25xf32, #tpu.memory_space<vmem>>, vector<56x5xf32>,
    %c432_50 = arith.constant 432 : index
    %c5_51 = arith.constant 5 : index
    %63 = vector.load %arg11[%c432_50, %c5_51] : memref<648x25xf32, #tpu.memory_space<vmem>>, vector<56x5xf32>
    tpu.vector_store %arg11[%c432_50, %c5_51], %61 {strides = array<i32>} : memref<648x25xf32, #tpu.memory_space<vmem>>, vector<56x5xf32>,
    %c424 = arith.constant 424 : index
    %c10_52 = arith.constant 10 : index
    %64 = vector.load %arg11[%c424, %c10_52] : memref<648x25xf32, #tpu.memory_space<vmem>>, vector<56x5xf32>
    tpu.vector_store %arg11[%c424, %c10_52], %61 {strides = array<i32>} : memref<648x25xf32, #tpu.memory_space<vmem>>, vector<56x5xf32>,
    %c416 = arith.constant 416 : index
    %c15_53 = arith.constant 15 : index
    %65 = vector.load %arg11[%c416, %c15_53] : memref<648x25xf32, #tpu.memory_space<vmem>>, vector<56x5xf32>
    tpu.vector_store %arg11[%c416, %c15_53], %61 {strides = array<i32>} : memref<648x25xf32, #tpu.memory_space<vmem>>, vector<56x5xf32>,
    %c408 = arith.constant 408 : index
    %c20_54 = arith.constant 20 : index
    %66 = vector.load %arg11[%c408, %c20_54] : memref<648x25xf32, #tpu.memory_space<vmem>>, vector<56x5xf32>
    tpu.vector_store %arg11[%c408, %c20_54], %61 {strides = array<i32>} : memref<648x25xf32, #tpu.memory_space<vmem>>, vector<56x5xf32>,
    %67 = vector.extract_strided_slice %14 {offsets = [336, 0], sizes = [56, 5], strides = [1, 1]} : vector<392x5xf32> to vector<56x5xf32>
    %c512 = arith.constant 512 : index
    %c0_55 = arith.constant 0 : index
    %68 = vector.load %arg11[%c512, %c0_55] : memref<648x25xf32, #tpu.memory_space<vmem>>, vector<56x5xf32>
    tpu.vector_store %arg11[%c512, %c0_55], %67 {strides = array<i32>} : memref<648x25xf32, #tpu.memory_space<vmem>>, vector<56x5xf32>,
    %c504_56 = arith.constant 504 : index
    %c5_57 = arith.constant 5 : index
    %69 = vector.load %arg11[%c504_56, %c5_57] : memref<648x25xf32, #tpu.memory_space<vmem>>, vector<56x5xf32>
    tpu.vector_store %arg11[%c504_56, %c5_57], %67 {strides = array<i32>} : memref<648x25xf32, #tpu.memory_space<vmem>>, vector<56x5xf32>,
    %c496 = arith.constant 496 : index
    %c10_58 = arith.constant 10 : index
    %70 = vector.load %arg11[%c496, %c10_58] : memref<648x25xf32, #tpu.memory_space<vmem>>, vector<56x5xf32>
    tpu.vector_store %arg11[%c496, %c10_58], %67 {strides = array<i32>} : memref<648x25xf32, #tpu.memory_space<vmem>>, vector<56x5xf32>,
    %c488 = arith.constant 488 : index
    %c15_59 = arith.constant 15 : index
    %71 = vector.load %arg11[%c488, %c15_59] : memref<648x25xf32, #tpu.memory_space<vmem>>, vector<56x5xf32>
    tpu.vector_store %arg11[%c488, %c15_59], %67 {strides = array<i32>} : memref<648x25xf32, #tpu.memory_space<vmem>>, vector<56x5xf32>,
    %c480 = arith.constant 480 : index
    %c20_60 = arith.constant 20 : index
    %72 = vector.load %arg11[%c480, %c20_60] : memref<648x25xf32, #tpu.memory_space<vmem>>, vector<56x5xf32>
    tpu.vector_store %arg11[%c480, %c20_60], %67 {strides = array<i32>} : memref<648x25xf32, #tpu.memory_space<vmem>>, vector<56x5xf32>,
    %c0_61 = arith.constant 0 : index
    %c0_62 = arith.constant 0 : index
    %73 = vector.load %arg11[%c0_61, %c0_62] : memref<648x25xf32, #tpu.memory_space<vmem>>, vector<288x25xf32>
    %74 = arith.truncf %73 : vector<288x25xf32> to vector<288x25xbf16>
    %c0_63 = arith.constant 0 : index
    %c0_64 = arith.constant 0 : index
    %c0_65 = arith.constant 0 : index
    %75 = vector.load %arg4[%c0_63, %c0_64, %c0_65] : memref<5x25x10xbf16, #tpu.memory_space<vmem>>, vector<1x25x10xbf16>
    %76 = vector.shape_cast %75 : vector<1x25x10xbf16> to vector<25x10xbf16>
    %cst_66 = arith.constant dense<0.000000e+00> : vector<288x10xf32>
    %77 = tpu.matmul %74, %76, %cst_66 {dimension_numbers = #tpu.dot_dimension_numbers<[1], [0], [0], [1], [0, 0, 1, 1], [], []>} : vector<288x25xbf16>, vector<25x10xbf16>, vector<288x10xf32> -> vector<288x10xf32>
    %c72_67 = arith.constant 72 : index
    %c0_68 = arith.constant 0 : index
    %78 = vector.load %arg11[%c72_67, %c0_68] : memref<648x25xf32, #tpu.memory_space<vmem>>, vector<288x25xf32>
    %79 = arith.truncf %78 : vector<288x25xf32> to vector<288x25xbf16>
    %c1 = arith.constant 1 : index
    %c0_69 = arith.constant 0 : index
    %c0_70 = arith.constant 0 : index
    %80 = vector.load %arg4[%c1, %c0_69, %c0_70] : memref<5x25x10xbf16, #tpu.memory_space<vmem>>, vector<1x25x10xbf16>
    %81 = vector.shape_cast %80 : vector<1x25x10xbf16> to vector<25x10xbf16>
    %cst_71 = arith.constant dense<0.000000e+00> : vector<288x10xf32>
    %82 = tpu.matmul %79, %81, %cst_71 {dimension_numbers = #tpu.dot_dimension_numbers<[1], [0], [0], [1], [0, 0, 1, 1], [], []>} : vector<288x25xbf16>, vector<25x10xbf16>, vector<288x10xf32> -> vector<288x10xf32>
    %83 = arith.addf %77, %82 : vector<288x10xf32>
    %c144_72 = arith.constant 144 : index
    %c0_73 = arith.constant 0 : index
    %84 = vector.load %arg11[%c144_72, %c0_73] : memref<648x25xf32, #tpu.memory_space<vmem>>, vector<288x25xf32>
    %85 = arith.truncf %84 : vector<288x25xf32> to vector<288x25xbf16>
    %c2 = arith.constant 2 : index
    %c0_74 = arith.constant 0 : index
    %c0_75 = arith.constant 0 : index
    %86 = vector.load %arg4[%c2, %c0_74, %c0_75] : memref<5x25x10xbf16, #tpu.memory_space<vmem>>, vector<1x25x10xbf16>
    %87 = vector.shape_cast %86 : vector<1x25x10xbf16> to vector<25x10xbf16>
    %cst_76 = arith.constant dense<0.000000e+00> : vector<288x10xf32>
    %88 = tpu.matmul %85, %87, %cst_76 {dimension_numbers = #tpu.dot_dimension_numbers<[1], [0], [0], [1], [0, 0, 1, 1], [], []>} : vector<288x25xbf16>, vector<25x10xbf16>, vector<288x10xf32> -> vector<288x10xf32>
    %89 = arith.addf %83, %88 : vector<288x10xf32>
    %c216_77 = arith.constant 216 : index
    %c0_78 = arith.constant 0 : index
    %90 = vector.load %arg11[%c216_77, %c0_78] : memref<648x25xf32, #tpu.memory_space<vmem>>, vector<288x25xf32>
    %91 = arith.truncf %90 : vector<288x25xf32> to vector<288x25xbf16>
    %c3 = arith.constant 3 : index
    %c0_79 = arith.constant 0 : index
    %c0_80 = arith.constant 0 : index
    %92 = vector.load %arg4[%c3, %c0_79, %c0_80] : memref<5x25x10xbf16, #tpu.memory_space<vmem>>, vector<1x25x10xbf16>
    %93 = vector.shape_cast %92 : vector<1x25x10xbf16> to vector<25x10xbf16>
    %cst_81 = arith.constant dense<0.000000e+00> : vector<288x10xf32>
    %94 = tpu.matmul %91, %93, %cst_81 {dimension_numbers = #tpu.dot_dimension_numbers<[1], [0], [0], [1], [0, 0, 1, 1], [], []>} : vector<288x25xbf16>, vector<25x10xbf16>, vector<288x10xf32> -> vector<288x10xf32>
    %95 = arith.addf %89, %94 : vector<288x10xf32>
    %c288_82 = arith.constant 288 : index
    %c0_83 = arith.constant 0 : index
    %96 = vector.load %arg11[%c288_82, %c0_83] : memref<648x25xf32, #tpu.memory_space<vmem>>, vector<288x25xf32>
    %97 = arith.truncf %96 : vector<288x25xf32> to vector<288x25xbf16>
    %c4 = arith.constant 4 : index
    %c0_84 = arith.constant 0 : index
    %c0_85 = arith.constant 0 : index
    %98 = vector.load %arg4[%c4, %c0_84, %c0_85] : memref<5x25x10xbf16, #tpu.memory_space<vmem>>, vector<1x25x10xbf16>
    %99 = vector.shape_cast %98 : vector<1x25x10xbf16> to vector<25x10xbf16>
    %cst_86 = arith.constant dense<0.000000e+00> : vector<288x10xf32>
    %100 = tpu.matmul %97, %99, %cst_86 {dimension_numbers = #tpu.dot_dimension_numbers<[1], [0], [0], [1], [0, 0, 1, 1], [], []>} : vector<288x25xbf16>, vector<25x10xbf16>, vector<288x10xf32> -> vector<288x10xf32>
    %101 = arith.addf %95, %100 : vector<288x10xf32>
    %c0_87 = arith.constant 0 : index
    %c0_88 = arith.constant 0 : index
    %102 = vector.load %arg5[%c0_87, %c0_88] : memref<1x10xf32, #tpu.memory_space<vmem>>, vector<1x10xf32>
    %cst_89 = arith.constant 0.000000e+00 : f32
    %103 = vector.broadcast %cst_89 : f32 to vector<8x15xf32>
    %104 = vector.extract_strided_slice %101 {offsets = [0, 0], sizes = [8, 10], strides = [1, 1]} : vector<288x10xf32> to vector<8x10xf32>
    %105 = vector.extract_strided_slice %101 {offsets = [8, 0], sizes = [8, 10], strides = [1, 1]} : vector<288x10xf32> to vector<8x10xf32>
    %106 = vector.extract_strided_slice %101 {offsets = [72, 0], sizes = [8, 10], strides = [1, 1]} : vector<288x10xf32> to vector<8x10xf32>
    %107 = vector.extract_strided_slice %101 {offsets = [80, 0], sizes = [8, 10], strides = [1, 1]} : vector<288x10xf32> to vector<8x10xf32>
    %108 = arith.maximumf %104, %105 : vector<8x10xf32>
    %109 = arith.maximumf %106, %107 : vector<8x10xf32>
    %110 = arith.maximumf %108, %109 : vector<8x10xf32>
    %111 = vector.broadcast %102 : vector<1x10xf32> to vector<8x10xf32>
    %112 = arith.addf %110, %111 : vector<8x10xf32>
    %cst_90 = arith.constant 0.000000e+00 : f32
    %113 = vector.broadcast %cst_90 : f32 to vector<8x10xf32>
    %114 = arith.maximumf %112, %113 : vector<8x10xf32>
    %115 = arith.truncf %114 : vector<8x10xf32> to vector<8x10xbf16>
    %c0_91 = arith.constant 0 : index
    %c0_92 = arith.constant 0 : index
    %c0_93 = arith.constant 0 : index
    %116 = vector.load %arg6[%c0_91, %c0_92, %c0_93] : memref<4x10x15xbf16, #tpu.memory_space<vmem>>, vector<1x10x15xbf16>
    %117 = vector.shape_cast %116 : vector<1x10x15xbf16> to vector<10x15xbf16>
    %cst_94 = arith.constant dense<0.000000e+00> : vector<8x15xf32>
    %118 = tpu.matmul %115, %117, %cst_94 {dimension_numbers = #tpu.dot_dimension_numbers<[1], [0], [0], [1], [0, 0, 1, 1], [], []>} : vector<8x10xbf16>, vector<10x15xbf16>, vector<8x15xf32> -> vector<8x15xf32>
    %119 = arith.addf %103, %118 : vector<8x15xf32>
    %120 = vector.extract_strided_slice %101 {offsets = [16, 0], sizes = [8, 10], strides = [1, 1]} : vector<288x10xf32> to vector<8x10xf32>
    %121 = vector.extract_strided_slice %101 {offsets = [24, 0], sizes = [8, 10], strides = [1, 1]} : vector<288x10xf32> to vector<8x10xf32>
    %122 = vector.extract_strided_slice %101 {offsets = [88, 0], sizes = [8, 10], strides = [1, 1]} : vector<288x10xf32> to vector<8x10xf32>
    %123 = vector.extract_strided_slice %101 {offsets = [96, 0], sizes = [8, 10], strides = [1, 1]} : vector<288x10xf32> to vector<8x10xf32>
    %124 = arith.maximumf %120, %121 : vector<8x10xf32>
    %125 = arith.maximumf %122, %123 : vector<8x10xf32>
    %126 = arith.maximumf %124, %125 : vector<8x10xf32>
    %127 = vector.broadcast %102 : vector<1x10xf32> to vector<8x10xf32>
    %128 = arith.addf %126, %127 : vector<8x10xf32>
    %cst_95 = arith.constant 0.000000e+00 : f32
    %129 = vector.broadcast %cst_95 : f32 to vector<8x10xf32>
    %130 = arith.maximumf %128, %129 : vector<8x10xf32>
    %131 = arith.truncf %130 : vector<8x10xf32> to vector<8x10xbf16>
    %c1_96 = arith.constant 1 : index
    %c0_97 = arith.constant 0 : index
    %c0_98 = arith.constant 0 : index
    %132 = vector.load %arg6[%c1_96, %c0_97, %c0_98] : memref<4x10x15xbf16, #tpu.memory_space<vmem>>, vector<1x10x15xbf16>
    %133 = vector.shape_cast %132 : vector<1x10x15xbf16> to vector<10x15xbf16>
    %cst_99 = arith.constant dense<0.000000e+00> : vector<8x15xf32>
    %134 = tpu.matmul %131, %133, %cst_99 {dimension_numbers = #tpu.dot_dimension_numbers<[1], [0], [0], [1], [0, 0, 1, 1], [], []>} : vector<8x10xbf16>, vector<10x15xbf16>, vector<8x15xf32> -> vector<8x15xf32>
    %135 = arith.addf %119, %134 : vector<8x15xf32>
    %136 = vector.extract_strided_slice %101 {offsets = [144, 0], sizes = [8, 10], strides = [1, 1]} : vector<288x10xf32> to vector<8x10xf32>
    %137 = vector.extract_strided_slice %101 {offsets = [152, 0], sizes = [8, 10], strides = [1, 1]} : vector<288x10xf32> to vector<8x10xf32>
    %138 = vector.extract_strided_slice %101 {offsets = [216, 0], sizes = [8, 10], strides = [1, 1]} : vector<288x10xf32> to vector<8x10xf32>
    %139 = vector.extract_strided_slice %101 {offsets = [224, 0], sizes = [8, 10], strides = [1, 1]} : vector<288x10xf32> to vector<8x10xf32>
    %140 = arith.maximumf %136, %137 : vector<8x10xf32>
    %141 = arith.maximumf %138, %139 : vector<8x10xf32>
    %142 = arith.maximumf %140, %141 : vector<8x10xf32>
    %143 = vector.broadcast %102 : vector<1x10xf32> to vector<8x10xf32>
    %144 = arith.addf %142, %143 : vector<8x10xf32>
    %cst_100 = arith.constant 0.000000e+00 : f32
    %145 = vector.broadcast %cst_100 : f32 to vector<8x10xf32>
    %146 = arith.maximumf %144, %145 : vector<8x10xf32>
    %147 = arith.truncf %146 : vector<8x10xf32> to vector<8x10xbf16>
    %c2_101 = arith.constant 2 : index
    %c0_102 = arith.constant 0 : index
    %c0_103 = arith.constant 0 : index
    %148 = vector.load %arg6[%c2_101, %c0_102, %c0_103] : memref<4x10x15xbf16, #tpu.memory_space<vmem>>, vector<1x10x15xbf16>
    %149 = vector.shape_cast %148 : vector<1x10x15xbf16> to vector<10x15xbf16>
    %cst_104 = arith.constant dense<0.000000e+00> : vector<8x15xf32>
    %150 = tpu.matmul %147, %149, %cst_104 {dimension_numbers = #tpu.dot_dimension_numbers<[1], [0], [0], [1], [0, 0, 1, 1], [], []>} : vector<8x10xbf16>, vector<10x15xbf16>, vector<8x15xf32> -> vector<8x15xf32>
    %151 = arith.addf %135, %150 : vector<8x15xf32>
    %152 = vector.extract_strided_slice %101 {offsets = [160, 0], sizes = [8, 10], strides = [1, 1]} : vector<288x10xf32> to vector<8x10xf32>
    %153 = vector.extract_strided_slice %101 {offsets = [168, 0], sizes = [8, 10], strides = [1, 1]} : vector<288x10xf32> to vector<8x10xf32>
    %154 = vector.extract_strided_slice %101 {offsets = [232, 0], sizes = [8, 10], strides = [1, 1]} : vector<288x10xf32> to vector<8x10xf32>
    %155 = vector.extract_strided_slice %101 {offsets = [240, 0], sizes = [8, 10], strides = [1, 1]} : vector<288x10xf32> to vector<8x10xf32>
    %156 = arith.maximumf %152, %153 : vector<8x10xf32>
    %157 = arith.maximumf %154, %155 : vector<8x10xf32>
    %158 = arith.maximumf %156, %157 : vector<8x10xf32>
    %159 = vector.broadcast %102 : vector<1x10xf32> to vector<8x10xf32>
    %160 = arith.addf %158, %159 : vector<8x10xf32>
    %cst_105 = arith.constant 0.000000e+00 : f32
    %161 = vector.broadcast %cst_105 : f32 to vector<8x10xf32>
    %162 = arith.maximumf %160, %161 : vector<8x10xf32>
    %163 = arith.truncf %162 : vector<8x10xf32> to vector<8x10xbf16>
    %c3_106 = arith.constant 3 : index
    %c0_107 = arith.constant 0 : index
    %c0_108 = arith.constant 0 : index
    %164 = vector.load %arg6[%c3_106, %c0_107, %c0_108] : memref<4x10x15xbf16, #tpu.memory_space<vmem>>, vector<1x10x15xbf16>
    %165 = vector.shape_cast %164 : vector<1x10x15xbf16> to vector<10x15xbf16>
    %cst_109 = arith.constant dense<0.000000e+00> : vector<8x15xf32>
    %166 = tpu.matmul %163, %165, %cst_109 {dimension_numbers = #tpu.dot_dimension_numbers<[1], [0], [0], [1], [0, 0, 1, 1], [], []>} : vector<8x10xbf16>, vector<10x15xbf16>, vector<8x15xf32> -> vector<8x15xf32>
    %167 = arith.addf %151, %166 : vector<8x15xf32>
    %c0_110 = arith.constant 0 : index
    %c0_111 = arith.constant 0 : index
    %168 = vector.load %arg7[%c0_110, %c0_111] : memref<1x15xf32, #tpu.memory_space<vmem>>, vector<1x15xf32>
    %169 = vector.broadcast %168 : vector<1x15xf32> to vector<8x15xf32>
    %170 = arith.addf %167, %169 : vector<8x15xf32>
    %cst_112 = arith.constant 0.000000e+00 : f32
    %171 = vector.broadcast %cst_112 : f32 to vector<8x15xf32>
    %172 = arith.maximumf %170, %171 : vector<8x15xf32>
    %173 = arith.truncf %172 : vector<8x15xf32> to vector<8x15xbf16>
    %c0_113 = arith.constant 0 : index
    %c0_114 = arith.constant 0 : index
    %174 = vector.load %arg8[%c0_113, %c0_114] : memref<15x3xbf16, #tpu.memory_space<vmem>>, vector<15x3xbf16>
    %cst_115 = arith.constant dense<0.000000e+00> : vector<8x3xf32>
    %175 = tpu.matmul %173, %174, %cst_115 {dimension_numbers = #tpu.dot_dimension_numbers<[1], [0], [0], [1], [0, 0, 1, 1], [], []>} : vector<8x15xbf16>, vector<15x3xbf16>, vector<8x3xf32> -> vector<8x3xf32>
    %c0_116 = arith.constant 0 : index
    %c0_117 = arith.constant 0 : index
    %176 = vector.load %arg9[%c0_116, %c0_117] : memref<1x3xf32, #tpu.memory_space<vmem>>, vector<1x3xf32>
    %177 = vector.broadcast %176 : vector<1x3xf32> to vector<8x3xf32>
    %178 = arith.addf %175, %177 : vector<8x3xf32>
    %c0_118 = arith.constant 0 : index
    %c0_119 = arith.constant 0 : index
    %179 = vector.load %arg10[%c0_118, %c0_119] : memref<8x3xf32, #tpu.memory_space<vmem>>, vector<8x3xf32>
    tpu.vector_store %arg10[%c0_118, %c0_119], %178 {strides = array<i32>} : memref<8x3xf32, #tpu.memory_space<vmem>>, vector<8x3xf32>,
    return
  }
  func.func @transform_0(%arg0: i32) -> (i32, i32) {
    %c0_i32 = arith.constant 0 : i32
    %c0_i32_0 = arith.constant 0 : i32
    %c0_i32_1 = arith.constant 0 : i32
    return %c0_i32, %c0_i32_0 : i32, i32
  }
  func.func @transform_1(%arg0: i32) -> (i32, i32) {
    %c0_i32 = arith.constant 0 : i32
    %c0_i32_0 = arith.constant 0 : i32
    %c0_i32_1 = arith.constant 0 : i32
    return %c0_i32, %c0_i32_0 : i32, i32
  }
  func.func @transform_2(%arg0: i32) -> (i32, i32) {
    %c0_i32 = arith.constant 0 : i32
    %c0_i32_0 = arith.constant 0 : i32
    %c0_i32_1 = arith.constant 0 : i32
    return %c0_i32, %c0_i32_0 : i32, i32
  }
  func.func @transform_3(%arg0: i32) -> (i32, i32, i32) {
    %c0_i32 = arith.constant 0 : i32
    %c0_i32_0 = arith.constant 0 : i32
    %c0_i32_1 = arith.constant 0 : i32
    %c0_i32_2 = arith.constant 0 : i32
    return %c0_i32, %c0_i32_0, %c0_i32_1 : i32, i32, i32
  }
  func.func @transform_4(%arg0: i32) -> (i32, i32) {
    %c0_i32 = arith.constant 0 : i32
    %c0_i32_0 = arith.constant 0 : i32
    %c0_i32_1 = arith.constant 0 : i32
    return %c0_i32, %c0_i32_0 : i32, i32
  }
  func.func @transform_5(%arg0: i32) -> (i32, i32, i32) {
    %c0_i32 = arith.constant 0 : i32
    %c0_i32_0 = arith.constant 0 : i32
    %c0_i32_1 = arith.constant 0 : i32
    %c0_i32_2 = arith.constant 0 : i32
    return %c0_i32, %c0_i32_0, %c0_i32_1 : i32, i32, i32
  }
  func.func @transform_6(%arg0: i32) -> (i32, i32) {
    %c0_i32 = arith.constant 0 : i32
    %c0_i32_0 = arith.constant 0 : i32
    %c0_i32_1 = arith.constant 0 : i32
    return %c0_i32, %c0_i32_0 : i32, i32
  }
  func.func @transform_7(%arg0: i32) -> (i32, i32) {
    %c0_i32 = arith.constant 0 : i32
    %c0_i32_0 = arith.constant 0 : i32
    %c0_i32_1 = arith.constant 0 : i32
    return %c0_i32, %c0_i32_0 : i32, i32
  }
  func.func @transform_8(%arg0: i32) -> (i32, i32) {
    %c0_i32 = arith.constant 0 : i32
    %c0_i32_0 = arith.constant 0 : i32
    %c0_i32_1 = arith.constant 0 : i32
    return %c0_i32, %c0_i32_0 : i32, i32
  }
  func.func @transform_9(%arg0: i32) -> (i32, i32) {
    %c0_i32 = arith.constant 0 : i32
    %c0_i32_0 = arith.constant 0 : i32
    %c0_i32_1 = arith.constant 0 : i32
    return %c0_i32, %c0_i32_0 : i32, i32
  }
}

</mosaic_0001>

<llo_original>
// kernel: prim_model_forward.1
$region0: #{prim_model_forward.1}
  #allocation0 [shape = 'u32[]', space=smem, size = 0x4, offset = 0x4, fixed_abs, tag = 'smem constant byte address 0x4 - core index']
  #allocation1 [shape = 'u32[144,128]{1,0:T(1,128)}', space=vmem, size = 0x12000, scoped, tag = 'internal scratch']
  #allocation2 [shape = 'f32[648,25]{1,0:T(8,128)}', space=vmem, size = 0x51000, scoped, tag = 'scratch operand']
  %s0 = inlined_call_operand.vmem [shape: bf16[1568,75], index: 0, kind: input, shape index: {}]
  %s1 = inlined_call_operand.vmem [shape: bf16[75,5], index: 1, kind: input, shape index: {}]
  %s2 = inlined_call_operand.vmem [shape: f32[1,5], index: 2, kind: input, shape index: {}]
  %s3 = inlined_call_operand.vmem [shape: bf16[5,25,10], index: 3, kind: input, shape index: {}]
  %s4 = inlined_call_operand.vmem [shape: f32[1,10], index: 4, kind: input, shape index: {}]
  %s5 = inlined_call_operand.vmem [shape: bf16[4,10,15], index: 5, kind: input, shape index: {}]
  %s6 = inlined_call_operand.vmem [shape: f32[1,15], index: 6, kind: input, shape index: {}]
  %s7 = inlined_call_operand.vmem [shape: bf16[15,3], index: 7, kind: input, shape index: {}]
  %s8 = inlined_call_operand.vmem [shape: f32[1,3], index: 8, kind: input, shape index: {}]
  %s9 = inlined_call_operand.vmem [shape: f32[8,3], index: 9, kind: output, shape index: {}]
  %s10 = sld [smem:[#allocation0]]
  $region46: #{prim_model_forward.1} parent=0
    _
  %s12 = ssub.s32 1, %s10
  %s13 = scalar_select 0, %s12, %s10
  // Predicated region
  $region2: #{prim_model_forward.1} parent=0 // pred_check
    _
  $region3: #{prim_model_forward.1} parent=0 // pred_check_branch
    %15 = sbr.rel (0) target = $region5
  $region4: #{prim_model_forward.1} parent=0 // pred_region
    _
  $region5: #{prim_model_forward.1} parent=0 // pred_fallthru
    _
  // Predicated region
  $region6: #{prim_model_forward.1} parent=0 // pred_check
    _
  $region7: #{prim_model_forward.1} parent=0 // pred_check_branch
    %17 = sbr.rel (0) target = $region9
  $region8: #{prim_model_forward.1} parent=0 // pred_region
    _
  $region9: #{prim_model_forward.1} parent=0 // pred_fallthru
    _
  // Predicated region
  $region10: #{prim_model_forward.1} parent=0 // pred_check
    _
  $region11: #{prim_model_forward.1} parent=0 // pred_check_branch
    %19 = sbr.rel (0) target = $region13
  $region12: #{prim_model_forward.1} parent=0 // pred_region
    _
  $region13: #{prim_model_forward.1} parent=0 // pred_fallthru
    _
  // Predicated region
  $region14: #{prim_model_forward.1} parent=0 // pred_check
    _
  $region15: #{prim_model_forward.1} parent=0 // pred_check_branch
    %21 = sbr.rel (0) target = $region17
  $region16: #{prim_model_forward.1} parent=0 // pred_region
    _
  $region17: #{prim_model_forward.1} parent=0 // pred_fallthru
    _
  // Predicated region
  $region18: #{prim_model_forward.1} parent=0 // pred_check
    _
  $region19: #{prim_model_forward.1} parent=0 // pred_check_branch
    %23 = sbr.rel (0) target = $region21
  $region20: #{prim_model_forward.1} parent=0 // pred_region
    _
  $region21: #{prim_model_forward.1} parent=0 // pred_fallthru
    _
  // Predicated region
  $region22: #{prim_model_forward.1} parent=0 // pred_check
    _
  $region23: #{prim_model_forward.1} parent=0 // pred_check_branch
    %25 = sbr.rel (0) target = $region25
  $region24: #{prim_model_forward.1} parent=0 // pred_region
    _
  $region25: #{prim_model_forward.1} parent=0 // pred_fallthru
    _
  // Predicated region
  $region26: #{prim_model_forward.1} parent=0 // pred_check
    _
  $region27: #{prim_model_forward.1} parent=0 // pred_check_branch
    %27 = sbr.rel (0) target = $region29
  $region28: #{prim_model_forward.1} parent=0 // pred_region
    _
  $region29: #{prim_model_forward.1} parent=0 // pred_fallthru
    _
  // Predicated region
  $region30: #{prim_model_forward.1} parent=0 // pred_check
    _
  $region31: #{prim_model_forward.1} parent=0 // pred_check_branch
    %29 = sbr.rel (0) target = $region33
  $region32: #{prim_model_forward.1} parent=0 // pred_region
    _
  $region33: #{prim_model_forward.1} parent=0 // pred_fallthru
    _
  // Predicated region
  $region34: #{prim_model_forward.1} parent=0 // pred_check
    _
  $region35: #{prim_model_forward.1} parent=0 // pred_check_branch
    %31 = sbr.rel (0) target = $region37
  $region36: #{prim_model_forward.1} parent=0 // pred_region
    _
  $region37: #{prim_model_forward.1} parent=0 // pred_fallthru
    _
  %v33 = vld [vmem:[%s0] sm:$0xf]
  %v34 = vld [vmem:[%s0 + $0x4] sm:$0xf]
  %v35 = vld [vmem:[%s0 + $0x8] sm:$0xf]
  %v36 = vld [vmem:[%s0 + $0xc] sm:$0xf]
  %v37 = vld [vmem:[%s0 + $0x10] sm:$0xf]
  %v38 = vld [vmem:[%s0 + $0x14] sm:$0xf]
  %v39 = vld [vmem:[%s0 + $0x18] sm:$0xf]
  %v40 = vld [vmem:[%s0 + $0x1c] sm:$0xf]
  %v41 = vld [vmem:[%s0 + $0x20] sm:$0xf]
  %v42 = vld [vmem:[%s0 + $0x24] sm:$0xf]
  %v43 = vld [vmem:[%s0 + $0x28] sm:$0xf]
  %v44 = vld [vmem:[%s0 + $0x2c] sm:$0xf]
  %v45 = vld [vmem:[%s0 + $0x30] sm:$0xf]
  %v46 = vld [vmem:[%s0 + $0x34] sm:$0xf]
  %v47 = vld [vmem:[%s0 + $0x38] sm:$0xf]
  %v48 = vld [vmem:[%s0 + $0x3c] sm:$0xf]
  %v49 = vld [vmem:[%s0 + $0x40] sm:$0xf]
  %v50 = vld [vmem:[%s0 + $0x44] sm:$0xf]
  %v51 = vld [vmem:[%s0 + $0x48] sm:$0xf]
  %v52 = vld [vmem:[%s0 + $0x4c] sm:$0xf]
  %v53 = vld [vmem:[%s0 + $0x50] sm:$0xf]
  %v54 = vld [vmem:[%s0 + $0x54] sm:$0xf]
  %v55 = vld [vmem:[%s0 + $0x58] sm:$0xf]
  %v56 = vld [vmem:[%s0 + $0x5c] sm:$0xf]
  %v57 = vld [vmem:[%s0 + $0x60] sm:$0xf]
  %v58 = vld [vmem:[%s0 + $0x64] sm:$0xf]
  %v59 = vld [vmem:[%s0 + $0x68] sm:$0xf]
  %v60 = vld [vmem:[%s0 + $0x6c] sm:$0xf]
  %v61 = vld [vmem:[%s0 + $0x70] sm:$0xf]
  %v62 = vld [vmem:[%s0 + $0x74] sm:$0xf]
  %v63 = vld [vmem:[%s0 + $0x78] sm:$0xf]
  %v64 = vld [vmem:[%s0 + $0x7c] sm:$0xf]
  %v65 = vld [vmem:[%s0 + $0x80] sm:$0xf]
  %v66 = vld [vmem:[%s0 + $0x84] sm:$0xf]
  %v67 = vld [vmem:[%s0 + $0x88] sm:$0xf]
  %v68 = vld [vmem:[%s0 + $0x8c] sm:$0xf]
  %v69 = vld [vmem:[%s0 + $0x90] sm:$0xf]
  %v70 = vld [vmem:[%s0 + $0x94] sm:$0xf]
  %v71 = vld [vmem:[%s0 + $0x98] sm:$0xf]
  %v72 = vld [vmem:[%s0 + $0x9c] sm:$0xf]
  %v73 = vld [vmem:[%s0 + $0xa0] sm:$0xf]
  %v74 = vld [vmem:[%s0 + $0xa4] sm:$0xf]
  %v75 = vld [vmem:[%s0 + $0xa8] sm:$0xf]
  %v76 = vld [vmem:[%s0 + $0xac] sm:$0xf]
  %v77 = vld [vmem:[%s0 + $0xb0] sm:$0xf]
  %v78 = vld [vmem:[%s0 + $0xb4] sm:$0xf]
  %v79 = vld [vmem:[%s0 + $0xb8] sm:$0xf]
  %v80 = vld [vmem:[%s0 + $0xbc] sm:$0xf]
  %v81 = vld [vmem:[%s0 + $0xc0] sm:$0xf]
  %v82 = vld [vmem:[%s0 + $0xc4] sm:$0xf]
  %v83 = vld [vmem:[%s0 + $0xc8] sm:$0xf]
  %v84 = vld [vmem:[%s0 + $0xcc] sm:$0xf]
  %v85 = vld [vmem:[%s0 + $0xd0] sm:$0xf]
  %v86 = vld [vmem:[%s0 + $0xd4] sm:$0xf]
  %v87 = vld [vmem:[%s0 + $0xd8] sm:$0xf]
  %v88 = vld [vmem:[%s0 + $0xdc] sm:$0xf]
  %v89 = vld [vmem:[%s0 + $0xe0] sm:$0xf]
  %v90 = vld [vmem:[%s0 + $0xe4] sm:$0xf]
  %v91 = vld [vmem:[%s0 + $0xe8] sm:$0xf]
  %v92 = vld [vmem:[%s0 + $0xec] sm:$0xf]
  %v93 = vld [vmem:[%s0 + $0xf0] sm:$0xf]
  %v94 = vld [vmem:[%s0 + $0xf4] sm:$0xf]
  %v95 = vld [vmem:[%s0 + $0xf8] sm:$0xf]
  %v96 = vld [vmem:[%s0 + $0xfc] sm:$0xf]
  %v97 = vld [vmem:[%s0 + $0x100] sm:$0xf]
  %v98 = vld [vmem:[%s0 + $0x104] sm:$0xf]
  %v99 = vld [vmem:[%s0 + $0x108] sm:$0xf]
  %v100 = vld [vmem:[%s0 + $0x10c] sm:$0xf]
  %v101 = vld [vmem:[%s0 + $0x110] sm:$0xf]
  %v102 = vld [vmem:[%s0 + $0x114] sm:$0xf]
  %v103 = vld [vmem:[%s0 + $0x118] sm:$0xf]
  %v104 = vld [vmem:[%s0 + $0x11c] sm:$0xf]
  %v105 = vld [vmem:[%s0 + $0x120] sm:$0xf]
  %v106 = vld [vmem:[%s0 + $0x124] sm:$0xf]
  %v107 = vld [vmem:[%s0 + $0x128] sm:$0xf]
  %v108 = vld [vmem:[%s0 + $0x12c] sm:$0xf]
  %v109 = vld [vmem:[%s0 + $0x130] sm:$0xf]
  %v110 = vld [vmem:[%s0 + $0x134] sm:$0xf]
  %v111 = vld [vmem:[%s0 + $0x138] sm:$0xf]
  %v112 = vld [vmem:[%s0 + $0x13c] sm:$0xf]
  %v113 = vld [vmem:[%s0 + $0x140] sm:$0xf]
  %v114 = vld [vmem:[%s0 + $0x144] sm:$0xf]
  %v115 = vld [vmem:[%s0 + $0x148] sm:$0xf]
  %v116 = vld [vmem:[%s0 + $0x14c] sm:$0xf]
  %v117 = vld [vmem:[%s0 + $0x150] sm:$0xf]
  %v118 = vld [vmem:[%s0 + $0x154] sm:$0xf]
  %v119 = vld [vmem:[%s0 + $0x158] sm:$0xf]
  %v120 = vld [vmem:[%s0 + $0x15c] sm:$0xf]
  %v121 = vld [vmem:[%s0 + $0x160] sm:$0xf]
  %v122 = vld [vmem:[%s0 + $0x164] sm:$0xf]
  %v123 = vld [vmem:[%s0 + $0x168] sm:$0xf]
  %v124 = vld [vmem:[%s0 + $0x16c] sm:$0xf]
  %v125 = vld [vmem:[%s0 + $0x170] sm:$0xf]
  %v126 = vld [vmem:[%s0 + $0x174] sm:$0xf]
  %v127 = vld [vmem:[%s0 + $0x178] sm:$0xf]
  %v128 = vld [vmem:[%s0 + $0x17c] sm:$0xf]
  %v129 = vld [vmem:[%s0 + $0x180] sm:$0xf]
  %v130 = vld [vmem:[%s0 + $0x184] sm:$0xf]
  %v131 = vld [vmem:[%s0 + $0x188] sm:$0xf]
  %v132 = vld [vmem:[%s0 + $0x18c] sm:$0xf]
  %v133 = vld [vmem:[%s0 + $0x190] sm:$0xf]
  %v134 = vld [vmem:[%s0 + $0x194] sm:$0xf]
  %v135 = vld [vmem:[%s0 + $0x198] sm:$0xf]
  %v136 = vld [vmem:[%s0 + $0x19c] sm:$0xf]
  %v137 = vld [vmem:[%s0 + $0x1a0] sm:$0xf]
  %v138 = vld [vmem:[%s0 + $0x1a4] sm:$0xf]
  %v139 = vld [vmem:[%s0 + $0x1a8] sm:$0xf]
  %v140 = vld [vmem:[%s0 + $0x1ac] sm:$0xf]
  %v141 = vld [vmem:[%s0 + $0x1b0] sm:$0xf]
  %v142 = vld [vmem:[%s0 + $0x1b4] sm:$0xf]
  %v143 = vld [vmem:[%s0 + $0x1b8] sm:$0xf]
  %v144 = vld [vmem:[%s0 + $0x1bc] sm:$0xf]
  %v145 = vld [vmem:[%s0 + $0x1c0] sm:$0xf]
  %v146 = vld [vmem:[%s0 + $0x1c4] sm:$0xf]
  %v147 = vld [vmem:[%s0 + $0x1c8] sm:$0xf]
  %v148 = vld [vmem:[%s0 + $0x1cc] sm:$0xf]
  %v149 = vld [vmem:[%s0 + $0x1d0] sm:$0xf]
  %v150 = vld [vmem:[%s0 + $0x1d4] sm:$0xf]
  %v151 = vld [vmem:[%s0 + $0x1d8] sm:$0xf]
  %v152 = vld [vmem:[%s0 + $0x1dc] sm:$0xf]
  %v153 = vld [vmem:[%s0 + $0x1e0] sm:$0xf]
  %v154 = vld [vmem:[%s0 + $0x1e4] sm:$0xf]
  %v155 = vld [vmem:[%s0 + $0x1e8] sm:$0xf]
  %v156 = vld [vmem:[%s0 + $0x1ec] sm:$0xf]
  %v157 = vld [vmem:[%s0 + $0x1f0] sm:$0xf]
  %v158 = vld [vmem:[%s0 + $0x1f4] sm:$0xf]
  %v159 = vld [vmem:[%s0 + $0x1f8] sm:$0xf]
  %v160 = vld [vmem:[%s0 + $0x1fc] sm:$0xf]
  %v161 = vld [vmem:[%s0 + $0x200] sm:$0xf]
  %v162 = vld [vmem:[%s0 + $0x204] sm:$0xf]
  %v163 = vld [vmem:[%s0 + $0x208] sm:$0xf]
  %v164 = vld [vmem:[%s0 + $0x20c] sm:$0xf]
  %v165 = vld [vmem:[%s0 + $0x210] sm:$0xf]
  %v166 = vld [vmem:[%s0 + $0x214] sm:$0xf]
  %v167 = vld [vmem:[%s0 + $0x218] sm:$0xf]
  %v168 = vld [vmem:[%s0 + $0x21c] sm:$0xf]
  %v169 = vld [vmem:[%s0 + $0x220] sm:$0xf]
  %v170 = vld [vmem:[%s0 + $0x224] sm:$0xf]
  %v171 = vld [vmem:[%s0 + $0x228] sm:$0xf]
  %v172 = vld [vmem:[%s0 + $0x22c] sm:$0xf]
  %v173 = vld [vmem:[%s0 + $0x230] sm:$0xf]
  %v174 = vld [vmem:[%s0 + $0x234] sm:$0xf]
  %v175 = vld [vmem:[%s0 + $0x238] sm:$0xf]
  %v176 = vld [vmem:[%s0 + $0x23c] sm:$0xf]
  %v177 = vld [vmem:[%s0 + $0x240] sm:$0xf]
  %v178 = vld [vmem:[%s0 + $0x244] sm:$0xf]
  %v179 = vld [vmem:[%s0 + $0x248] sm:$0xf]
  %v180 = vld [vmem:[%s0 + $0x24c] sm:$0xf]
  %v181 = vld [vmem:[%s0 + $0x250] sm:$0xf]
  %v182 = vld [vmem:[%s0 + $0x254] sm:$0xf]
  %v183 = vld [vmem:[%s0 + $0x258] sm:$0xf]
  %v184 = vld [vmem:[%s0 + $0x25c] sm:$0xf]
  %v185 = vld [vmem:[%s0 + $0x260] sm:$0xf]
  %v186 = vld [vmem:[%s0 + $0x264] sm:$0xf]
  %v187 = vld [vmem:[%s0 + $0x268] sm:$0xf]
  %v188 = vld [vmem:[%s0 + $0x26c] sm:$0xf]
  %v189 = vld [vmem:[%s0 + $0x270] sm:$0xf]
  %v190 = vld [vmem:[%s0 + $0x274] sm:$0xf]
  %v191 = vld [vmem:[%s0 + $0x278] sm:$0xf]
  %v192 = vld [vmem:[%s0 + $0x27c] sm:$0xf]
  %v193 = vld [vmem:[%s0 + $0x280] sm:$0xf]
  %v194 = vld [vmem:[%s0 + $0x284] sm:$0xf]
  %v195 = vld [vmem:[%s0 + $0x288] sm:$0xf]
  %v196 = vld [vmem:[%s0 + $0x28c] sm:$0xf]
  %v197 = vld [vmem:[%s0 + $0x290] sm:$0xf]
  %v198 = vld [vmem:[%s0 + $0x294] sm:$0xf]
  %v199 = vld [vmem:[%s0 + $0x298] sm:$0xf]
  %v200 = vld [vmem:[%s0 + $0x29c] sm:$0xf]
  %v201 = vld [vmem:[%s0 + $0x2a0] sm:$0xf]
  %v202 = vld [vmem:[%s0 + $0x2a4] sm:$0xf]
  %v203 = vld [vmem:[%s0 + $0x2a8] sm:$0xf]
  %v204 = vld [vmem:[%s0 + $0x2ac] sm:$0xf]
  %v205 = vld [vmem:[%s0 + $0x2b0] sm:$0xf]
  %v206 = vld [vmem:[%s0 + $0x2b4] sm:$0xf]
  %v207 = vld [vmem:[%s0 + $0x2b8] sm:$0xf]
  %v208 = vld [vmem:[%s0 + $0x2bc] sm:$0xf]
  %v209 = vld [vmem:[%s0 + $0x2c0] sm:$0xf]
  %v210 = vld [vmem:[%s0 + $0x2c4] sm:$0xf]
  %v211 = vld [vmem:[%s0 + $0x2c8] sm:$0xf]
  %v212 = vld [vmem:[%s0 + $0x2cc] sm:$0xf]
  %v213 = vld [vmem:[%s0 + $0x2d0] sm:$0xf]
  %v214 = vld [vmem:[%s0 + $0x2d4] sm:$0xf]
  %v215 = vld [vmem:[%s0 + $0x2d8] sm:$0xf]
  %v216 = vld [vmem:[%s0 + $0x2dc] sm:$0xf]
  %v217 = vld [vmem:[%s0 + $0x2e0] sm:$0xf]
  %v218 = vld [vmem:[%s0 + $0x2e4] sm:$0xf]
  %v219 = vld [vmem:[%s0 + $0x2e8] sm:$0xf]
  %v220 = vld [vmem:[%s0 + $0x2ec] sm:$0xf]
  %v221 = vld [vmem:[%s0 + $0x2f0] sm:$0xf]
  %v222 = vld [vmem:[%s0 + $0x2f4] sm:$0xf]
  %v223 = vld [vmem:[%s0 + $0x2f8] sm:$0xf]
  %v224 = vld [vmem:[%s0 + $0x2fc] sm:$0xf]
  %v225 = vld [vmem:[%s0 + $0x300] sm:$0xf]
  %v226 = vld [vmem:[%s0 + $0x304] sm:$0xf]
  %v227 = vld [vmem:[%s0 + $0x308] sm:$0xf]
  %v228 = vld [vmem:[%s0 + $0x30c] sm:$0xf]
  %v229 = vld [vmem:[%s1] sm:$0xf]
  %v230 = vld [vmem:[%s1 + $0x4] sm:$0xf]
  %v231 = vld [vmem:[%s1 + $0x8] sm:$0xf]
  %v232 = vld [vmem:[%s1 + $0xc] sm:$0xf]
  %v233 = vld [vmem:[%s1 + $0x10] sm:$0xf]
  %v234 = vld [vmem:[%s1 + $0x14] sm:$0xf]
  %v235 = vld [vmem:[%s1 + $0x18] sm:$0xf]
  %v236 = vld [vmem:[%s1 + $0x1c] sm:$0xf]
  %v237 = vld [vmem:[%s1 + $0x20] sm:$0xf]
  %v238 = vld [vmem:[%s1 + $0x24] sm:$0x3]
  %v435 = vunpack.c.l.b16 %v33
  %v436 = vunpack.c.l.b16 %v34
  %v437 = vunpack.c.l.b16 %v35
  %v438 = vunpack.c.l.b16 %v36
  %v439 = vunpack.c.l.b16 %v37
  %v440 = vunpack.c.l.b16 %v38
  %v441 = vunpack.c.l.b16 %v39
  %v442 = vunpack.c.l.b16 %v40
  %v443 = vunpack.c.l.b16 %v41
  %v444 = vunpack.c.l.b16 %v42
  %v445 = vunpack.c.l.b16 %v43
  %v446 = vunpack.c.l.b16 %v44
  %v447 = vunpack.c.l.b16 %v45
  %v448 = vunpack.c.l.b16 %v46
  %v449 = vunpack.c.l.b16 %v47
  %v450 = vunpack.c.l.b16 %v48
  %v451 = vunpack.c.l.b16 %v49
  %v452 = vunpack.c.l.b16 %v50
  %v453 = vunpack.c.l.b16 %v51
  %v454 = vunpack.c.l.b16 %v52
  %v455 = vunpack.c.l.b16 %v53
  %v456 = vunpack.c.l.b16 %v54
  %v457 = vunpack.c.l.b16 %v55
  %v458 = vunpack.c.l.b16 %v56
  %v459 = vunpack.c.l.b16 %v57
  %v460 = vunpack.c.l.b16 %v58
  %v461 = vunpack.c.l.b16 %v59
  %v462 = vunpack.c.l.b16 %v60
  %v463 = vunpack.c.l.b16 %v61
  %v464 = vunpack.c.l.b16 %v62
  %v465 = vunpack.c.l.b16 %v63
  %v466 = vunpack.c.l.b16 %v64
  %v467 = vunpack.c.l.b16 %v65
  %v468 = vunpack.c.l.b16 %v66
  %v469 = vunpack.c.l.b16 %v67
  %v470 = vunpack.c.l.b16 %v68
  %v471 = vunpack.c.l.b16 %v69
  %v472 = vunpack.c.l.b16 %v70
  %v473 = vunpack.c.l.b16 %v71
  %v474 = vunpack.c.l.b16 %v72
  %v475 = vunpack.c.l.b16 %v73
  %v476 = vunpack.c.l.b16 %v74
  %v477 = vunpack.c.l.b16 %v75
  %v478 = vunpack.c.l.b16 %v76
  %v479 = vunpack.c.l.b16 %v77
  %v480 = vunpack.c.l.b16 %v78
  %v481 = vunpack.c.l.b16 %v79
  %v482 = vunpack.c.l.b16 %v80
  %v483 = vunpack.c.l.b16 %v81
  %v484 = vunpack.c.l.b16 %v82
  %v485 = vunpack.c.l.b16 %v83
  %v486 = vunpack.c.l.b16 %v84
  %v487 = vunpack.c.l.b16 %v85
  %v488 = vunpack.c.l.b16 %v86
  %v489 = vunpack.c.l.b16 %v87
  %v490 = vunpack.c.l.b16 %v88
  %v491 = vunpack.c.l.b16 %v89
  %v492 = vunpack.c.l.b16 %v90
  %v493 = vunpack.c.l.b16 %v91
  %v494 = vunpack.c.l.b16 %v92
  %v495 = vunpack.c.l.b16 %v93
  %v496 = vunpack.c.l.b16 %v94
  %v497 = vunpack.c.l.b16 %v95
  %v498 = vunpack.c.l.b16 %v96
  %v499 = vunpack.c.l.b16 %v97
  %v500 = vunpack.c.l.b16 %v98
  %v501 = vunpack.c.l.b16 %v99
  %v502 = vunpack.c.l.b16 %v100
  %v503 = vunpack.c.l.b16 %v101
  %v504 = vunpack.c.l.b16 %v102
  %v505 = vunpack.c.l.b16 %v103
  %v506 = vunpack.c.l.b16 %v104
  %v507 = vunpack.c.l.b16 %v105
  %v508 = vunpack.c.l.b16 %v106
  %v509 = vunpack.c.l.b16 %v107
  %v510 = vunpack.c.l.b16 %v108
  %v511 = vunpack.c.l.b16 %v109
  %v512 = vunpack.c.l.b16 %v110
  %v513 = vunpack.c.l.b16 %v111
  %v514 = vunpack.c.l.b16 %v112
  %v515 = vunpack.c.l.b16 %v113
  %v516 = vunpack.c.l.b16 %v114
  %v517 = vunpack.c.l.b16 %v115
  %v518 = vunpack.c.l.b16 %v116
  %v519 = vunpack.c.l.b16 %v117
  %v520 = vunpack.c.l.b16 %v118
  %v521 = vunpack.c.l.b16 %v119
  %v522 = vunpack.c.l.b16 %v120
  %v523 = vunpack.c.l.b16 %v121
  %v524 = vunpack.c.l.b16 %v122
  %v525 = vunpack.c.l.b16 %v123
  %v526 = vunpack.c.l.b16 %v124
  %v527 = vunpack.c.l.b16 %v125
  %v528 = vunpack.c.l.b16 %v126
  %v529 = vunpack.c.l.b16 %v127
  %v530 = vunpack.c.l.b16 %v128
  %v531 = vunpack.c.l.b16 %v129
  %v532 = vunpack.c.l.b16 %v130
  %v533 = vunpack.c.l.b16 %v131
  %v534 = vunpack.c.l.b16 %v132
  %v535 = vunpack.c.l.b16 %v133
  %v536 = vunpack.c.l.b16 %v134
  %v537 = vunpack.c.l.b16 %v135
  %v538 = vunpack.c.l.b16 %v136
  %v539 = vunpack.c.l.b16 %v137
  %v540 = vunpack.c.l.b16 %v138
  %v541 = vunpack.c.l.b16 %v139
  %v542 = vunpack.c.l.b16 %v140
  %v543 = vunpack.c.l.b16 %v141
  %v544 = vunpack.c.l.b16 %v142
  %v545 = vunpack.c.l.b16 %v143
  %v546 = vunpack.c.l.b16 %v144
  %v547 = vunpack.c.l.b16 %v145
  %v548 = vunpack.c.l.b16 %v146
  %v549 = vunpack.c.l.b16 %v147
  %v550 = vunpack.c.l.b16 %v148
  %v551 = vunpack.c.l.b16 %v149
  %v552 = vunpack.c.l.b16 %v150
  %v553 = vunpack.c.l.b16 %v151
  %v554 = vunpack.c.l.b16 %v152
  %v555 = vunpack.c.l.b16 %v153
  %v556 = vunpack.c.l.b16 %v154
  %v557 = vunpack.c.l.b16 %v155
  %v558 = vunpack.c.l.b16 %v156
  %v559 = vunpack.c.l.b16 %v157
  %v560 = vunpack.c.l.b16 %v158
  %v561 = vunpack.c.l.b16 %v159
  %v562 = vunpack.c.l.b16 %v160
  %v563 = vunpack.c.l.b16 %v161
  %v564 = vunpack.c.l.b16 %v162
  %v565 = vunpack.c.l.b16 %v163
  %v566 = vunpack.c.l.b16 %v164
  %v567 = vunpack.c.l.b16 %v165
  %v568 = vunpack.c.l.b16 %v166
  %v569 = vunpack.c.l.b16 %v167
  %v570 = vunpack.c.l.b16 %v168
  %v571 = vunpack.c.l.b16 %v169
  %v572 = vunpack.c.l.b16 %v170
  %v573 = vunpack.c.l.b16 %v171
  %v574 = vunpack.c.l.b16 %v172
  %v575 = vunpack.c.l.b16 %v173
  %v576 = vunpack.c.l.b16 %v174
  %v577 = vunpack.c.l.b16 %v175
  %v578 = vunpack.c.l.b16 %v176
  %v579 = vunpack.c.l.b16 %v177
  %v580 = vunpack.c.l.b16 %v178
  %v581 = vunpack.c.l.b16 %v179
  %v582 = vunpack.c.l.b16 %v180
  %v583 = vunpack.c.l.b16 %v181
  %v584 = vunpack.c.l.b16 %v182
  %v585 = vunpack.c.l.b16 %v183
  %v586 = vunpack.c.l.b16 %v184
  %v587 = vunpack.c.l.b16 %v185
  %v588 = vunpack.c.l.b16 %v186
  %v589 = vunpack.c.l.b16 %v187
  %v590 = vunpack.c.l.b16 %v188
  %v591 = vunpack.c.l.b16 %v189
  %v592 = vunpack.c.l.b16 %v190
  %v593 = vunpack.c.l.b16 %v191
  %v594 = vunpack.c.l.b16 %v192
  %v595 = vunpack.c.l.b16 %v193
  %v596 = vunpack.c.l.b16 %v194
  %v597 = vunpack.c.l.b16 %v195
  %v598 = vunpack.c.l.b16 %v196
  %v599 = vunpack.c.l.b16 %v197
  %v600 = vunpack.c.l.b16 %v198
  %v601 = vunpack.c.l.b16 %v199
  %v602 = vunpack.c.l.b16 %v200
  %v603 = vunpack.c.l.b16 %v201
  %v604 = vunpack.c.l.b16 %v202
  %v605 = vunpack.c.l.b16 %v203
  %v606 = vunpack.c.l.b16 %v204
  %v607 = vunpack.c.l.b16 %v205
  %v608 = vunpack.c.l.b16 %v206
  %v609 = vunpack.c.l.b16 %v207
  %v610 = vunpack.c.l.b16 %v208
  %v611 = vunpack.c.l.b16 %v209
  %v612 = vunpack.c.l.b16 %v210
  %v613 = vunpack.c.l.b16 %v211
  %v614 = vunpack.c.l.b16 %v212
  %v615 = vunpack.c.l.b16 %v213
  %v616 = vunpack.c.l.b16 %v214
  %v617 = vunpack.c.l.b16 %v215
  %v618 = vunpack.c.l.b16 %v216
  %v619 = vunpack.c.l.b16 %v217
  %v620 = vunpack.c.l.b16 %v218
  %v621 = vunpack.c.l.b16 %v219
  %v622 = vunpack.c.l.b16 %v220
  %v623 = vunpack.c.l.b16 %v221
  %v624 = vunpack.c.l.b16 %v222
  %v625 = vunpack.c.l.b16 %v223
  %v626 = vunpack.c.l.b16 %v224
  %v627 = vunpack.c.l.b16 %v225
  %v628 = vunpack.c.l.b16 %v226
  %v629 = vunpack.c.l.b16 %v227
  %v630 = vunpack.c.l.b16 %v228
  %v631 = vpack.c.b16 %v436, %v435
  %v632 = vpack.c.b16 %v438, %v437
  %v633 = vpack.c.b16 %v440, %v439
  %v634 = vpack.c.b16 %v442, %v441
  %v635 = vpack.c.b16 %v444, %v443
  %v636 = vpack.c.b16 %v446, %v445
  %v637 = vpack.c.b16 %v448, %v447
  %v638 = vpack.c.b16 %v450, %v449
  %v639 = vpack.c.b16 %v452, %v451
  %v640 = vpack.c.b16 %v454, %v453
  %v641 = vpack.c.b16 %v456, %v455
  %v642 = vpack.c.b16 %v458, %v457
  %v643 = vpack.c.b16 %v460, %v459
  %v644 = vpack.c.b16 %v462, %v461
  %v645 = vpack.c.b16 %v464, %v463
  %v646 = vpack.c.b16 %v466, %v465
  %v647 = vpack.c.b16 %v468, %v467
  %v648 = vpack.c.b16 %v470, %v469
  %v649 = vpack.c.b16 %v472, %v471
  %v650 = vpack.c.b16 %v474, %v473
  %v651 = vpack.c.b16 %v476, %v475
  %v652 = vpack.c.b16 %v478, %v477
  %v653 = vpack.c.b16 %v480, %v479
  %v654 = vpack.c.b16 %v482, %v481
  %v655 = vpack.c.b16 %v484, %v483
  %v656 = vpack.c.b16 %v486, %v485
  %v657 = vpack.c.b16 %v488, %v487
  %v658 = vpack.c.b16 %v490, %v489
  %v659 = vpack.c.b16 %v492, %v491
  %v660 = vpack.c.b16 %v494, %v493
  %v661 = vpack.c.b16 %v496, %v495
  %v662 = vpack.c.b16 %v498, %v497
  %v663 = vpack.c.b16 %v500, %v499
  %v664 = vpack.c.b16 %v502, %v501
  %v665 = vpack.c.b16 %v504, %v503
  %v666 = vpack.c.b16 %v506, %v505
  %v667 = vpack.c.b16 %v508, %v507
  %v668 = vpack.c.b16 %v510, %v509
  %v669 = vpack.c.b16 %v512, %v511
  %v670 = vpack.c.b16 %v514, %v513
  %v671 = vpack.c.b16 %v516, %v515
  %v672 = vpack.c.b16 %v518, %v517
  %v673 = vpack.c.b16 %v520, %v519
  %v674 = vpack.c.b16 %v522, %v521
  %v675 = vpack.c.b16 %v524, %v523
  %v676 = vpack.c.b16 %v526, %v525
  %v677 = vpack.c.b16 %v528, %v527
  %v678 = vpack.c.b16 %v530, %v529
  %v679 = vpack.c.b16 %v532, %v531
  %v680 = vpack.c.b16 %v534, %v533
  %v681 = vpack.c.b16 %v536, %v535
  %v682 = vpack.c.b16 %v538, %v537
  %v683 = vpack.c.b16 %v540, %v539
  %v684 = vpack.c.b16 %v542, %v541
  %v685 = vpack.c.b16 %v544, %v543
  %v686 = vpack.c.b16 %v546, %v545
  %v687 = vpack.c.b16 %v548, %v547
  %v688 = vpack.c.b16 %v550, %v549
  %v689 = vpack.c.b16 %v552, %v551
  %v690 = vpack.c.b16 %v554, %v553
  %v691 = vpack.c.b16 %v556, %v555
  %v692 = vpack.c.b16 %v558, %v557
  %v693 = vpack.c.b16 %v560, %v559
  %v694 = vpack.c.b16 %v562, %v561
  %v695 = vpack.c.b16 %v564, %v563
  %v696 = vpack.c.b16 %v566, %v565
  %v697 = vpack.c.b16 %v568, %v567
  %v698 = vpack.c.b16 %v570, %v569
  %v699 = vpack.c.b16 %v572, %v571
  %v700 = vpack.c.b16 %v574, %v573
  %v701 = vpack.c.b16 %v576, %v575
  %v702 = vpack.c.b16 %v578, %v577
  %v703 = vpack.c.b16 %v580, %v579
  %v704 = vpack.c.b16 %v582, %v581
  %v705 = vpack.c.b16 %v584, %v583
  %v706 = vpack.c.b16 %v586, %v585
  %v707 = vpack.c.b16 %v588, %v587
  %v708 = vpack.c.b16 %v590, %v589
  %v709 = vpack.c.b16 %v592, %v591
  %v710 = vpack.c.b16 %v594, %v593
  %v711 = vpack.c.b16 %v596, %v595
  %v712 = vpack.c.b16 %v598, %v597
  %v713 = vpack.c.b16 %v600, %v599
  %v714 = vpack.c.b16 %v602, %v601
  %v715 = vpack.c.b16 %v604, %v603
  %v716 = vpack.c.b16 %v606, %v605
  %v717 = vpack.c.b16 %v608, %v607
  %v718 = vpack.c.b16 %v610, %v609
  %v719 = vpack.c.b16 %v612, %v611
  %v720 = vpack.c.b16 %v614, %v613
  %v721 = vpack.c.b16 %v616, %v615
  %v722 = vpack.c.b16 %v618, %v617
  %v723 = vpack.c.b16 %v620, %v619
  %v724 = vpack.c.b16 %v622, %v621
  %v725 = vpack.c.b16 %v624, %v623
  %v726 = vpack.c.b16 %v626, %v625
  %v727 = vpack.c.b16 %v628, %v627
  %v728 = vpack.c.b16 %v630, %v629
  %v739 = vunpack.c.l.b16 %v229
  %v740 = vunpack.c.l.b16 %v230
  %v741 = vunpack.c.l.b16 %v231
  %v742 = vunpack.c.l.b16 %v232
  %v743 = vunpack.c.l.b16 %v233
  %v744 = vunpack.c.l.b16 %v234
  %v745 = vunpack.c.l.b16 %v235
  %v746 = vunpack.c.l.b16 %v236
  %v747 = vunpack.c.l.b16 %v237
  %v748 = vunpack.c.l.b16 %v238
  %v749 = vpack.c.b16 %v740, %v739
  %v750 = vpack.c.b16 %v742, %v741
  %v751 = vpack.c.b16 %v744, %v743
  %v752 = vpack.c.b16 %v746, %v745
  %v753 = vpack.c.b16 %v748, %v747
  %vm758 = vcmask 613376
  %v760 = vsel %vm758, %v631, 0
  %v763 = vsel %vm758, %v632, 0
  %v766 = vsel %vm758, %v633, 0
  %v769 = vsel %vm758, %v634, 0
  %v772 = vsel %vm758, %v635, 0
  %v775 = vsel %vm758, %v636, 0
  %v778 = vsel %vm758, %v637, 0
  %v781 = vsel %vm758, %v638, 0
  %v784 = vsel %vm758, %v639, 0
  %v787 = vsel %vm758, %v640, 0
  %v790 = vsel %vm758, %v641, 0
  %v793 = vsel %vm758, %v642, 0
  %v796 = vsel %vm758, %v643, 0
  %v799 = vsel %vm758, %v644, 0
  %v802 = vsel %vm758, %v645, 0
  %v805 = vsel %vm758, %v646, 0
  %v808 = vsel %vm758, %v647, 0
  %v811 = vsel %vm758, %v648, 0
  %v814 = vsel %vm758, %v649, 0
  %v817 = vsel %vm758, %v650, 0
  %v820 = vsel %vm758, %v651, 0
  %v823 = vsel %vm758, %v652, 0
  %v826 = vsel %vm758, %v653, 0
  %v829 = vsel %vm758, %v654, 0
  %v832 = vsel %vm758, %v655, 0
  %v835 = vsel %vm758, %v656, 0
  %v838 = vsel %vm758, %v657, 0
  %v841 = vsel %vm758, %v658, 0
  %v844 = vsel %vm758, %v659, 0
  %v847 = vsel %vm758, %v660, 0
  %v850 = vsel %vm758, %v661, 0
  %v853 = vsel %vm758, %v662, 0
  %v856 = vsel %vm758, %v663, 0
  %v859 = vsel %vm758, %v664, 0
  %v862 = vsel %vm758, %v665, 0
  %v865 = vsel %vm758, %v666, 0
  %v868 = vsel %vm758, %v667, 0
  %v871 = vsel %vm758, %v668, 0
  %v874 = vsel %vm758, %v669, 0
  %v877 = vsel %vm758, %v670, 0
  %v880 = vsel %vm758, %v671, 0
  %v883 = vsel %vm758, %v672, 0
  %v886 = vsel %vm758, %v673, 0
  %v889 = vsel %vm758, %v674, 0
  %v892 = vsel %vm758, %v675, 0
  %v895 = vsel %vm758, %v676, 0
  %v898 = vsel %vm758, %v677, 0
  %v901 = vsel %vm758, %v678, 0
  %v904 = vsel %vm758, %v679, 0
  %v907 = vsel %vm758, %v680, 0
  %v910 = vsel %vm758, %v681, 0
  %v913 = vsel %vm758, %v682, 0
  %v916 = vsel %vm758, %v683, 0
  %v919 = vsel %vm758, %v684, 0
  %v922 = vsel %vm758, %v685, 0
  %v925 = vsel %vm758, %v686, 0
  %v928 = vsel %vm758, %v687, 0
  %v931 = vsel %vm758, %v688, 0
  %v934 = vsel %vm758, %v689, 0
  %v937 = vsel %vm758, %v690, 0
  %v940 = vsel %vm758, %v691, 0
  %v943 = vsel %vm758, %v692, 0
  %v946 = vsel %vm758, %v693, 0
  %v949 = vsel %vm758, %v694, 0
  %v952 = vsel %vm758, %v695, 0
  %v955 = vsel %vm758, %v696, 0
  %v958 = vsel %vm758, %v697, 0
  %v961 = vsel %vm758, %v698, 0
  %v964 = vsel %vm758, %v699, 0
  %v967 = vsel %vm758, %v700, 0
  %v970 = vsel %vm758, %v701, 0
  %v973 = vsel %vm758, %v702, 0
  %v976 = vsel %vm758, %v703, 0
  %v979 = vsel %vm758, %v704, 0
  %v982 = vsel %vm758, %v705, 0
  %v985 = vsel %vm758, %v706, 0
  %v988 = vsel %vm758, %v707, 0
  %v991 = vsel %vm758, %v708, 0
  %v994 = vsel %vm758, %v709, 0
  %v997 = vsel %vm758, %v710, 0
  %v1000 = vsel %vm758, %v711, 0
  %v1003 = vsel %vm758, %v712, 0
  %v1006 = vsel %vm758, %v713, 0
  %v1009 = vsel %vm758, %v714, 0
  %v1012 = vsel %vm758, %v715, 0
  %v1015 = vsel %vm758, %v716, 0
  %v1018 = vsel %vm758, %v717, 0
  %v1021 = vsel %vm758, %v718, 0
  %v1024 = vsel %vm758, %v719, 0
  %v1027 = vsel %vm758, %v720, 0
  %v1030 = vsel %vm758, %v721, 0
  %v1033 = vsel %vm758, %v722, 0
  %v1036 = vsel %vm758, %v723, 0
  %v1039 = vsel %vm758, %v724, 0
  %v1042 = vsel %vm758, %v725, 0
  %v1045 = vsel %vm758, %v726, 0
  %v1048 = vsel %vm758, %v727, 0
  %v1051 = vsel %vm758, %v728, 0
  %vm1053 = vcmask 1044480
  %vm1054 = vcmask 1045504
  %v1055 = vsel %vm1053, 4294967295, 65535
  %v1056 = vsel %vm1054, %v1055, 0
  %v1058 = vand.u32 %v753, %v1056
  %1060 = vmatprep.subr.bf16.mxu0 0
  %1061 = vmatpush1.bf16.msra.mxu0 0
  %1062 = vmatprep.subr.bf16.mxu0 0
  %1063 = vmatpush1.bf16.msra.mxu0 0
  %1064 = vmatprep.subr.bf16.mxu0 0
  %1065 = vmatpush1.bf16.msra.mxu0 0
  %1066 = vmatprep.subr.bf16.mxu0 0
  %1067 = vmatpush1.bf16.msra.mxu0 %v1058
  %1068 = vmatprep.subr.bf16.mxu0 0
  %1069 = vmatpush1.bf16.msra.mxu0 %v752
  %1070 = vmatprep.subr.bf16.mxu0 0
  %1071 = vmatpush1.bf16.msra.mxu0 %v751
  %1072 = vmatprep.subr.bf16.mxu0 0
  %1073 = vmatpush1.bf16.msra.mxu0 %v750
  %1074 = vmatprep.subr.bf16.mxu0 0
  %1075 = vmatpush1.bf16.msra.mxu0 %v749
  %1076 = vmatprep.subr.bf16.mxu0 0
  %1077 = vmatpush2.bf16.msra.mxu0 0
  %1078 = vmatprep.subr.bf16.mxu0 0
  %1079 = vmatpush2.bf16.msra.mxu0 0
  %1080 = vmatprep.subr.bf16.mxu0 0
  %1081 = vmatpush2.bf16.msra.mxu0 0
  %1082 = vmatprep.subr.bf16.mxu0 0
  %1083 = vmatpush2.bf16.msra.mxu0 0
  %1084 = vmatprep.subr.bf16.mxu0 0
  %1085 = vmatpush2.bf16.msra.mxu0 0
  %1086 = vmatprep.subr.bf16.mxu0 0
  %1087 = vmatpush2.bf16.msra.mxu0 0
  %1088 = vmatprep.subr.bf16.mxu0 0
  %1089 = vmatpush2.bf16.msra.mxu0 0
  %1090 = vmatprep.subr.bf16.mxu0 0
  %1091 = vmatpush2.bf16.msra.mxu0 0
  %1092 = vmatprep.mubr.bf16.mxu0 0
  %1093 = vmatmul.mubr.bf16.gmra.mxu0 %v760
  %v1094 = vpop.f32.mrf.mxu0
  %v1095 = vadd.f32 0.0, %v1094
  %v1096 = vpop.f32.mrf.mxu0
  %v1097 = vpop.f32.mrf.mxu0
  %v1098 = vadd.f32 0.0, %v1097
  %v1099 = vpop.f32.mrf.mxu0
  %1100 = vmatprep.mubr.bf16.mxu0 0
  %1101 = vmatmul.mubr.bf16.gmra.mxu0 %v763
  %v1102 = vpop.f32.mrf.mxu0
  %v1103 = vadd.f32 0.0, %v1102
  %v1104 = vpop.f32.mrf.mxu0
  %v1105 = vpop.f32.mrf.mxu0
  %v1106 = vadd.f32 0.0, %v1105
  %v1107 = vpop.f32.mrf.mxu0
  %1108 = vmatprep.mubr.bf16.mxu0 0
  %1109 = vmatmul.mubr.bf16.gmra.mxu0 %v766
  %v1110 = vpop.f32.mrf.mxu0
  %v1111 = vadd.f32 0.0, %v1110
  %v1112 = vpop.f32.mrf.mxu0
  %v1113 = vpop.f32.mrf.mxu0
  %v1114 = vadd.f32 0.0, %v1113
  %v1115 = vpop.f32.mrf.mxu0
  %1116 = vmatprep.mubr.bf16.mxu0 0
  %1117 = vmatmul.mubr.bf16.gmra.mxu0 %v769
  %v1118 = vpop.f32.mrf.mxu0
  %v1119 = vadd.f32 0.0, %v1118
  %v1120 = vpop.f32.mrf.mxu0
  %v1121 = vpop.f32.mrf.mxu0
  %v1122 = vadd.f32 0.0, %v1121
  %v1123 = vpop.f32.mrf.mxu0
  %1124 = vmatprep.mubr.bf16.mxu0 0
  %1125 = vmatmul.mubr.bf16.gmra.mxu0 %v772
  %v1126 = vpop.f32.mrf.mxu0
  %v1127 = vadd.f32 0.0, %v1126
  %v1128 = vpop.f32.mrf.mxu0
  %v1129 = vpop.f32.mrf.mxu0
  %v1130 = vadd.f32 0.0, %v1129
  %v1131 = vpop.f32.mrf.mxu0
  %1132 = vmatprep.mubr.bf16.mxu0 0
  %1133 = vmatmul.mubr.bf16.gmra.mxu0 %v775
  %v1134 = vpop.f32.mrf.mxu0
  %v1135 = vadd.f32 0.0, %v1134
  %v1136 = vpop.f32.mrf.mxu0
  %v1137 = vpop.f32.mrf.mxu0
  %v1138 = vadd.f32 0.0, %v1137
  %v1139 = vpop.f32.mrf.mxu0
  %1140 = vmatprep.mubr.bf16.mxu0 0
  %1141 = vmatmul.mubr.bf16.gmra.mxu0 %v778
  %v1142 = vpop.f32.mrf.mxu0
  %v1143 = vadd.f32 0.0, %v1142
  %v1144 = vpop.f32.mrf.mxu0
  %v1145 = vpop.f32.mrf.mxu0
  %v1146 = vadd.f32 0.0, %v1145
  %v1147 = vpop.f32.mrf.mxu0
  %1148 = vmatprep.mubr.bf16.mxu0 0
  %1149 = vmatmul.mubr.bf16.gmra.mxu0 %v781
  %v1150 = vpop.f32.mrf.mxu0
  %v1151 = vadd.f32 0.0, %v1150
  %v1152 = vpop.f32.mrf.mxu0
  %v1153 = vpop.f32.mrf.mxu0
  %v1154 = vadd.f32 0.0, %v1153
  %v1155 = vpop.f32.mrf.mxu0
  %1156 = vmatprep.mubr.bf16.mxu0 0
  %1157 = vmatmul.mubr.bf16.gmra.mxu0 %v784
  %v1158 = vpop.f32.mrf.mxu0
  %v1159 = vadd.f32 0.0, %v1158
  %v1160 = vpop.f32.mrf.mxu0
  %v1161 = vpop.f32.mrf.mxu0
  %v1162 = vadd.f32 0.0, %v1161
  %v1163 = vpop.f32.mrf.mxu0
  %1164 = vmatprep.mubr.bf16.mxu0 0
  %1165 = vmatmul.mubr.bf16.gmra.mxu0 %v787
  %v1166 = vpop.f32.mrf.mxu0
  %v1167 = vadd.f32 0.0, %v1166
  %v1168 = vpop.f32.mrf.mxu0
  %v1169 = vpop.f32.mrf.mxu0
  %v1170 = vadd.f32 0.0, %v1169
  %v1171 = vpop.f32.mrf.mxu0
  %1172 = vmatprep.mubr.bf16.mxu0 0
  %1173 = vmatmul.mubr.bf16.gmra.mxu0 %v790
  %v1174 = vpop.f32.mrf.mxu0
  %v1175 = vadd.f32 0.0, %v1174
  %v1176 = vpop.f32.mrf.mxu0
  %v1177 = vpop.f32.mrf.mxu0
  %v1178 = vadd.f32 0.0, %v1177
  %v1179 = vpop.f32.mrf.mxu0
  %1180 = vmatprep.mubr.bf16.mxu0 0
  %1181 = vmatmul.mubr.bf16.gmra.mxu0 %v793
  %v1182 = vpop.f32.mrf.mxu0
  %v1183 = vadd.f32 0.0, %v1182
  %v1184 = vpop.f32.mrf.mxu0
  %v1185 = vpop.f32.mrf.mxu0
  %v1186 = vadd.f32 0.0, %v1185
  %v1187 = vpop.f32.mrf.mxu0
  %1188 = vmatprep.mubr.bf16.mxu0 0
  %1189 = vmatmul.mubr.bf16.gmra.mxu0 %v796
  %v1190 = vpop.f32.mrf.mxu0
  %v1191 = vadd.f32 0.0, %v1190
  %v1192 = vpop.f32.mrf.mxu0
  %v1193 = vpop.f32.mrf.mxu0
  %v1194 = vadd.f32 0.0, %v1193
  %v1195 = vpop.f32.mrf.mxu0
  %1196 = vmatprep.mubr.bf16.mxu0 0
  %1197 = vmatmul.mubr.bf16.gmra.mxu0 %v799
  %v1198 = vpop.f32.mrf.mxu0
  %v1199 = vadd.f32 0.0, %v1198
  %v1200 = vpop.f32.mrf.mxu0
  %v1201 = vpop.f32.mrf.mxu0
  %v1202 = vadd.f32 0.0, %v1201
  %v1203 = vpop.f32.mrf.mxu0
  %1204 = vmatprep.mubr.bf16.mxu0 0
  %1205 = vmatmul.mubr.bf16.gmra.mxu0 %v802
  %v1206 = vpop.f32.mrf.mxu0
  %v1207 = vadd.f32 0.0, %v1206
  %v1208 = vpop.f32.mrf.mxu0
  %v1209 = vpop.f32.mrf.mxu0
  %v1210 = vadd.f32 0.0, %v1209
  %v1211 = vpop.f32.mrf.mxu0
  %1212 = vmatprep.mubr.bf16.mxu0 0
  %1213 = vmatmul.mubr.bf16.gmra.mxu0 %v805
  %v1214 = vpop.f32.mrf.mxu0
  %v1215 = vadd.f32 0.0, %v1214
  %v1216 = vpop.f32.mrf.mxu0
  %v1217 = vpop.f32.mrf.mxu0
  %v1218 = vadd.f32 0.0, %v1217
  %v1219 = vpop.f32.mrf.mxu0
  %1220 = vmatprep.mubr.bf16.mxu0 0
  %1221 = vmatmul.mubr.bf16.gmra.mxu0 %v808
  %v1222 = vpop.f32.mrf.mxu0
  %v1223 = vadd.f32 0.0, %v1222
  %v1224 = vpop.f32.mrf.mxu0
  %v1225 = vpop.f32.mrf.mxu0
  %v1226 = vadd.f32 0.0, %v1225
  %v1227 = vpop.f32.mrf.mxu0
  %1228 = vmatprep.mubr.bf16.mxu0 0
  %1229 = vmatmul.mubr.bf16.gmra.mxu0 %v811
  %v1230 = vpop.f32.mrf.mxu0
  %v1231 = vadd.f32 0.0, %v1230
  %v1232 = vpop.f32.mrf.mxu0
  %v1233 = vpop.f32.mrf.mxu0
  %v1234 = vadd.f32 0.0, %v1233
  %v1235 = vpop.f32.mrf.mxu0
  %1236 = vmatprep.mubr.bf16.mxu0 0
  %1237 = vmatmul.mubr.bf16.gmra.mxu0 %v814
  %v1238 = vpop.f32.mrf.mxu0
  %v1239 = vadd.f32 0.0, %v1238
  %v1240 = vpop.f32.mrf.mxu0
  %v1241 = vpop.f32.mrf.mxu0
  %v1242 = vadd.f32 0.0, %v1241
  %v1243 = vpop.f32.mrf.mxu0
  %1244 = vmatprep.mubr.bf16.mxu0 0
  %1245 = vmatmul.mubr.bf16.gmra.mxu0 %v817
  %v1246 = vpop.f32.mrf.mxu0
  %v1247 = vadd.f32 0.0, %v1246
  %v1248 = vpop.f32.mrf.mxu0
  %v1249 = vpop.f32.mrf.mxu0
  %v1250 = vadd.f32 0.0, %v1249
  %v1251 = vpop.f32.mrf.mxu0
  %1252 = vmatprep.mubr.bf16.mxu0 0
  %1253 = vmatmul.mubr.bf16.gmra.mxu0 %v820
  %v1254 = vpop.f32.mrf.mxu0
  %v1255 = vadd.f32 0.0, %v1254
  %v1256 = vpop.f32.mrf.mxu0
  %v1257 = vpop.f32.mrf.mxu0
  %v1258 = vadd.f32 0.0, %v1257
  %v1259 = vpop.f32.mrf.mxu0
  %1260 = vmatprep.mubr.bf16.mxu0 0
  %1261 = vmatmul.mubr.bf16.gmra.mxu0 %v823
  %v1262 = vpop.f32.mrf.mxu0
  %v1263 = vadd.f32 0.0, %v1262
  %v1264 = vpop.f32.mrf.mxu0
  %v1265 = vpop.f32.mrf.mxu0
  %v1266 = vadd.f32 0.0, %v1265
  %v1267 = vpop.f32.mrf.mxu0
  %1268 = vmatprep.mubr.bf16.mxu0 0
  %1269 = vmatmul.mubr.bf16.gmra.mxu0 %v826
  %v1270 = vpop.f32.mrf.mxu0
  %v1271 = vadd.f32 0.0, %v1270
  %v1272 = vpop.f32.mrf.mxu0
  %v1273 = vpop.f32.mrf.mxu0
  %v1274 = vadd.f32 0.0, %v1273
  %v1275 = vpop.f32.mrf.mxu0
  %1276 = vmatprep.mubr.bf16.mxu0 0
  %1277 = vmatmul.mubr.bf16.gmra.mxu0 %v829
  %v1278 = vpop.f32.mrf.mxu0
  %v1279 = vadd.f32 0.0, %v1278
  %v1280 = vpop.f32.mrf.mxu0
  %v1281 = vpop.f32.mrf.mxu0
  %v1282 = vadd.f32 0.0, %v1281
  %v1283 = vpop.f32.mrf.mxu0
  %1284 = vmatprep.mubr.bf16.mxu0 0
  %1285 = vmatmul.mubr.bf16.gmra.mxu0 %v832
  %v1286 = vpop.f32.mrf.mxu0
  %v1287 = vadd.f32 0.0, %v1286
  %v1288 = vpop.f32.mrf.mxu0
  %v1289 = vpop.f32.mrf.mxu0
  %v1290 = vadd.f32 0.0, %v1289
  %v1291 = vpop.f32.mrf.mxu0
  %1292 = vmatprep.mubr.bf16.mxu0 0
  %1293 = vmatmul.mubr.bf16.gmra.mxu0 %v835
  %v1294 = vpop.f32.mrf.mxu0
  %v1295 = vadd.f32 0.0, %v1294
  %v1296 = vpop.f32.mrf.mxu0
  %v1297 = vpop.f32.mrf.mxu0
  %v1298 = vadd.f32 0.0, %v1297
  %v1299 = vpop.f32.mrf.mxu0
  %1300 = vmatprep.mubr.bf16.mxu0 0
  %1301 = vmatmul.mubr.bf16.gmra.mxu0 %v838
  %v1302 = vpop.f32.mrf.mxu0
  %v1303 = vadd.f32 0.0, %v1302
  %v1304 = vpop.f32.mrf.mxu0
  %v1305 = vpop.f32.mrf.mxu0
  %v1306 = vadd.f32 0.0, %v1305
  %v1307 = vpop.f32.mrf.mxu0
  %1308 = vmatprep.mubr.bf16.mxu0 0
  %1309 = vmatmul.mubr.bf16.gmra.mxu0 %v841
  %v1310 = vpop.f32.mrf.mxu0
  %v1311 = vadd.f32 0.0, %v1310
  %v1312 = vpop.f32.mrf.mxu0
  %v1313 = vpop.f32.mrf.mxu0
  %v1314 = vadd.f32 0.0, %v1313
  %v1315 = vpop.f32.mrf.mxu0
  %1316 = vmatprep.mubr.bf16.mxu0 0
  %1317 = vmatmul.mubr.bf16.gmra.mxu0 %v844
  %v1318 = vpop.f32.mrf.mxu0
  %v1319 = vadd.f32 0.0, %v1318
  %v1320 = vpop.f32.mrf.mxu0
  %v1321 = vpop.f32.mrf.mxu0
  %v1322 = vadd.f32 0.0, %v1321
  %v1323 = vpop.f32.mrf.mxu0
  %1324 = vmatprep.mubr.bf16.mxu0 0
  %1325 = vmatmul.mubr.bf16.gmra.mxu0 %v847
  %v1326 = vpop.f32.mrf.mxu0
  %v1327 = vadd.f32 0.0, %v1326
  %v1328 = vpop.f32.mrf.mxu0
  %v1329 = vpop.f32.mrf.mxu0
  %v1330 = vadd.f32 0.0, %v1329
  %v1331 = vpop.f32.mrf.mxu0
  %1332 = vmatprep.mubr.bf16.mxu0 0
  %1333 = vmatmul.mubr.bf16.gmra.mxu0 %v850
  %v1334 = vpop.f32.mrf.mxu0
  %v1335 = vadd.f32 0.0, %v1334
  %v1336 = vpop.f32.mrf.mxu0
  %v1337 = vpop.f32.mrf.mxu0
  %v1338 = vadd.f32 0.0, %v1337
  %v1339 = vpop.f32.mrf.mxu0
  %1340 = vmatprep.mubr.bf16.mxu0 0
  %1341 = vmatmul.mubr.bf16.gmra.mxu0 %v853
  %v1342 = vpop.f32.mrf.mxu0
  %v1343 = vadd.f32 0.0, %v1342
  %v1344 = vpop.f32.mrf.mxu0
  %v1345 = vpop.f32.mrf.mxu0
  %v1346 = vadd.f32 0.0, %v1345
  %v1347 = vpop.f32.mrf.mxu0
  %1348 = vmatprep.mubr.bf16.mxu0 0
  %1349 = vmatmul.mubr.bf16.gmra.mxu0 %v856
  %v1350 = vpop.f32.mrf.mxu0
  %v1351 = vadd.f32 0.0, %v1350
  %v1352 = vpop.f32.mrf.mxu0
  %v1353 = vpop.f32.mrf.mxu0
  %v1354 = vadd.f32 0.0, %v1353
  %v1355 = vpop.f32.mrf.mxu0
  %1356 = vmatprep.mubr.bf16.mxu0 0
  %1357 = vmatmul.mubr.bf16.gmra.mxu0 %v859
  %v1358 = vpop.f32.mrf.mxu0
  %v1359 = vadd.f32 0.0, %v1358
  %v1360 = vpop.f32.mrf.mxu0
  %v1361 = vpop.f32.mrf.mxu0
  %v1362 = vadd.f32 0.0, %v1361
  %v1363 = vpop.f32.mrf.mxu0
  %1364 = vmatprep.mubr.bf16.mxu0 0
  %1365 = vmatmul.mubr.bf16.gmra.mxu0 %v862
  %v1366 = vpop.f32.mrf.mxu0
  %v1367 = vadd.f32 0.0, %v1366
  %v1368 = vpop.f32.mrf.mxu0
  %v1369 = vpop.f32.mrf.mxu0
  %v1370 = vadd.f32 0.0, %v1369
  %v1371 = vpop.f32.mrf.mxu0
  %1372 = vmatprep.mubr.bf16.mxu0 0
  %1373 = vmatmul.mubr.bf16.gmra.mxu0 %v865
  %v1374 = vpop.f32.mrf.mxu0
  %v1375 = vadd.f32 0.0, %v1374
  %v1376 = vpop.f32.mrf.mxu0
  %v1377 = vpop.f32.mrf.mxu0
  %v1378 = vadd.f32 0.0, %v1377
  %v1379 = vpop.f32.mrf.mxu0
  %1380 = vmatprep.mubr.bf16.mxu0 0
  %1381 = vmatmul.mubr.bf16.gmra.mxu0 %v868
  %v1382 = vpop.f32.mrf.mxu0
  %v1383 = vadd.f32 0.0, %v1382
  %v1384 = vpop.f32.mrf.mxu0
  %v1385 = vpop.f32.mrf.mxu0
  %v1386 = vadd.f32 0.0, %v1385
  %v1387 = vpop.f32.mrf.mxu0
  %1388 = vmatprep.mubr.bf16.mxu0 0
  %1389 = vmatmul.mubr.bf16.gmra.mxu0 %v871
  %v1390 = vpop.f32.mrf.mxu0
  %v1391 = vadd.f32 0.0, %v1390
  %v1392 = vpop.f32.mrf.mxu0
  %v1393 = vpop.f32.mrf.mxu0
  %v1394 = vadd.f32 0.0, %v1393
  %v1395 = vpop.f32.mrf.mxu0
  %1396 = vmatprep.mubr.bf16.mxu0 0
  %1397 = vmatmul.mubr.bf16.gmra.mxu0 %v874
  %v1398 = vpop.f32.mrf.mxu0
  %v1399 = vadd.f32 0.0, %v1398
  %v1400 = vpop.f32.mrf.mxu0
  %v1401 = vpop.f32.mrf.mxu0
  %v1402 = vadd.f32 0.0, %v1401
  %v1403 = vpop.f32.mrf.mxu0
  %1404 = vmatprep.mubr.bf16.mxu0 0
  %1405 = vmatmul.mubr.bf16.gmra.mxu0 %v877
  %v1406 = vpop.f32.mrf.mxu0
  %v1407 = vadd.f32 0.0, %v1406
  %v1408 = vpop.f32.mrf.mxu0
  %v1409 = vpop.f32.mrf.mxu0
  %v1410 = vadd.f32 0.0, %v1409
  %v1411 = vpop.f32.mrf.mxu0
  %1412 = vmatprep.mubr.bf16.mxu0 0
  %1413 = vmatmul.mubr.bf16.gmra.mxu0 %v880
  %v1414 = vpop.f32.mrf.mxu0
  %v1415 = vadd.f32 0.0, %v1414
  %v1416 = vpop.f32.mrf.mxu0
  %v1417 = vpop.f32.mrf.mxu0
  %v1418 = vadd.f32 0.0, %v1417
  %v1419 = vpop.f32.mrf.mxu0
  %1420 = vmatprep.mubr.bf16.mxu0 0
  %1421 = vmatmul.mubr.bf16.gmra.mxu0 %v883
  %v1422 = vpop.f32.mrf.mxu0
  %v1423 = vadd.f32 0.0, %v1422
  %v1424 = vpop.f32.mrf.mxu0
  %v1425 = vpop.f32.mrf.mxu0
  %v1426 = vadd.f32 0.0, %v1425
  %v1427 = vpop.f32.mrf.mxu0
  %1428 = vmatprep.mubr.bf16.mxu0 0
  %1429 = vmatmul.mubr.bf16.gmra.mxu0 %v886
  %v1430 = vpop.f32.mrf.mxu0
  %v1431 = vadd.f32 0.0, %v1430
  %v1432 = vpop.f32.mrf.mxu0
  %v1433 = vpop.f32.mrf.mxu0
  %v1434 = vadd.f32 0.0, %v1433
  %v1435 = vpop.f32.mrf.mxu0
  %1436 = vmatprep.mubr.bf16.mxu0 0
  %1437 = vmatmul.mubr.bf16.gmra.mxu0 %v889
  %v1438 = vpop.f32.mrf.mxu0
  %v1439 = vadd.f32 0.0, %v1438
  %v1440 = vpop.f32.mrf.mxu0
  %v1441 = vpop.f32.mrf.mxu0
  %v1442 = vadd.f32 0.0, %v1441
  %v1443 = vpop.f32.mrf.mxu0
  %1444 = vmatprep.mubr.bf16.mxu0 0
  %1445 = vmatmul.mubr.bf16.gmra.mxu0 %v892
  %v1446 = vpop.f32.mrf.mxu0
  %v1447 = vadd.f32 0.0, %v1446
  %v1448 = vpop.f32.mrf.mxu0
  %v1449 = vpop.f32.mrf.mxu0
  %v1450 = vadd.f32 0.0, %v1449
  %v1451 = vpop.f32.mrf.mxu0
  %1452 = vmatprep.mubr.bf16.mxu0 0
  %1453 = vmatmul.mubr.bf16.gmra.mxu0 %v895
  %v1454 = vpop.f32.mrf.mxu0
  %v1455 = vadd.f32 0.0, %v1454
  %v1456 = vpop.f32.mrf.mxu0
  %v1457 = vpop.f32.mrf.mxu0
  %v1458 = vadd.f32 0.0, %v1457
  %v1459 = vpop.f32.mrf.mxu0
  %1460 = vmatprep.mubr.bf16.mxu0 0
  %1461 = vmatmul.mubr.bf16.gmra.mxu0 %v898
  %v1462 = vpop.f32.mrf.mxu0
  %v1463 = vadd.f32 0.0, %v1462
  %v1464 = vpop.f32.mrf.mxu0
  %v1465 = vpop.f32.mrf.mxu0
  %v1466 = vadd.f32 0.0, %v1465
  %v1467 = vpop.f32.mrf.mxu0
  %1468 = vmatprep.mubr.bf16.mxu0 0
  %1469 = vmatmul.mubr.bf16.gmra.mxu0 %v901
  %v1470 = vpop.f32.mrf.mxu0
  %v1471 = vadd.f32 0.0, %v1470
  %v1472 = vpop.f32.mrf.mxu0
  %v1473 = vpop.f32.mrf.mxu0
  %v1474 = vadd.f32 0.0, %v1473
  %v1475 = vpop.f32.mrf.mxu0
  %1476 = vmatprep.mubr.bf16.mxu0 0
  %1477 = vmatmul.mubr.bf16.gmra.mxu0 %v904
  %v1478 = vpop.f32.mrf.mxu0
  %v1479 = vadd.f32 0.0, %v1478
  %v1480 = vpop.f32.mrf.mxu0
  %v1481 = vpop.f32.mrf.mxu0
  %v1482 = vadd.f32 0.0, %v1481
  %v1483 = vpop.f32.mrf.mxu0
  %1484 = vmatprep.mubr.bf16.mxu0 0
  %1485 = vmatmul.mubr.bf16.gmra.mxu0 %v907
  %v1486 = vpop.f32.mrf.mxu0
  %v1487 = vadd.f32 0.0, %v1486
  %v1488 = vpop.f32.mrf.mxu0
  %v1489 = vpop.f32.mrf.mxu0
  %v1490 = vadd.f32 0.0, %v1489
  %v1491 = vpop.f32.mrf.mxu0
  %1492 = vmatprep.mubr.bf16.mxu0 0
  %1493 = vmatmul.mubr.bf16.gmra.mxu0 %v910
  %v1494 = vpop.f32.mrf.mxu0
  %v1495 = vadd.f32 0.0, %v1494
  %v1496 = vpop.f32.mrf.mxu0
  %v1497 = vpop.f32.mrf.mxu0
  %v1498 = vadd.f32 0.0, %v1497
  %v1499 = vpop.f32.mrf.mxu0
  %1500 = vmatprep.mubr.bf16.mxu0 0
  %1501 = vmatmul.mubr.bf16.gmra.mxu0 %v913
  %v1502 = vpop.f32.mrf.mxu0
  %v1503 = vadd.f32 0.0, %v1502
  %v1504 = vpop.f32.mrf.mxu0
  %v1505 = vpop.f32.mrf.mxu0
  %v1506 = vadd.f32 0.0, %v1505
  %v1507 = vpop.f32.mrf.mxu0
  %1508 = vmatprep.mubr.bf16.mxu0 0
  %1509 = vmatmul.mubr.bf16.gmra.mxu0 %v916
  %v1510 = vpop.f32.mrf.mxu0
  %v1511 = vadd.f32 0.0, %v1510
  %v1512 = vpop.f32.mrf.mxu0
  %v1513 = vpop.f32.mrf.mxu0
  %v1514 = vadd.f32 0.0, %v1513
  %v1515 = vpop.f32.mrf.mxu0
  %1516 = vmatprep.mubr.bf16.mxu0 0
  %1517 = vmatmul.mubr.bf16.gmra.mxu0 %v919
  %v1518 = vpop.f32.mrf.mxu0
  %v1519 = vadd.f32 0.0, %v1518
  %v1520 = vpop.f32.mrf.mxu0
  %v1521 = vpop.f32.mrf.mxu0
  %v1522 = vadd.f32 0.0, %v1521
  %v1523 = vpop.f32.mrf.mxu0
  %1524 = vmatprep.mubr.bf16.mxu0 0
  %1525 = vmatmul.mubr.bf16.gmra.mxu0 %v922
  %v1526 = vpop.f32.mrf.mxu0
  %v1527 = vadd.f32 0.0, %v1526
  %v1528 = vpop.f32.mrf.mxu0
  %v1529 = vpop.f32.mrf.mxu0
  %v1530 = vadd.f32 0.0, %v1529
  %v1531 = vpop.f32.mrf.mxu0
  %1532 = vmatprep.mubr.bf16.mxu0 0
  %1533 = vmatmul.mubr.bf16.gmra.mxu0 %v925
  %v1534 = vpop.f32.mrf.mxu0
  %v1535 = vadd.f32 0.0, %v1534
  %v1536 = vpop.f32.mrf.mxu0
  %v1537 = vpop.f32.mrf.mxu0
  %v1538 = vadd.f32 0.0, %v1537
  %v1539 = vpop.f32.mrf.mxu0
  %1540 = vmatprep.mubr.bf16.mxu0 0
  %1541 = vmatmul.mubr.bf16.gmra.mxu0 %v928
  %v1542 = vpop.f32.mrf.mxu0
  %v1543 = vadd.f32 0.0, %v1542
  %v1544 = vpop.f32.mrf.mxu0
  %v1545 = vpop.f32.mrf.mxu0
  %v1546 = vadd.f32 0.0, %v1545
  %v1547 = vpop.f32.mrf.mxu0
  %1548 = vmatprep.mubr.bf16.mxu0 0
  %1549 = vmatmul.mubr.bf16.gmra.mxu0 %v931
  %v1550 = vpop.f32.mrf.mxu0
  %v1551 = vadd.f32 0.0, %v1550
  %v1552 = vpop.f32.mrf.mxu0
  %v1553 = vpop.f32.mrf.mxu0
  %v1554 = vadd.f32 0.0, %v1553
  %v1555 = vpop.f32.mrf.mxu0
  %1556 = vmatprep.mubr.bf16.mxu0 0
  %1557 = vmatmul.mubr.bf16.gmra.mxu0 %v934
  %v1558 = vpop.f32.mrf.mxu0
  %v1559 = vadd.f32 0.0, %v1558
  %v1560 = vpop.f32.mrf.mxu0
  %v1561 = vpop.f32.mrf.mxu0
  %v1562 = vadd.f32 0.0, %v1561
  %v1563 = vpop.f32.mrf.mxu0
  %1564 = vmatprep.mubr.bf16.mxu0 0
  %1565 = vmatmul.mubr.bf16.gmra.mxu0 %v937
  %v1566 = vpop.f32.mrf.mxu0
  %v1567 = vadd.f32 0.0, %v1566
  %v1568 = vpop.f32.mrf.mxu0
  %v1569 = vpop.f32.mrf.mxu0
  %v1570 = vadd.f32 0.0, %v1569
  %v1571 = vpop.f32.mrf.mxu0
  %1572 = vmatprep.mubr.bf16.mxu0 0
  %1573 = vmatmul.mubr.bf16.gmra.mxu0 %v940
  %v1574 = vpop.f32.mrf.mxu0
  %v1575 = vadd.f32 0.0, %v1574
  %v1576 = vpop.f32.mrf.mxu0
  %v1577 = vpop.f32.mrf.mxu0
  %v1578 = vadd.f32 0.0, %v1577
  %v1579 = vpop.f32.mrf.mxu0
  %1580 = vmatprep.mubr.bf16.mxu0 0
  %1581 = vmatmul.mubr.bf16.gmra.mxu0 %v943
  %v1582 = vpop.f32.mrf.mxu0
  %v1583 = vadd.f32 0.0, %v1582
  %v1584 = vpop.f32.mrf.mxu0
  %v1585 = vpop.f32.mrf.mxu0
  %v1586 = vadd.f32 0.0, %v1585
  %v1587 = vpop.f32.mrf.mxu0
  %1588 = vmatprep.mubr.bf16.mxu0 0
  %1589 = vmatmul.mubr.bf16.gmra.mxu0 %v946
  %v1590 = vpop.f32.mrf.mxu0
  %v1591 = vadd.f32 0.0, %v1590
  %v1592 = vpop.f32.mrf.mxu0
  %v1593 = vpop.f32.mrf.mxu0
  %v1594 = vadd.f32 0.0, %v1593
  %v1595 = vpop.f32.mrf.mxu0
  %1596 = vmatprep.mubr.bf16.mxu0 0
  %1597 = vmatmul.mubr.bf16.gmra.mxu0 %v949
  %v1598 = vpop.f32.mrf.mxu0
  %v1599 = vadd.f32 0.0, %v1598
  %v1600 = vpop.f32.mrf.mxu0
  %v1601 = vpop.f32.mrf.mxu0
  %v1602 = vadd.f32 0.0, %v1601
  %v1603 = vpop.f32.mrf.mxu0
  %1604 = vmatprep.mubr.bf16.mxu0 0
  %1605 = vmatmul.mubr.bf16.gmra.mxu0 %v952
  %v1606 = vpop.f32.mrf.mxu0
  %v1607 = vadd.f32 0.0, %v1606
  %v1608 = vpop.f32.mrf.mxu0
  %v1609 = vpop.f32.mrf.mxu0
  %v1610 = vadd.f32 0.0, %v1609
  %v1611 = vpop.f32.mrf.mxu0
  %1612 = vmatprep.mubr.bf16.mxu0 0
  %1613 = vmatmul.mubr.bf16.gmra.mxu0 %v955
  %v1614 = vpop.f32.mrf.mxu0
  %v1615 = vadd.f32 0.0, %v1614
  %v1616 = vpop.f32.mrf.mxu0
  %v1617 = vpop.f32.mrf.mxu0
  %v1618 = vadd.f32 0.0, %v1617
  %v1619 = vpop.f32.mrf.mxu0
  %1620 = vmatprep.mubr.bf16.mxu0 0
  %1621 = vmatmul.mubr.bf16.gmra.mxu0 %v958
  %v1622 = vpop.f32.mrf.mxu0
  %v1623 = vadd.f32 0.0, %v1622
  %v1624 = vpop.f32.mrf.mxu0
  %v1625 = vpop.f32.mrf.mxu0
  %v1626 = vadd.f32 0.0, %v1625
  %v1627 = vpop.f32.mrf.mxu0
  %1628 = vmatprep.mubr.bf16.mxu0 0
  %1629 = vmatmul.mubr.bf16.gmra.mxu0 %v961
  %v1630 = vpop.f32.mrf.mxu0
  %v1631 = vadd.f32 0.0, %v1630
  %v1632 = vpop.f32.mrf.mxu0
  %v1633 = vpop.f32.mrf.mxu0
  %v1634 = vadd.f32 0.0, %v1633
  %v1635 = vpop.f32.mrf.mxu0
  %1636 = vmatprep.mubr.bf16.mxu0 0
  %1637 = vmatmul.mubr.bf16.gmra.mxu0 %v964
  %v1638 = vpop.f32.mrf.mxu0
  %v1639 = vadd.f32 0.0, %v1638
  %v1640 = vpop.f32.mrf.mxu0
  %v1641 = vpop.f32.mrf.mxu0
  %v1642 = vadd.f32 0.0, %v1641
  %v1643 = vpop.f32.mrf.mxu0
  %1644 = vmatprep.mubr.bf16.mxu0 0
  %1645 = vmatmul.mubr.bf16.gmra.mxu0 %v967
  %v1646 = vpop.f32.mrf.mxu0
  %v1647 = vadd.f32 0.0, %v1646
  %v1648 = vpop.f32.mrf.mxu0
  %v1649 = vpop.f32.mrf.mxu0
  %v1650 = vadd.f32 0.0, %v1649
  %v1651 = vpop.f32.mrf.mxu0
  %1652 = vmatprep.mubr.bf16.mxu0 0
  %1653 = vmatmul.mubr.bf16.gmra.mxu0 %v970
  %v1654 = vpop.f32.mrf.mxu0
  %v1655 = vadd.f32 0.0, %v1654
  %v1656 = vpop.f32.mrf.mxu0
  %v1657 = vpop.f32.mrf.mxu0
  %v1658 = vadd.f32 0.0, %v1657
  %v1659 = vpop.f32.mrf.mxu0
  %1660 = vmatprep.mubr.bf16.mxu0 0
  %1661 = vmatmul.mubr.bf16.gmra.mxu0 %v973
  %v1662 = vpop.f32.mrf.mxu0
  %v1663 = vadd.f32 0.0, %v1662
  %v1664 = vpop.f32.mrf.mxu0
  %v1665 = vpop.f32.mrf.mxu0
  %v1666 = vadd.f32 0.0, %v1665
  %v1667 = vpop.f32.mrf.mxu0
  %1668 = vmatprep.mubr.bf16.mxu0 0
  %1669 = vmatmul.mubr.bf16.gmra.mxu0 %v976
  %v1670 = vpop.f32.mrf.mxu0
  %v1671 = vadd.f32 0.0, %v1670
  %v1672 = vpop.f32.mrf.mxu0
  %v1673 = vpop.f32.mrf.mxu0
  %v1674 = vadd.f32 0.0, %v1673
  %v1675 = vpop.f32.mrf.mxu0
  %1676 = vmatprep.mubr.bf16.mxu0 0
  %1677 = vmatmul.mubr.bf16.gmra.mxu0 %v979
  %v1678 = vpop.f32.mrf.mxu0
  %v1679 = vadd.f32 0.0, %v1678
  %v1680 = vpop.f32.mrf.mxu0
  %v1681 = vpop.f32.mrf.mxu0
  %v1682 = vadd.f32 0.0, %v1681
  %v1683 = vpop.f32.mrf.mxu0
  %1684 = vmatprep.mubr.bf16.mxu0 0
  %1685 = vmatmul.mubr.bf16.gmra.mxu0 %v982
  %v1686 = vpop.f32.mrf.mxu0
  %v1687 = vadd.f32 0.0, %v1686
  %v1688 = vpop.f32.mrf.mxu0
  %v1689 = vpop.f32.mrf.mxu0
  %v1690 = vadd.f32 0.0, %v1689
  %v1691 = vpop.f32.mrf.mxu0
  %1692 = vmatprep.mubr.bf16.mxu0 0
  %1693 = vmatmul.mubr.bf16.gmra.mxu0 %v985
  %v1694 = vpop.f32.mrf.mxu0
  %v1695 = vadd.f32 0.0, %v1694
  %v1696 = vpop.f32.mrf.mxu0
  %v1697 = vpop.f32.mrf.mxu0
  %v1698 = vadd.f32 0.0, %v1697
  %v1699 = vpop.f32.mrf.mxu0
  %1700 = vmatprep.mubr.bf16.mxu0 0
  %1701 = vmatmul.mubr.bf16.gmra.mxu0 %v988
  %v1702 = vpop.f32.mrf.mxu0
  %v1703 = vadd.f32 0.0, %v1702
  %v1704 = vpop.f32.mrf.mxu0
  %v1705 = vpop.f32.mrf.mxu0
  %v1706 = vadd.f32 0.0, %v1705
  %v1707 = vpop.f32.mrf.mxu0
  %1708 = vmatprep.mubr.bf16.mxu0 0
  %1709 = vmatmul.mubr.bf16.gmra.mxu0 %v991
  %v1710 = vpop.f32.mrf.mxu0
  %v1711 = vadd.f32 0.0, %v1710
  %v1712 = vpop.f32.mrf.mxu0
  %v1713 = vpop.f32.mrf.mxu0
  %v1714 = vadd.f32 0.0, %v1713
  %v1715 = vpop.f32.mrf.mxu0
  %1716 = vmatprep.mubr.bf16.mxu0 0
  %1717 = vmatmul.mubr.bf16.gmra.mxu0 %v994
  %v1718 = vpop.f32.mrf.mxu0
  %v1719 = vadd.f32 0.0, %v1718
  %v1720 = vpop.f32.mrf.mxu0
  %v1721 = vpop.f32.mrf.mxu0
  %v1722 = vadd.f32 0.0, %v1721
  %v1723 = vpop.f32.mrf.mxu0
  %1724 = vmatprep.mubr.bf16.mxu0 0
  %1725 = vmatmul.mubr.bf16.gmra.mxu0 %v997
  %v1726 = vpop.f32.mrf.mxu0
  %v1727 = vadd.f32 0.0, %v1726
  %v1728 = vpop.f32.mrf.mxu0
  %v1729 = vpop.f32.mrf.mxu0
  %v1730 = vadd.f32 0.0, %v1729
  %v1731 = vpop.f32.mrf.mxu0
  %1732 = vmatprep.mubr.bf16.mxu0 0
  %1733 = vmatmul.mubr.bf16.gmra.mxu0 %v1000
  %v1734 = vpop.f32.mrf.mxu0
  %v1735 = vadd.f32 0.0, %v1734
  %v1736 = vpop.f32.mrf.mxu0
  %v1737 = vpop.f32.mrf.mxu0
  %v1738 = vadd.f32 0.0, %v1737
  %v1739 = vpop.f32.mrf.mxu0
  %1740 = vmatprep.mubr.bf16.mxu0 0
  %1741 = vmatmul.mubr.bf16.gmra.mxu0 %v1003
  %v1742 = vpop.f32.mrf.mxu0
  %v1743 = vadd.f32 0.0, %v1742
  %v1744 = vpop.f32.mrf.mxu0
  %v1745 = vpop.f32.mrf.mxu0
  %v1746 = vadd.f32 0.0, %v1745
  %v1747 = vpop.f32.mrf.mxu0
  %1748 = vmatprep.mubr.bf16.mxu0 0
  %1749 = vmatmul.mubr.bf16.gmra.mxu0 %v1006
  %v1750 = vpop.f32.mrf.mxu0
  %v1751 = vadd.f32 0.0, %v1750
  %v1752 = vpop.f32.mrf.mxu0
  %v1753 = vpop.f32.mrf.mxu0
  %v1754 = vadd.f32 0.0, %v1753
  %v1755 = vpop.f32.mrf.mxu0
  %1756 = vmatprep.mubr.bf16.mxu0 0
  %1757 = vmatmul.mubr.bf16.gmra.mxu0 %v1009
  %v1758 = vpop.f32.mrf.mxu0
  %v1759 = vadd.f32 0.0, %v1758
  %v1760 = vpop.f32.mrf.mxu0
  %v1761 = vpop.f32.mrf.mxu0
  %v1762 = vadd.f32 0.0, %v1761
  %v1763 = vpop.f32.mrf.mxu0
  %1764 = vmatprep.mubr.bf16.mxu0 0
  %1765 = vmatmul.mubr.bf16.gmra.mxu0 %v1012
  %v1766 = vpop.f32.mrf.mxu0
  %v1767 = vadd.f32 0.0, %v1766
  %v1768 = vpop.f32.mrf.mxu0
  %v1769 = vpop.f32.mrf.mxu0
  %v1770 = vadd.f32 0.0, %v1769
  %v1771 = vpop.f32.mrf.mxu0
  %1772 = vmatprep.mubr.bf16.mxu0 0
  %1773 = vmatmul.mubr.bf16.gmra.mxu0 %v1015
  %v1774 = vpop.f32.mrf.mxu0
  %v1775 = vadd.f32 0.0, %v1774
  %v1776 = vpop.f32.mrf.mxu0
  %v1777 = vpop.f32.mrf.mxu0
  %v1778 = vadd.f32 0.0, %v1777
  %v1779 = vpop.f32.mrf.mxu0
  %1780 = vmatprep.mubr.bf16.mxu0 0
  %1781 = vmatmul.mubr.bf16.gmra.mxu0 %v1018
  %v1782 = vpop.f32.mrf.mxu0
  %v1783 = vadd.f32 0.0, %v1782
  %v1784 = vpop.f32.mrf.mxu0
  %v1785 = vpop.f32.mrf.mxu0
  %v1786 = vadd.f32 0.0, %v1785
  %v1787 = vpop.f32.mrf.mxu0
  %1788 = vmatprep.mubr.bf16.mxu0 0
  %1789 = vmatmul.mubr.bf16.gmra.mxu0 %v1021
  %v1790 = vpop.f32.mrf.mxu0
  %v1791 = vadd.f32 0.0, %v1790
  %v1792 = vpop.f32.mrf.mxu0
  %v1793 = vpop.f32.mrf.mxu0
  %v1794 = vadd.f32 0.0, %v1793
  %v1795 = vpop.f32.mrf.mxu0
  %1796 = vmatprep.mubr.bf16.mxu0 0
  %1797 = vmatmul.mubr.bf16.gmra.mxu0 %v1024
  %v1798 = vpop.f32.mrf.mxu0
  %v1799 = vadd.f32 0.0, %v1798
  %v1800 = vpop.f32.mrf.mxu0
  %v1801 = vpop.f32.mrf.mxu0
  %v1802 = vadd.f32 0.0, %v1801
  %v1803 = vpop.f32.mrf.mxu0
  %1804 = vmatprep.mubr.bf16.mxu0 0
  %1805 = vmatmul.mubr.bf16.gmra.mxu0 %v1027
  %v1806 = vpop.f32.mrf.mxu0
  %v1807 = vadd.f32 0.0, %v1806
  %v1808 = vpop.f32.mrf.mxu0
  %v1809 = vpop.f32.mrf.mxu0
  %v1810 = vadd.f32 0.0, %v1809
  %v1811 = vpop.f32.mrf.mxu0
  %1812 = vmatprep.mubr.bf16.mxu0 0
  %1813 = vmatmul.mubr.bf16.gmra.mxu0 %v1030
  %v1814 = vpop.f32.mrf.mxu0
  %v1815 = vadd.f32 0.0, %v1814
  %v1816 = vpop.f32.mrf.mxu0
  %v1817 = vpop.f32.mrf.mxu0
  %v1818 = vadd.f32 0.0, %v1817
  %v1819 = vpop.f32.mrf.mxu0
  %1820 = vmatprep.mubr.bf16.mxu0 0
  %1821 = vmatmul.mubr.bf16.gmra.mxu0 %v1033
  %v1822 = vpop.f32.mrf.mxu0
  %v1823 = vadd.f32 0.0, %v1822
  %v1824 = vpop.f32.mrf.mxu0
  %v1825 = vpop.f32.mrf.mxu0
  %v1826 = vadd.f32 0.0, %v1825
  %v1827 = vpop.f32.mrf.mxu0
  %1828 = vmatprep.mubr.bf16.mxu0 0
  %1829 = vmatmul.mubr.bf16.gmra.mxu0 %v1036
  %v1830 = vpop.f32.mrf.mxu0
  %v1831 = vadd.f32 0.0, %v1830
  %v1832 = vpop.f32.mrf.mxu0
  %v1833 = vpop.f32.mrf.mxu0
  %v1834 = vadd.f32 0.0, %v1833
  %v1835 = vpop.f32.mrf.mxu0
  %1836 = vmatprep.mubr.bf16.mxu0 0
  %1837 = vmatmul.mubr.bf16.gmra.mxu0 %v1039
  %v1838 = vpop.f32.mrf.mxu0
  %v1839 = vadd.f32 0.0, %v1838
  %v1840 = vpop.f32.mrf.mxu0
  %v1841 = vpop.f32.mrf.mxu0
  %v1842 = vadd.f32 0.0, %v1841
  %v1843 = vpop.f32.mrf.mxu0
  %1844 = vmatprep.mubr.bf16.mxu0 0
  %1845 = vmatmul.mubr.bf16.gmra.mxu0 %v1042
  %v1846 = vpop.f32.mrf.mxu0
  %v1847 = vadd.f32 0.0, %v1846
  %v1848 = vpop.f32.mrf.mxu0
  %v1849 = vpop.f32.mrf.mxu0
  %v1850 = vadd.f32 0.0, %v1849
  %v1851 = vpop.f32.mrf.mxu0
  %1852 = vmatprep.mubr.bf16.mxu0 0
  %1853 = vmatmul.mubr.bf16.gmra.mxu0 %v1045
  %v1854 = vpop.f32.mrf.mxu0
  %v1855 = vadd.f32 0.0, %v1854
  %v1856 = vpop.f32.mrf.mxu0
  %v1857 = vpop.f32.mrf.mxu0
  %v1858 = vadd.f32 0.0, %v1857
  %v1859 = vpop.f32.mrf.mxu0
  %1860 = vmatprep.mubr.bf16.mxu0 0
  %1861 = vmatmul.mubr.bf16.gmra.mxu0 %v1048
  %v1862 = vpop.f32.mrf.mxu0
  %v1863 = vadd.f32 0.0, %v1862
  %v1864 = vpop.f32.mrf.mxu0
  %v1865 = vpop.f32.mrf.mxu0
  %v1866 = vadd.f32 0.0, %v1865
  %v1867 = vpop.f32.mrf.mxu0
  %1868 = vmatprep.mubr.bf16.mxu0 0
  %1869 = vmatmul.mubr.bf16.gmra.mxu0 %v1051
  %v1870 = vpop.f32.mrf.mxu0
  %v1871 = vadd.f32 0.0, %v1870
  %v1872 = vpop.f32.mrf.mxu0
  %v1873 = vpop.f32.mrf.mxu0
  %v1874 = vadd.f32 0.0, %v1873
  %v1875 = vpop.f32.mrf.mxu0
  %1876 = vdwg.mxu0
  %v1877 = vmax.f32 %v1095, %v1290
  %v1878 = vmax.f32 %v1098, %v1295
  %v1879 = vmax.f32 %v1103, %v1298
  %v1880 = vmax.f32 %v1106, %v1303
  %v1881 = vmax.f32 %v1111, %v1306
  %v1882 = vmax.f32 %v1114, %v1311
  %v1883 = vmax.f32 %v1119, %v1314
  %v1884 = vmax.f32 %v1122, %v1319
  %v1885 = vmax.f32 %v1127, %v1322
  %v1886 = vmax.f32 %v1130, %v1327
  %v1887 = vmax.f32 %v1135, %v1330
  %v1888 = vmax.f32 %v1138, %v1335
  %v1889 = vmax.f32 %v1143, %v1338
  %v1890 = vmax.f32 %v1146, %v1343
  %v1891 = vmax.f32 %v1151, %v1346
  %v1892 = vmax.f32 %v1154, %v1351
  %v1893 = vmax.f32 %v1159, %v1354
  %v1894 = vmax.f32 %v1162, %v1359
  %v1895 = vmax.f32 %v1167, %v1362
  %v1896 = vmax.f32 %v1170, %v1367
  %v1897 = vmax.f32 %v1175, %v1370
  %v1898 = vmax.f32 %v1178, %v1375
  %v1899 = vmax.f32 %v1183, %v1378
  %v1900 = vmax.f32 %v1186, %v1383
  %v1901 = vmax.f32 %v1191, %v1386
  %v1902 = vmax.f32 %v1194, %v1391
  %v1903 = vmax.f32 %v1199, %v1394
  %v1904 = vmax.f32 %v1202, %v1399
  %v1905 = vmax.f32 %v1207, %v1402
  %v1906 = vmax.f32 %v1210, %v1407
  %v1907 = vmax.f32 %v1215, %v1410
  %v1908 = vmax.f32 %v1218, %v1415
  %v1909 = vmax.f32 %v1223, %v1418
  %v1910 = vmax.f32 %v1226, %v1423
  %v1911 = vmax.f32 %v1231, %v1426
  %v1912 = vmax.f32 %v1234, %v1431
  %v1913 = vmax.f32 %v1239, %v1434
  %v1914 = vmax.f32 %v1242, %v1439
  %v1915 = vmax.f32 %v1247, %v1442
  %v1916 = vmax.f32 %v1250, %v1447
  %v1917 = vmax.f32 %v1255, %v1450
  %v1918 = vmax.f32 %v1258, %v1455
  %v1919 = vmax.f32 %v1263, %v1458
  %v1920 = vmax.f32 %v1266, %v1463
  %v1921 = vmax.f32 %v1271, %v1466
  %v1922 = vmax.f32 %v1274, %v1471
  %v1923 = vmax.f32 %v1279, %v1474
  %v1924 = vmax.f32 %v1282, %v1479
  %v1925 = vmax.f32 %v1287, %v1482
  %v1926 = vmax.f32 %v1487, %v1682
  %v1927 = vmax.f32 %v1490, %v1687
  %v1928 = vmax.f32 %v1495, %v1690
  %v1929 = vmax.f32 %v1498, %v1695
  %v1930 = vmax.f32 %v1503, %v1698
  %v1931 = vmax.f32 %v1506, %v1703
  %v1932 = vmax.f32 %v1511, %v1706
  %v1933 = vmax.f32 %v1514, %v1711
  %v1934 = vmax.f32 %v1519, %v1714
  %v1935 = vmax.f32 %v1522, %v1719
  %v1936 = vmax.f32 %v1527, %v1722
  %v1937 = vmax.f32 %v1530, %v1727
  %v1938 = vmax.f32 %v1535, %v1730
  %v1939 = vmax.f32 %v1538, %v1735
  %v1940 = vmax.f32 %v1543, %v1738
  %v1941 = vmax.f32 %v1546, %v1743
  %v1942 = vmax.f32 %v1551, %v1746
  %v1943 = vmax.f32 %v1554, %v1751
  %v1944 = vmax.f32 %v1559, %v1754
  %v1945 = vmax.f32 %v1562, %v1759
  %v1946 = vmax.f32 %v1567, %v1762
  %v1947 = vmax.f32 %v1570, %v1767
  %v1948 = vmax.f32 %v1575, %v1770
  %v1949 = vmax.f32 %v1578, %v1775
  %v1950 = vmax.f32 %v1583, %v1778
  %v1951 = vmax.f32 %v1586, %v1783
  %v1952 = vmax.f32 %v1591, %v1786
  %v1953 = vmax.f32 %v1594, %v1791
  %v1954 = vmax.f32 %v1599, %v1794
  %v1955 = vmax.f32 %v1602, %v1799
  %v1956 = vmax.f32 %v1607, %v1802
  %v1957 = vmax.f32 %v1610, %v1807
  %v1958 = vmax.f32 %v1615, %v1810
  %v1959 = vmax.f32 %v1618, %v1815
  %v1960 = vmax.f32 %v1623, %v1818
  %v1961 = vmax.f32 %v1626, %v1823
  %v1962 = vmax.f32 %v1631, %v1826
  %v1963 = vmax.f32 %v1634, %v1831
  %v1964 = vmax.f32 %v1639, %v1834
  %v1965 = vmax.f32 %v1642, %v1839
  %v1966 = vmax.f32 %v1647, %v1842
  %v1967 = vmax.f32 %v1650, %v1847
  %v1968 = vmax.f32 %v1655, %v1850
  %v1969 = vmax.f32 %v1658, %v1855
  %v1970 = vmax.f32 %v1663, %v1858
  %v1971 = vmax.f32 %v1666, %v1863
  %v1972 = vmax.f32 %v1671, %v1866
  %v1973 = vmax.f32 %v1674, %v1871
  %v1974 = vmax.f32 %v1679, %v1874
  %v1975 = vmax.f32 %v1877, %v1926
  %v1976 = vmax.f32 %v1878, %v1927
  %v1977 = vmax.f32 %v1879, %v1928
  %v1978 = vmax.f32 %v1880, %v1929
  %v1979 = vmax.f32 %v1881, %v1930
  %v1980 = vmax.f32 %v1882, %v1931
  %v1981 = vmax.f32 %v1883, %v1932
  %v1982 = vmax.f32 %v1884, %v1933
  %v1983 = vmax.f32 %v1885, %v1934
  %v1984 = vmax.f32 %v1886, %v1935
  %v1985 = vmax.f32 %v1887, %v1936
  %v1986 = vmax.f32 %v1888, %v1937
  %v1987 = vmax.f32 %v1889, %v1938
  %v1988 = vmax.f32 %v1890, %v1939
  %v1989 = vmax.f32 %v1891, %v1940
  %v1990 = vmax.f32 %v1892, %v1941
  %v1991 = vmax.f32 %v1893, %v1942
  %v1992 = vmax.f32 %v1894, %v1943
  %v1993 = vmax.f32 %v1895, %v1944
  %v1994 = vmax.f32 %v1896, %v1945
  %v1995 = vmax.f32 %v1897, %v1946
  %v1996 = vmax.f32 %v1898, %v1947
  %v1997 = vmax.f32 %v1899, %v1948
  %v1998 = vmax.f32 %v1900, %v1949
  %v1999 = vmax.f32 %v1901, %v1950
  %v2000 = vmax.f32 %v1902, %v1951
  %v2001 = vmax.f32 %v1903, %v1952
  %v2002 = vmax.f32 %v1904, %v1953
  %v2003 = vmax.f32 %v1905, %v1954
  %v2004 = vmax.f32 %v1906, %v1955
  %v2005 = vmax.f32 %v1907, %v1956
  %v2006 = vmax.f32 %v1908, %v1957
  %v2007 = vmax.f32 %v1909, %v1958
  %v2008 = vmax.f32 %v1910, %v1959
  %v2009 = vmax.f32 %v1911, %v1960
  %v2010 = vmax.f32 %v1912, %v1961
  %v2011 = vmax.f32 %v1913, %v1962
  %v2012 = vmax.f32 %v1914, %v1963
  %v2013 = vmax.f32 %v1915, %v1964
  %v2014 = vmax.f32 %v1916, %v1965
  %v2015 = vmax.f32 %v1917, %v1966
  %v2016 = vmax.f32 %v1918, %v1967
  %v2017 = vmax.f32 %v1919, %v1968
  %v2018 = vmax.f32 %v1920, %v1969
  %v2019 = vmax.f32 %v1921, %v1970
  %v2020 = vmax.f32 %v1922, %v1971
  %v2021 = vmax.f32 %v1923, %v1972
  %v2022 = vmax.f32 %v1924, %v1973
  %v2023 = vmax.f32 %v1925, %v1974
  %v2024 = vld [vmem:[%s2] sm:$0x1]
  %v2026 = vlaneseq
  %v2027 = vshrl.u32 %v2026, 7
  %v2028 = vsub.s32 0, %v2027
  %v2029 = vrot.slane %v2024, %v2028
  %v2031 = vadd.f32 %v1975, %v2029
  %v2032 = vadd.f32 %v1976, %v2029
  %v2033 = vadd.f32 %v1977, %v2029
  %v2034 = vadd.f32 %v1978, %v2029
  %v2035 = vadd.f32 %v1979, %v2029
  %v2036 = vadd.f32 %v1980, %v2029
  %v2037 = vadd.f32 %v1981, %v2029
  %v2038 = vadd.f32 %v1982, %v2029
  %v2039 = vadd.f32 %v1983, %v2029
  %v2040 = vadd.f32 %v1984, %v2029
  %v2041 = vadd.f32 %v1985, %v2029
  %v2042 = vadd.f32 %v1986, %v2029
  %v2043 = vadd.f32 %v1987, %v2029
  %v2044 = vadd.f32 %v1988, %v2029
  %v2045 = vadd.f32 %v1989, %v2029
  %v2046 = vadd.f32 %v1990, %v2029
  %v2047 = vadd.f32 %v1991, %v2029
  %v2048 = vadd.f32 %v1992, %v2029
  %v2049 = vadd.f32 %v1993, %v2029
  %v2050 = vadd.f32 %v1994, %v2029
  %v2051 = vadd.f32 %v1995, %v2029
  %v2052 = vadd.f32 %v1996, %v2029
  %v2053 = vadd.f32 %v1997, %v2029
  %v2054 = vadd.f32 %v1998, %v2029
  %v2055 = vadd.f32 %v1999, %v2029
  %v2056 = vadd.f32 %v2000, %v2029
  %v2057 = vadd.f32 %v2001, %v2029
  %v2058 = vadd.f32 %v2002, %v2029
  %v2059 = vadd.f32 %v2003, %v2029
  %v2060 = vadd.f32 %v2004, %v2029
  %v2061 = vadd.f32 %v2005, %v2029
  %v2062 = vadd.f32 %v2006, %v2029
  %v2063 = vadd.f32 %v2007, %v2029
  %v2064 = vadd.f32 %v2008, %v2029
  %v2065 = vadd.f32 %v2009, %v2029
  %v2066 = vadd.f32 %v2010, %v2029
  %v2067 = vadd.f32 %v2011, %v2029
  %v2068 = vadd.f32 %v2012, %v2029
  %v2069 = vadd.f32 %v2013, %v2029
  %v2070 = vadd.f32 %v2014, %v2029
  %v2071 = vadd.f32 %v2015, %v2029
  %v2072 = vadd.f32 %v2016, %v2029
  %v2073 = vadd.f32 %v2017, %v2029
  %v2074 = vadd.f32 %v2018, %v2029
  %v2075 = vadd.f32 %v2019, %v2029
  %v2076 = vadd.f32 %v2020, %v2029
  %v2077 = vadd.f32 %v2021, %v2029
  %v2078 = vadd.f32 %v2022, %v2029
  %v2079 = vadd.f32 %v2023, %v2029
  %v2080 = vmax.f32 %v2031, 0.0
  %v2081 = vmax.f32 %v2032, 0.0
  %v2082 = vmax.f32 %v2033, 0.0
  %v2083 = vmax.f32 %v2034, 0.0
  %v2084 = vmax.f32 %v2035, 0.0
  %v2085 = vmax.f32 %v2036, 0.0
  %v2086 = vmax.f32 %v2037, 0.0
  %v2087 = vmax.f32 %v2038, 0.0
  %v2088 = vmax.f32 %v2039, 0.0
  %v2089 = vmax.f32 %v2040, 0.0
  %v2090 = vmax.f32 %v2041, 0.0
  %v2091 = vmax.f32 %v2042, 0.0
  %v2092 = vmax.f32 %v2043, 0.0
  %v2093 = vmax.f32 %v2044, 0.0
  %v2094 = vmax.f32 %v2045, 0.0
  %v2095 = vmax.f32 %v2046, 0.0
  %v2096 = vmax.f32 %v2047, 0.0
  %v2097 = vmax.f32 %v2048, 0.0
  %v2098 = vmax.f32 %v2049, 0.0
  %v2099 = vmax.f32 %v2050, 0.0
  %v2100 = vmax.f32 %v2051, 0.0
  %v2101 = vmax.f32 %v2052, 0.0
  %v2102 = vmax.f32 %v2053, 0.0
  %v2103 = vmax.f32 %v2054, 0.0
  %v2104 = vmax.f32 %v2055, 0.0
  %v2105 = vmax.f32 %v2056, 0.0
  %v2106 = vmax.f32 %v2057, 0.0
  %v2107 = vmax.f32 %v2058, 0.0
  %v2108 = vmax.f32 %v2059, 0.0
  %v2109 = vmax.f32 %v2060, 0.0
  %v2110 = vmax.f32 %v2061, 0.0
  %v2111 = vmax.f32 %v2062, 0.0
  %v2112 = vmax.f32 %v2063, 0.0
  %v2113 = vmax.f32 %v2064, 0.0
  %v2114 = vmax.f32 %v2065, 0.0
  %v2115 = vmax.f32 %v2066, 0.0
  %v2116 = vmax.f32 %v2067, 0.0
  %v2117 = vmax.f32 %v2068, 0.0
  %v2118 = vmax.f32 %v2069, 0.0
  %v2119 = vmax.f32 %v2070, 0.0
  %v2120 = vmax.f32 %v2071, 0.0
  %v2121 = vmax.f32 %v2072, 0.0
  %v2122 = vmax.f32 %v2073, 0.0
  %v2123 = vmax.f32 %v2074, 0.0
  %v2124 = vmax.f32 %v2075, 0.0
  %v2125 = vmax.f32 %v2076, 0.0
  %v2126 = vmax.f32 %v2077, 0.0
  %v2127 = vmax.f32 %v2078, 0.0
  %v2128 = vmax.f32 %v2079, 0.0
  %vm2129 = vcmask 203776
  %2130 = vst.msk [vmem:[#allocation2] sm:$0xff] %vm2129, 0.0
  %2131 = vst.msk [vmem:[#allocation2 + $0x8] sm:$0xff] %vm2129, 0.0
  %2132 = vst.msk [vmem:[#allocation2 + $0x10] sm:$0xff] %vm2129, 0.0
  %2133 = vst.msk [vmem:[#allocation2 + $0x18] sm:$0xff] %vm2129, 0.0
  %2134 = vst.msk [vmem:[#allocation2 + $0x20] sm:$0xff] %vm2129, 0.0
  %2135 = vst.msk [vmem:[#allocation2 + $0x28] sm:$0xff] %vm2129, 0.0
  %2136 = vst.msk [vmem:[#allocation2 + $0x30] sm:$0xff] %vm2129, 0.0
  %2137 = vst.msk [vmem:[#allocation2 + $0x38] sm:$0xff] %vm2129, 0.0
  %2138 = vst.msk [vmem:[#allocation2 + $0x40] sm:$0xff] %vm2129, 0.0
  %2139 = vst.msk [vmem:[#allocation2 + $0x48] sm:$0xff] %vm2129, 0.0
  %2140 = vst.msk [vmem:[#allocation2 + $0x90] sm:$0xff] %vm2129, 0.0
  %2141 = vst.msk [vmem:[#allocation2 + $0xd8] sm:$0xff] %vm2129, 0.0
  %2142 = vst.msk [vmem:[#allocation2 + $0x120] sm:$0xff] %vm2129, 0.0
  %2143 = vst.msk [vmem:[#allocation2 + $0x168] sm:$0xff] %vm2129, 0.0
  %2144 = vst.msk [vmem:[#allocation2 + $0x1b0] sm:$0xff] %vm2129, 0.0
  %2145 = vst.msk [vmem:[#allocation2 + $0x1f8] sm:$0xff] %vm2129, 0.0
  %vm2146 = vcmask 39936
  %2147 = vst.msk [vmem:[#allocation2 + $0x50] sm:$0xff] %vm2146, %v2080
  %2148 = vst.msk [vmem:[#allocation2 + $0x58] sm:$0xff] %vm2146, %v2081
  %2149 = vst.msk [vmem:[#allocation2 + $0x60] sm:$0xff] %vm2146, %v2082
  %2150 = vst.msk [vmem:[#allocation2 + $0x68] sm:$0xff] %vm2146, %v2083
  %2151 = vst.msk [vmem:[#allocation2 + $0x70] sm:$0xff] %vm2146, %v2084
  %2152 = vst.msk [vmem:[#allocation2 + $0x78] sm:$0xff] %vm2146, %v2085
  %2153 = vst.msk [vmem:[#allocation2 + $0x80] sm:$0xff] %vm2146, %v2086
  %2161 = vrot.lane.b32.xlu0 %v2080, 5
  %v2162 = vpop.permute.xlu0 %2161
  %2163 = vrot.lane.b32.xlu0 %v2081, 5
  %v2164 = vpop.permute.xlu0 %2163
  %2165 = vrot.lane.b32.xlu0 %v2082, 5
  %v2166 = vpop.permute.xlu0 %2165
  %2167 = vrot.lane.b32.xlu0 %v2083, 5
  %v2168 = vpop.permute.xlu0 %2167
  %2169 = vrot.lane.b32.xlu0 %v2084, 5
  %v2170 = vpop.permute.xlu0 %2169
  %2171 = vrot.lane.b32.xlu0 %v2085, 5
  %v2172 = vpop.permute.xlu0 %2171
  %2173 = vrot.lane.b32.xlu0 %v2086, 5
  %v2174 = vpop.permute.xlu0 %2173
  %vm2182 = vcmask 80936
  %2183 = vst.msk [vmem:[#allocation2 + $0x48] sm:$0xff] %vm2182, %v2162
  %2184 = vst.msk [vmem:[#allocation2 + $0x50] sm:$0xff] %vm2182, %v2164
  %2185 = vst.msk [vmem:[#allocation2 + $0x58] sm:$0xff] %vm2182, %v2166
  %2186 = vst.msk [vmem:[#allocation2 + $0x60] sm:$0xff] %vm2182, %v2168
  %2187 = vst.msk [vmem:[#allocation2 + $0x68] sm:$0xff] %vm2182, %v2170
  %2188 = vst.msk [vmem:[#allocation2 + $0x70] sm:$0xff] %vm2182, %v2172
  %2189 = vst.msk [vmem:[#allocation2 + $0x78] sm:$0xff] %vm2182, %v2174
  %2190 = vrot.lane.b32.xlu0 %v2080, 10
  %v2191 = vpop.permute.xlu0 %2190
  %2192 = vrot.lane.b32.xlu0 %v2081, 10
  %v2193 = vpop.permute.xlu0 %2192
  %2194 = vrot.lane.b32.xlu0 %v2082, 10
  %v2195 = vpop.permute.xlu0 %2194
  %2196 = vrot.lane.b32.xlu0 %v2083, 10
  %v2197 = vpop.permute.xlu0 %2196
  %2198 = vrot.lane.b32.xlu0 %v2084, 10
  %v2199 = vpop.permute.xlu0 %2198
  %2200 = vrot.lane.b32.xlu0 %v2085, 10
  %v2201 = vpop.permute.xlu0 %2200
  %2202 = vrot.lane.b32.xlu0 %v2086, 10
  %v2203 = vpop.permute.xlu0 %2202
  %vm2211 = vcmask 121936
  %2212 = vst.msk [vmem:[#allocation2 + $0x40] sm:$0xff] %vm2211, %v2191
  %2213 = vst.msk [vmem:[#allocation2 + $0x48] sm:$0xff] %vm2211, %v2193
  %2214 = vst.msk [vmem:[#allocation2 + $0x50] sm:$0xff] %vm2211, %v2195
  %2215 = vst.msk [vmem:[#allocation2 + $0x58] sm:$0xff] %vm2211, %v2197
  %2216 = vst.msk [vmem:[#allocation2 + $0x60] sm:$0xff] %vm2211, %v2199
  %2217 = vst.msk [vmem:[#allocation2 + $0x68] sm:$0xff] %vm2211, %v2201
  %2218 = vst.msk [vmem:[#allocation2 + $0x70] sm:$0xff] %vm2211, %v2203
  %2219 = vrot.lane.b32.xlu0 %v2080, 15
  %v2220 = vpop.permute.xlu0 %2219
  %2221 = vrot.lane.b32.xlu0 %v2081, 15
  %v2222 = vpop.permute.xlu0 %2221
  %2223 = vrot.lane.b32.xlu0 %v2082, 15
  %v2224 = vpop.permute.xlu0 %2223
  %2225 = vrot.lane.b32.xlu0 %v2083, 15
  %v2226 = vpop.permute.xlu0 %2225
  %2227 = vrot.lane.b32.xlu0 %v2084, 15
  %v2228 = vpop.permute.xlu0 %2227
  %2229 = vrot.lane.b32.xlu0 %v2085, 15
  %v2230 = vpop.permute.xlu0 %2229
  %2231 = vrot.lane.b32.xlu0 %v2086, 15
  %v2232 = vpop.permute.xlu0 %2231
  %vm2240 = vcmask 162936
  %2241 = vst.msk [vmem:[#allocation2 + $0x38] sm:$0xff] %vm2240, %v2220
  %2242 = vst.msk [vmem:[#allocation2 + $0x40] sm:$0xff] %vm2240, %v2222
  %2243 = vst.msk [vmem:[#allocation2 + $0x48] sm:$0xff] %vm2240, %v2224
  %2244 = vst.msk [vmem:[#allocation2 + $0x50] sm:$0xff] %vm2240, %v2226
  %2245 = vst.msk [vmem:[#allocation2 + $0x58] sm:$0xff] %vm2240, %v2228
  %2246 = vst.msk [vmem:[#allocation2 + $0x60] sm:$0xff] %vm2240, %v2230
  %2247 = vst.msk [vmem:[#allocation2 + $0x68] sm:$0xff] %vm2240, %v2232
  %2248 = vrot.lane.b32.xlu0 %v2080, 20
  %v2249 = vpop.permute.xlu0 %2248
  %2250 = vrot.lane.b32.xlu0 %v2081, 20
  %v2251 = vpop.permute.xlu0 %2250
  %2252 = vrot.lane.b32.xlu0 %v2082, 20
  %v2253 = vpop.permute.xlu0 %2252
  %2254 = vrot.lane.b32.xlu0 %v2083, 20
  %v2255 = vpop.permute.xlu0 %2254
  %2256 = vrot.lane.b32.xlu0 %v2084, 20
  %v2257 = vpop.permute.xlu0 %2256
  %2258 = vrot.lane.b32.xlu0 %v2085, 20
  %v2259 = vpop.permute.xlu0 %2258
  %2260 = vrot.lane.b32.xlu0 %v2086, 20
  %v2261 = vpop.permute.xlu0 %2260
  %vm2269 = vcmask 203936
  %2270 = vst.msk [vmem:[#allocation2 + $0x30] sm:$0xff] %vm2269, %v2249
  %2271 = vst.msk [vmem:[#allocation2 + $0x38] sm:$0xff] %vm2269, %v2251
  %2272 = vst.msk [vmem:[#allocation2 + $0x40] sm:$0xff] %vm2269, %v2253
  %2273 = vst.msk [vmem:[#allocation2 + $0x48] sm:$0xff] %vm2269, %v2255
  %2274 = vst.msk [vmem:[#allocation2 + $0x50] sm:$0xff] %vm2269, %v2257
  %2275 = vst.msk [vmem:[#allocation2 + $0x58] sm:$0xff] %vm2269, %v2259
  %2276 = vst.msk [vmem:[#allocation2 + $0x60] sm:$0xff] %vm2269, %v2261
  %2277 = vst.msk [vmem:[#allocation2 + $0x98] sm:$0xff] %vm2146, %v2087
  %2278 = vst.msk [vmem:[#allocation2 + $0xa0] sm:$0xff] %vm2146, %v2088
  %2279 = vst.msk [vmem:[#allocation2 + $0xa8] sm:$0xff] %vm2146, %v2089
  %2280 = vst.msk [vmem:[#allocation2 + $0xb0] sm:$0xff] %vm2146, %v2090
  %2281 = vst.msk [vmem:[#allocation2 + $0xb8] sm:$0xff] %vm2146, %v2091
  %2282 = vst.msk [vmem:[#allocation2 + $0xc0] sm:$0xff] %vm2146, %v2092
  %2283 = vst.msk [vmem:[#allocation2 + $0xc8] sm:$0xff] %vm2146, %v2093
  %2291 = vrot.lane.b32.xlu0 %v2087, 5
  %v2292 = vpop.permute.xlu0 %2291
  %2293 = vrot.lane.b32.xlu0 %v2088, 5
  %v2294 = vpop.permute.xlu0 %2293
  %2295 = vrot.lane.b32.xlu0 %v2089, 5
  %v2296 = vpop.permute.xlu0 %2295
  %2297 = vrot.lane.b32.xlu0 %v2090, 5
  %v2298 = vpop.permute.xlu0 %2297
  %2299 = vrot.lane.b32.xlu0 %v2091, 5
  %v2300 = vpop.permute.xlu0 %2299
  %2301 = vrot.lane.b32.xlu0 %v2092, 5
  %v2302 = vpop.permute.xlu0 %2301
  %2303 = vrot.lane.b32.xlu0 %v2093, 5
  %v2304 = vpop.permute.xlu0 %2303
  %2312 = vst.msk [vmem:[#allocation2 + $0x90] sm:$0xff] %vm2182, %v2292
  %2313 = vst.msk [vmem:[#allocation2 + $0x98] sm:$0xff] %vm2182, %v2294
  %2314 = vst.msk [vmem:[#allocation2 + $0xa0] sm:$0xff] %vm2182, %v2296
  %2315 = vst.msk [vmem:[#allocation2 + $0xa8] sm:$0xff] %vm2182, %v2298
  %2316 = vst.msk [vmem:[#allocation2 + $0xb0] sm:$0xff] %vm2182, %v2300
  %2317 = vst.msk [vmem:[#allocation2 + $0xb8] sm:$0xff] %vm2182, %v2302
  %2318 = vst.msk [vmem:[#allocation2 + $0xc0] sm:$0xff] %vm2182, %v2304
  %2319 = vrot.lane.b32.xlu0 %v2087, 10
  %v2320 = vpop.permute.xlu0 %2319
  %2321 = vrot.lane.b32.xlu0 %v2088, 10
  %v2322 = vpop.permute.xlu0 %2321
  %2323 = vrot.lane.b32.xlu0 %v2089, 10
  %v2324 = vpop.permute.xlu0 %2323
  %2325 = vrot.lane.b32.xlu0 %v2090, 10
  %v2326 = vpop.permute.xlu0 %2325
  %2327 = vrot.lane.b32.xlu0 %v2091, 10
  %v2328 = vpop.permute.xlu0 %2327
  %2329 = vrot.lane.b32.xlu0 %v2092, 10
  %v2330 = vpop.permute.xlu0 %2329
  %2331 = vrot.lane.b32.xlu0 %v2093, 10
  %v2332 = vpop.permute.xlu0 %2331
  %2340 = vst.msk [vmem:[#allocation2 + $0x88] sm:$0xff] %vm2211, %v2320
  %2341 = vst.msk [vmem:[#allocation2 + $0x90] sm:$0xff] %vm2211, %v2322
  %2342 = vst.msk [vmem:[#allocation2 + $0x98] sm:$0xff] %vm2211, %v2324
  %2343 = vst.msk [vmem:[#allocation2 + $0xa0] sm:$0xff] %vm2211, %v2326
  %2344 = vst.msk [vmem:[#allocation2 + $0xa8] sm:$0xff] %vm2211, %v2328
  %2345 = vst.msk [vmem:[#allocation2 + $0xb0] sm:$0xff] %vm2211, %v2330
  %2346 = vst.msk [vmem:[#allocation2 + $0xb8] sm:$0xff] %vm2211, %v2332
  %2347 = vrot.lane.b32.xlu0 %v2087, 15
  %v2348 = vpop.permute.xlu0 %2347
  %2349 = vrot.lane.b32.xlu0 %v2088, 15
  %v2350 = vpop.permute.xlu0 %2349
  %2351 = vrot.lane.b32.xlu0 %v2089, 15
  %v2352 = vpop.permute.xlu0 %2351
  %2353 = vrot.lane.b32.xlu0 %v2090, 15
  %v2354 = vpop.permute.xlu0 %2353
  %2355 = vrot.lane.b32.xlu0 %v2091, 15
  %v2356 = vpop.permute.xlu0 %2355
  %2357 = vrot.lane.b32.xlu0 %v2092, 15
  %v2358 = vpop.permute.xlu0 %2357
  %2359 = vrot.lane.b32.xlu0 %v2093, 15
  %v2360 = vpop.permute.xlu0 %2359
  %2368 = vst.msk [vmem:[#allocation2 + $0x80] sm:$0xff] %vm2240, %v2348
  %2369 = vst.msk [vmem:[#allocation2 + $0x88] sm:$0xff] %vm2240, %v2350
  %2370 = vst.msk [vmem:[#allocation2 + $0x90] sm:$0xff] %vm2240, %v2352
  %2371 = vst.msk [vmem:[#allocation2 + $0x98] sm:$0xff] %vm2240, %v2354
  %2372 = vst.msk [vmem:[#allocation2 + $0xa0] sm:$0xff] %vm2240, %v2356
  %2373 = vst.msk [vmem:[#allocation2 + $0xa8] sm:$0xff] %vm2240, %v2358
  %2374 = vst.msk [vmem:[#allocation2 + $0xb0] sm:$0xff] %vm2240, %v2360
  %2375 = vrot.lane.b32.xlu0 %v2087, 20
  %v2376 = vpop.permute.xlu0 %2375
  %2377 = vrot.lane.b32.xlu0 %v2088, 20
  %v2378 = vpop.permute.xlu0 %2377
  %2379 = vrot.lane.b32.xlu0 %v2089, 20
  %v2380 = vpop.permute.xlu0 %2379
  %2381 = vrot.lane.b32.xlu0 %v2090, 20
  %v2382 = vpop.permute.xlu0 %2381
  %2383 = vrot.lane.b32.xlu0 %v2091, 20
  %v2384 = vpop.permute.xlu0 %2383
  %2385 = vrot.lane.b32.xlu0 %v2092, 20
  %v2386 = vpop.permute.xlu0 %2385
  %2387 = vrot.lane.b32.xlu0 %v2093, 20
  %v2388 = vpop.permute.xlu0 %2387
  %2396 = vst.msk [vmem:[#allocation2 + $0x78] sm:$0xff] %vm2269, %v2376
  %2397 = vst.msk [vmem:[#allocation2 + $0x80] sm:$0xff] %vm2269, %v2378
  %2398 = vst.msk [vmem:[#allocation2 + $0x88] sm:$0xff] %vm2269, %v2380
  %2399 = vst.msk [vmem:[#allocation2 + $0x90] sm:$0xff] %vm2269, %v2382
  %2400 = vst.msk [vmem:[#allocation2 + $0x98] sm:$0xff] %vm2269, %v2384
  %2401 = vst.msk [vmem:[#allocation2 + $0xa0] sm:$0xff] %vm2269, %v2386
  %2402 = vst.msk [vmem:[#allocation2 + $0xa8] sm:$0xff] %vm2269, %v2388
  %2403 = vst.msk [vmem:[#allocation2 + $0xe0] sm:$0xff] %vm2146, %v2094
  %2404 = vst.msk [vmem:[#allocation2 + $0xe8] sm:$0xff] %vm2146, %v2095
  %2405 = vst.msk [vmem:[#allocation2 + $0xf0] sm:$0xff] %vm2146, %v2096
  %2406 = vst.msk [vmem:[#allocation2 + $0xf8] sm:$0xff] %vm2146, %v2097
  %2407 = vst.msk [vmem:[#allocation2 + $0x100] sm:$0xff] %vm2146, %v2098
  %2408 = vst.msk [vmem:[#allocation2 + $0x108] sm:$0xff] %vm2146, %v2099
  %2409 = vst.msk [vmem:[#allocation2 + $0x110] sm:$0xff] %vm2146, %v2100
  %2417 = vrot.lane.b32.xlu0 %v2094, 5
  %v2418 = vpop.permute.xlu0 %2417
  %2419 = vrot.lane.b32.xlu0 %v2095, 5
  %v2420 = vpop.permute.xlu0 %2419
  %2421 = vrot.lane.b32.xlu0 %v2096, 5
  %v2422 = vpop.permute.xlu0 %2421
  %2423 = vrot.lane.b32.xlu0 %v2097, 5
  %v2424 = vpop.permute.xlu0 %2423
  %2425 = vrot.lane.b32.xlu0 %v2098, 5
  %v2426 = vpop.permute.xlu0 %2425
  %2427 = vrot.lane.b32.xlu0 %v2099, 5
  %v2428 = vpop.permute.xlu0 %2427
  %2429 = vrot.lane.b32.xlu0 %v2100, 5
  %v2430 = vpop.permute.xlu0 %2429
  %2438 = vst.msk [vmem:[#allocation2 + $0xd8] sm:$0xff] %vm2182, %v2418
  %2439 = vst.msk [vmem:[#allocation2 + $0xe0] sm:$0xff] %vm2182, %v2420
  %2440 = vst.msk [vmem:[#allocation2 + $0xe8] sm:$0xff] %vm2182, %v2422
  %2441 = vst.msk [vmem:[#allocation2 + $0xf0] sm:$0xff] %vm2182, %v2424
  %2442 = vst.msk [vmem:[#allocation2 + $0xf8] sm:$0xff] %vm2182, %v2426
  %2443 = vst.msk [vmem:[#allocation2 + $0x100] sm:$0xff] %vm2182, %v2428
  %2444 = vst.msk [vmem:[#allocation2 + $0x108] sm:$0xff] %vm2182, %v2430
  %2445 = vrot.lane.b32.xlu0 %v2094, 10
  %v2446 = vpop.permute.xlu0 %2445
  %2447 = vrot.lane.b32.xlu0 %v2095, 10
  %v2448 = vpop.permute.xlu0 %2447
  %2449 = vrot.lane.b32.xlu0 %v2096, 10
  %v2450 = vpop.permute.xlu0 %2449
  %2451 = vrot.lane.b32.xlu0 %v2097, 10
  %v2452 = vpop.permute.xlu0 %2451
  %2453 = vrot.lane.b32.xlu0 %v2098, 10
  %v2454 = vpop.permute.xlu0 %2453
  %2455 = vrot.lane.b32.xlu0 %v2099, 10
  %v2456 = vpop.permute.xlu0 %2455
  %2457 = vrot.lane.b32.xlu0 %v2100, 10
  %v2458 = vpop.permute.xlu0 %2457
  %2466 = vst.msk [vmem:[#allocation2 + $0xd0] sm:$0xff] %vm2211, %v2446
  %2467 = vst.msk [vmem:[#allocation2 + $0xd8] sm:$0xff] %vm2211, %v2448
  %2468 = vst.msk [vmem:[#allocation2 + $0xe0] sm:$0xff] %vm2211, %v2450
  %2469 = vst.msk [vmem:[#allocation2 + $0xe8] sm:$0xff] %vm2211, %v2452
  %2470 = vst.msk [vmem:[#allocation2 + $0xf0] sm:$0xff] %vm2211, %v2454
  %2471 = vst.msk [vmem:[#allocation2 + $0xf8] sm:$0xff] %vm2211, %v2456
  %2472 = vst.msk [vmem:[#allocation2 + $0x100] sm:$0xff] %vm2211, %v2458
  %2473 = vrot.lane.b32.xlu0 %v2094, 15
  %v2474 = vpop.permute.xlu0 %2473
  %2475 = vrot.lane.b32.xlu0 %v2095, 15
  %v2476 = vpop.permute.xlu0 %2475
  %2477 = vrot.lane.b32.xlu0 %v2096, 15
  %v2478 = vpop.permute.xlu0 %2477
  %2479 = vrot.lane.b32.xlu0 %v2097, 15
  %v2480 = vpop.permute.xlu0 %2479
  %2481 = vrot.lane.b32.xlu0 %v2098, 15
  %v2482 = vpop.permute.xlu0 %2481
  %2483 = vrot.lane.b32.xlu0 %v2099, 15
  %v2484 = vpop.permute.xlu0 %2483
  %2485 = vrot.lane.b32.xlu0 %v2100, 15
  %v2486 = vpop.permute.xlu0 %2485
  %2494 = vst.msk [vmem:[#allocation2 + $0xc8] sm:$0xff] %vm2240, %v2474
  %2495 = vst.msk [vmem:[#allocation2 + $0xd0] sm:$0xff] %vm2240, %v2476
  %2496 = vst.msk [vmem:[#allocation2 + $0xd8] sm:$0xff] %vm2240, %v2478
  %2497 = vst.msk [vmem:[#allocation2 + $0xe0] sm:$0xff] %vm2240, %v2480
  %2498 = vst.msk [vmem:[#allocation2 + $0xe8] sm:$0xff] %vm2240, %v2482
  %2499 = vst.msk [vmem:[#allocation2 + $0xf0] sm:$0xff] %vm2240, %v2484
  %2500 = vst.msk [vmem:[#allocation2 + $0xf8] sm:$0xff] %vm2240, %v2486
  %2501 = vrot.lane.b32.xlu0 %v2094, 20
  %v2502 = vpop.permute.xlu0 %2501
  %2503 = vrot.lane.b32.xlu0 %v2095, 20
  %v2504 = vpop.permute.xlu0 %2503
  %2505 = vrot.lane.b32.xlu0 %v2096, 20
  %v2506 = vpop.permute.xlu0 %2505
  %2507 = vrot.lane.b32.xlu0 %v2097, 20
  %v2508 = vpop.permute.xlu0 %2507
  %2509 = vrot.lane.b32.xlu0 %v2098, 20
  %v2510 = vpop.permute.xlu0 %2509
  %2511 = vrot.lane.b32.xlu0 %v2099, 20
  %v2512 = vpop.permute.xlu0 %2511
  %2513 = vrot.lane.b32.xlu0 %v2100, 20
  %v2514 = vpop.permute.xlu0 %2513
  %2522 = vst.msk [vmem:[#allocation2 + $0xc0] sm:$0xff] %vm2269, %v2502
  %2523 = vst.msk [vmem:[#allocation2 + $0xc8] sm:$0xff] %vm2269, %v2504
  %2524 = vst.msk [vmem:[#allocation2 + $0xd0] sm:$0xff] %vm2269, %v2506
  %2525 = vst.msk [vmem:[#allocation2 + $0xd8] sm:$0xff] %vm2269, %v2508
  %2526 = vst.msk [vmem:[#allocation2 + $0xe0] sm:$0xff] %vm2269, %v2510
  %2527 = vst.msk [vmem:[#allocation2 + $0xe8] sm:$0xff] %vm2269, %v2512
  %2528 = vst.msk [vmem:[#allocation2 + $0xf0] sm:$0xff] %vm2269, %v2514
  %2529 = vst.msk [vmem:[#allocation2 + $0x128] sm:$0xff] %vm2146, %v2101
  %2530 = vst.msk [vmem:[#allocation2 + $0x130] sm:$0xff] %vm2146, %v2102
  %2531 = vst.msk [vmem:[#allocation2 + $0x138] sm:$0xff] %vm2146, %v2103
  %2532 = vst.msk [vmem:[#allocation2 + $0x140] sm:$0xff] %vm2146, %v2104
  %2533 = vst.msk [vmem:[#allocation2 + $0x148] sm:$0xff] %vm2146, %v2105
  %2534 = vst.msk [vmem:[#allocation2 + $0x150] sm:$0xff] %vm2146, %v2106
  %2535 = vst.msk [vmem:[#allocation2 + $0x158] sm:$0xff] %vm2146, %v2107
  %2543 = vrot.lane.b32.xlu0 %v2101, 5
  %v2544 = vpop.permute.xlu0 %2543
  %2545 = vrot.lane.b32.xlu0 %v2102, 5
  %v2546 = vpop.permute.xlu0 %2545
  %2547 = vrot.lane.b32.xlu0 %v2103, 5
  %v2548 = vpop.permute.xlu0 %2547
  %2549 = vrot.lane.b32.xlu0 %v2104, 5
  %v2550 = vpop.permute.xlu0 %2549
  %2551 = vrot.lane.b32.xlu0 %v2105, 5
  %v2552 = vpop.permute.xlu0 %2551
  %2553 = vrot.lane.b32.xlu0 %v2106, 5
  %v2554 = vpop.permute.xlu0 %2553
  %2555 = vrot.lane.b32.xlu0 %v2107, 5
  %v2556 = vpop.permute.xlu0 %2555
  %2564 = vst.msk [vmem:[#allocation2 + $0x120] sm:$0xff] %vm2182, %v2544
  %2565 = vst.msk [vmem:[#allocation2 + $0x128] sm:$0xff] %vm2182, %v2546
  %2566 = vst.msk [vmem:[#allocation2 + $0x130] sm:$0xff] %vm2182, %v2548
  %2567 = vst.msk [vmem:[#allocation2 + $0x138] sm:$0xff] %vm2182, %v2550
  %2568 = vst.msk [vmem:[#allocation2 + $0x140] sm:$0xff] %vm2182, %v2552
  %2569 = vst.msk [vmem:[#allocation2 + $0x148] sm:$0xff] %vm2182, %v2554
  %2570 = vst.msk [vmem:[#allocation2 + $0x150] sm:$0xff] %vm2182, %v2556
  %2571 = vrot.lane.b32.xlu0 %v2101, 10
  %v2572 = vpop.permute.xlu0 %2571
  %2573 = vrot.lane.b32.xlu0 %v2102, 10
  %v2574 = vpop.permute.xlu0 %2573
  %2575 = vrot.lane.b32.xlu0 %v2103, 10
  %v2576 = vpop.permute.xlu0 %2575
  %2577 = vrot.lane.b32.xlu0 %v2104, 10
  %v2578 = vpop.permute.xlu0 %2577
  %2579 = vrot.lane.b32.xlu0 %v2105, 10
  %v2580 = vpop.permute.xlu0 %2579
  %2581 = vrot.lane.b32.xlu0 %v2106, 10
  %v2582 = vpop.permute.xlu0 %2581
  %2583 = vrot.lane.b32.xlu0 %v2107, 10
  %v2584 = vpop.permute.xlu0 %2583
  %2592 = vst.msk [vmem:[#allocation2 + $0x118] sm:$0xff] %vm2211, %v2572
  %2593 = vst.msk [vmem:[#allocation2 + $0x120] sm:$0xff] %vm2211, %v2574
  %2594 = vst.msk [vmem:[#allocation2 + $0x128] sm:$0xff] %vm2211, %v2576
  %2595 = vst.msk [vmem:[#allocation2 + $0x130] sm:$0xff] %vm2211, %v2578
  %2596 = vst.msk [vmem:[#allocation2 + $0x138] sm:$0xff] %vm2211, %v2580
  %2597 = vst.msk [vmem:[#allocation2 + $0x140] sm:$0xff] %vm2211, %v2582
  %2598 = vst.msk [vmem:[#allocation2 + $0x148] sm:$0xff] %vm2211, %v2584
  %2599 = vrot.lane.b32.xlu0 %v2101, 15
  %v2600 = vpop.permute.xlu0 %2599
  %2601 = vrot.lane.b32.xlu0 %v2102, 15
  %v2602 = vpop.permute.xlu0 %2601
  %2603 = vrot.lane.b32.xlu0 %v2103, 15
  %v2604 = vpop.permute.xlu0 %2603
  %2605 = vrot.lane.b32.xlu0 %v2104, 15
  %v2606 = vpop.permute.xlu0 %2605
  %2607 = vrot.lane.b32.xlu0 %v2105, 15
  %v2608 = vpop.permute.xlu0 %2607
  %2609 = vrot.lane.b32.xlu0 %v2106, 15
  %v2610 = vpop.permute.xlu0 %2609
  %2611 = vrot.lane.b32.xlu0 %v2107, 15
  %v2612 = vpop.permute.xlu0 %2611
  %2620 = vst.msk [vmem:[#allocation2 + $0x110] sm:$0xff] %vm2240, %v2600
  %2621 = vst.msk [vmem:[#allocation2 + $0x118] sm:$0xff] %vm2240, %v2602
  %2622 = vst.msk [vmem:[#allocation2 + $0x120] sm:$0xff] %vm2240, %v2604
  %2623 = vst.msk [vmem:[#allocation2 + $0x128] sm:$0xff] %vm2240, %v2606
  %2624 = vst.msk [vmem:[#allocation2 + $0x130] sm:$0xff] %vm2240, %v2608
  %2625 = vst.msk [vmem:[#allocation2 + $0x138] sm:$0xff] %vm2240, %v2610
  %2626 = vst.msk [vmem:[#allocation2 + $0x140] sm:$0xff] %vm2240, %v2612
  %2627 = vrot.lane.b32.xlu0 %v2101, 20
  %v2628 = vpop.permute.xlu0 %2627
  %2629 = vrot.lane.b32.xlu0 %v2102, 20
  %v2630 = vpop.permute.xlu0 %2629
  %2631 = vrot.lane.b32.xlu0 %v2103, 20
  %v2632 = vpop.permute.xlu0 %2631
  %2633 = vrot.lane.b32.xlu0 %v2104, 20
  %v2634 = vpop.permute.xlu0 %2633
  %2635 = vrot.lane.b32.xlu0 %v2105, 20
  %v2636 = vpop.permute.xlu0 %2635
  %2637 = vrot.lane.b32.xlu0 %v2106, 20
  %v2638 = vpop.permute.xlu0 %2637
  %2639 = vrot.lane.b32.xlu0 %v2107, 20
  %v2640 = vpop.permute.xlu0 %2639
  %2648 = vst.msk [vmem:[#allocation2 + $0x108] sm:$0xff] %vm2269, %v2628
  %2649 = vst.msk [vmem:[#allocation2 + $0x110] sm:$0xff] %vm2269, %v2630
  %2650 = vst.msk [vmem:[#allocation2 + $0x118] sm:$0xff] %vm2269, %v2632
  %2651 = vst.msk [vmem:[#allocation2 + $0x120] sm:$0xff] %vm2269, %v2634
  %2652 = vst.msk [vmem:[#allocation2 + $0x128] sm:$0xff] %vm2269, %v2636
  %2653 = vst.msk [vmem:[#allocation2 + $0x130] sm:$0xff] %vm2269, %v2638
  %2654 = vst.msk [vmem:[#allocation2 + $0x138] sm:$0xff] %vm2269, %v2640
  %2655 = vst.msk [vmem:[#allocation2 + $0x170] sm:$0xff] %vm2146, %v2108
  %2656 = vst.msk [vmem:[#allocation2 + $0x178] sm:$0xff] %vm2146, %v2109
  %2657 = vst.msk [vmem:[#allocation2 + $0x180] sm:$0xff] %vm2146, %v2110
  %2658 = vst.msk [vmem:[#allocation2 + $0x188] sm:$0xff] %vm2146, %v2111
  %2659 = vst.msk [vmem:[#allocation2 + $0x190] sm:$0xff] %vm2146, %v2112
  %2660 = vst.msk [vmem:[#allocation2 + $0x198] sm:$0xff] %vm2146, %v2113
  %2661 = vst.msk [vmem:[#allocation2 + $0x1a0] sm:$0xff] %vm2146, %v2114
  %2669 = vrot.lane.b32.xlu0 %v2108, 5
  %v2670 = vpop.permute.xlu0 %2669
  %2671 = vrot.lane.b32.xlu0 %v2109, 5
  %v2672 = vpop.permute.xlu0 %2671
  %2673 = vrot.lane.b32.xlu0 %v2110, 5
  %v2674 = vpop.permute.xlu0 %2673
  %2675 = vrot.lane.b32.xlu0 %v2111, 5
  %v2676 = vpop.permute.xlu0 %2675
  %2677 = vrot.lane.b32.xlu0 %v2112, 5
  %v2678 = vpop.permute.xlu0 %2677
  %2679 = vrot.lane.b32.xlu0 %v2113, 5
  %v2680 = vpop.permute.xlu0 %2679
  %2681 = vrot.lane.b32.xlu0 %v2114, 5
  %v2682 = vpop.permute.xlu0 %2681
  %2690 = vst.msk [vmem:[#allocation2 + $0x168] sm:$0xff] %vm2182, %v2670
  %2691 = vst.msk [vmem:[#allocation2 + $0x170] sm:$0xff] %vm2182, %v2672
  %2692 = vst.msk [vmem:[#allocation2 + $0x178] sm:$0xff] %vm2182, %v2674
  %2693 = vst.msk [vmem:[#allocation2 + $0x180] sm:$0xff] %vm2182, %v2676
  %2694 = vst.msk [vmem:[#allocation2 + $0x188] sm:$0xff] %vm2182, %v2678
  %2695 = vst.msk [vmem:[#allocation2 + $0x190] sm:$0xff] %vm2182, %v2680
  %2696 = vst.msk [vmem:[#allocation2 + $0x198] sm:$0xff] %vm2182, %v2682
  %2697 = vrot.lane.b32.xlu0 %v2108, 10
  %v2698 = vpop.permute.xlu0 %2697
  %2699 = vrot.lane.b32.xlu0 %v2109, 10
  %v2700 = vpop.permute.xlu0 %2699
  %2701 = vrot.lane.b32.xlu0 %v2110, 10
  %v2702 = vpop.permute.xlu0 %2701
  %2703 = vrot.lane.b32.xlu0 %v2111, 10
  %v2704 = vpop.permute.xlu0 %2703
  %2705 = vrot.lane.b32.xlu0 %v2112, 10
  %v2706 = vpop.permute.xlu0 %2705
  %2707 = vrot.lane.b32.xlu0 %v2113, 10
  %v2708 = vpop.permute.xlu0 %2707
  %2709 = vrot.lane.b32.xlu0 %v2114, 10
  %v2710 = vpop.permute.xlu0 %2709
  %2718 = vst.msk [vmem:[#allocation2 + $0x160] sm:$0xff] %vm2211, %v2698
  %2719 = vst.msk [vmem:[#allocation2 + $0x168] sm:$0xff] %vm2211, %v2700
  %2720 = vst.msk [vmem:[#allocation2 + $0x170] sm:$0xff] %vm2211, %v2702
  %2721 = vst.msk [vmem:[#allocation2 + $0x178] sm:$0xff] %vm2211, %v2704
  %2722 = vst.msk [vmem:[#allocation2 + $0x180] sm:$0xff] %vm2211, %v2706
  %2723 = vst.msk [vmem:[#allocation2 + $0x188] sm:$0xff] %vm2211, %v2708
  %2724 = vst.msk [vmem:[#allocation2 + $0x190] sm:$0xff] %vm2211, %v2710
  %2725 = vrot.lane.b32.xlu0 %v2108, 15
  %v2726 = vpop.permute.xlu0 %2725
  %2727 = vrot.lane.b32.xlu0 %v2109, 15
  %v2728 = vpop.permute.xlu0 %2727
  %2729 = vrot.lane.b32.xlu0 %v2110, 15
  %v2730 = vpop.permute.xlu0 %2729
  %2731 = vrot.lane.b32.xlu0 %v2111, 15
  %v2732 = vpop.permute.xlu0 %2731
  %2733 = vrot.lane.b32.xlu0 %v2112, 15
  %v2734 = vpop.permute.xlu0 %2733
  %2735 = vrot.lane.b32.xlu0 %v2113, 15
  %v2736 = vpop.permute.xlu0 %2735
  %2737 = vrot.lane.b32.xlu0 %v2114, 15
  %v2738 = vpop.permute.xlu0 %2737
  %2746 = vst.msk [vmem:[#allocation2 + $0x158] sm:$0xff] %vm2240, %v2726
  %2747 = vst.msk [vmem:[#allocation2 + $0x160] sm:$0xff] %vm2240, %v2728
  %2748 = vst.msk [vmem:[#allocation2 + $0x168] sm:$0xff] %vm2240, %v2730
  %2749 = vst.msk [vmem:[#allocation2 + $0x170] sm:$0xff] %vm2240, %v2732
  %2750 = vst.msk [vmem:[#allocation2 + $0x178] sm:$0xff] %vm2240, %v2734
  %2751 = vst.msk [vmem:[#allocation2 + $0x180] sm:$0xff] %vm2240, %v2736
  %2752 = vst.msk [vmem:[#allocation2 + $0x188] sm:$0xff] %vm2240, %v2738
  %2753 = vrot.lane.b32.xlu0 %v2108, 20
  %v2754 = vpop.permute.xlu0 %2753
  %2755 = vrot.lane.b32.xlu0 %v2109, 20
  %v2756 = vpop.permute.xlu0 %2755
  %2757 = vrot.lane.b32.xlu0 %v2110, 20
  %v2758 = vpop.permute.xlu0 %2757
  %2759 = vrot.lane.b32.xlu0 %v2111, 20
  %v2760 = vpop.permute.xlu0 %2759
  %2761 = vrot.lane.b32.xlu0 %v2112, 20
  %v2762 = vpop.permute.xlu0 %2761
  %2763 = vrot.lane.b32.xlu0 %v2113, 20
  %v2764 = vpop.permute.xlu0 %2763
  %2765 = vrot.lane.b32.xlu0 %v2114, 20
  %v2766 = vpop.permute.xlu0 %2765
  %2774 = vst.msk [vmem:[#allocation2 + $0x150] sm:$0xff] %vm2269, %v2754
  %2775 = vst.msk [vmem:[#allocation2 + $0x158] sm:$0xff] %vm2269, %v2756
  %2776 = vst.msk [vmem:[#allocation2 + $0x160] sm:$0xff] %vm2269, %v2758
  %2777 = vst.msk [vmem:[#allocation2 + $0x168] sm:$0xff] %vm2269, %v2760
  %2778 = vst.msk [vmem:[#allocation2 + $0x170] sm:$0xff] %vm2269, %v2762
  %2779 = vst.msk [vmem:[#allocation2 + $0x178] sm:$0xff] %vm2269, %v2764
  %2780 = vst.msk [vmem:[#allocation2 + $0x180] sm:$0xff] %vm2269, %v2766
  %2781 = vst.msk [vmem:[#allocation2 + $0x1b8] sm:$0xff] %vm2146, %v2115
  %2782 = vst.msk [vmem:[#allocation2 + $0x1c0] sm:$0xff] %vm2146, %v2116
  %2783 = vst.msk [vmem:[#allocation2 + $0x1c8] sm:$0xff] %vm2146, %v2117
  %2784 = vst.msk [vmem:[#allocation2 + $0x1d0] sm:$0xff] %vm2146, %v2118
  %2785 = vst.msk [vmem:[#allocation2 + $0x1d8] sm:$0xff] %vm2146, %v2119
  %2786 = vst.msk [vmem:[#allocation2 + $0x1e0] sm:$0xff] %vm2146, %v2120
  %2787 = vst.msk [vmem:[#allocation2 + $0x1e8] sm:$0xff] %vm2146, %v2121
  %2795 = vrot.lane.b32.xlu0 %v2115, 5
  %v2796 = vpop.permute.xlu0 %2795
  %2797 = vrot.lane.b32.xlu0 %v2116, 5
  %v2798 = vpop.permute.xlu0 %2797
  %2799 = vrot.lane.b32.xlu0 %v2117, 5
  %v2800 = vpop.permute.xlu0 %2799
  %2801 = vrot.lane.b32.xlu0 %v2118, 5
  %v2802 = vpop.permute.xlu0 %2801
  %2803 = vrot.lane.b32.xlu0 %v2119, 5
  %v2804 = vpop.permute.xlu0 %2803
  %2805 = vrot.lane.b32.xlu0 %v2120, 5
  %v2806 = vpop.permute.xlu0 %2805
  %2807 = vrot.lane.b32.xlu0 %v2121, 5
  %v2808 = vpop.permute.xlu0 %2807
  %2816 = vst.msk [vmem:[#allocation2 + $0x1b0] sm:$0xff] %vm2182, %v2796
  %2817 = vst.msk [vmem:[#allocation2 + $0x1b8] sm:$0xff] %vm2182, %v2798
  %2818 = vst.msk [vmem:[#allocation2 + $0x1c0] sm:$0xff] %vm2182, %v2800
  %2819 = vst.msk [vmem:[#allocation2 + $0x1c8] sm:$0xff] %vm2182, %v2802
  %2820 = vst.msk [vmem:[#allocation2 + $0x1d0] sm:$0xff] %vm2182, %v2804
  %2821 = vst.msk [vmem:[#allocation2 + $0x1d8] sm:$0xff] %vm2182, %v2806
  %2822 = vst.msk [vmem:[#allocation2 + $0x1e0] sm:$0xff] %vm2182, %v2808
  %2823 = vrot.lane.b32.xlu0 %v2115, 10
  %v2824 = vpop.permute.xlu0 %2823
  %2825 = vrot.lane.b32.xlu0 %v2116, 10
  %v2826 = vpop.permute.xlu0 %2825
  %2827 = vrot.lane.b32.xlu0 %v2117, 10
  %v2828 = vpop.permute.xlu0 %2827
  %2829 = vrot.lane.b32.xlu0 %v2118, 10
  %v2830 = vpop.permute.xlu0 %2829
  %2831 = vrot.lane.b32.xlu0 %v2119, 10
  %v2832 = vpop.permute.xlu0 %2831
  %2833 = vrot.lane.b32.xlu0 %v2120, 10
  %v2834 = vpop.permute.xlu0 %2833
  %2835 = vrot.lane.b32.xlu0 %v2121, 10
  %v2836 = vpop.permute.xlu0 %2835
  %2844 = vst.msk [vmem:[#allocation2 + $0x1a8] sm:$0xff] %vm2211, %v2824
  %2845 = vst.msk [vmem:[#allocation2 + $0x1b0] sm:$0xff] %vm2211, %v2826
  %2846 = vst.msk [vmem:[#allocation2 + $0x1b8] sm:$0xff] %vm2211, %v2828
  %2847 = vst.msk [vmem:[#allocation2 + $0x1c0] sm:$0xff] %vm2211, %v2830
  %2848 = vst.msk [vmem:[#allocation2 + $0x1c8] sm:$0xff] %vm2211, %v2832
  %2849 = vst.msk [vmem:[#allocation2 + $0x1d0] sm:$0xff] %vm2211, %v2834
  %2850 = vst.msk [vmem:[#allocation2 + $0x1d8] sm:$0xff] %vm2211, %v2836
  %2851 = vrot.lane.b32.xlu0 %v2115, 15
  %v2852 = vpop.permute.xlu0 %2851
  %2853 = vrot.lane.b32.xlu0 %v2116, 15
  %v2854 = vpop.permute.xlu0 %2853
  %2855 = vrot.lane.b32.xlu0 %v2117, 15
  %v2856 = vpop.permute.xlu0 %2855
  %2857 = vrot.lane.b32.xlu0 %v2118, 15
  %v2858 = vpop.permute.xlu0 %2857
  %2859 = vrot.lane.b32.xlu0 %v2119, 15
  %v2860 = vpop.permute.xlu0 %2859
  %2861 = vrot.lane.b32.xlu0 %v2120, 15
  %v2862 = vpop.permute.xlu0 %2861
  %2863 = vrot.lane.b32.xlu0 %v2121, 15
  %v2864 = vpop.permute.xlu0 %2863
  %2872 = vst.msk [vmem:[#allocation2 + $0x1a0] sm:$0xff] %vm2240, %v2852
  %2873 = vst.msk [vmem:[#allocation2 + $0x1a8] sm:$0xff] %vm2240, %v2854
  %2874 = vst.msk [vmem:[#allocation2 + $0x1b0] sm:$0xff] %vm2240, %v2856
  %2875 = vst.msk [vmem:[#allocation2 + $0x1b8] sm:$0xff] %vm2240, %v2858
  %2876 = vst.msk [vmem:[#allocation2 + $0x1c0] sm:$0xff] %vm2240, %v2860
  %2877 = vst.msk [vmem:[#allocation2 + $0x1c8] sm:$0xff] %vm2240, %v2862
  %2878 = vst.msk [vmem:[#allocation2 + $0x1d0] sm:$0xff] %vm2240, %v2864
  %2879 = vrot.lane.b32.xlu0 %v2115, 20
  %v2880 = vpop.permute.xlu0 %2879
  %2881 = vrot.lane.b32.xlu0 %v2116, 20
  %v2882 = vpop.permute.xlu0 %2881
  %2883 = vrot.lane.b32.xlu0 %v2117, 20
  %v2884 = vpop.permute.xlu0 %2883
  %2885 = vrot.lane.b32.xlu0 %v2118, 20
  %v2886 = vpop.permute.xlu0 %2885
  %2887 = vrot.lane.b32.xlu0 %v2119, 20
  %v2888 = vpop.permute.xlu0 %2887
  %2889 = vrot.lane.b32.xlu0 %v2120, 20
  %v2890 = vpop.permute.xlu0 %2889
  %2891 = vrot.lane.b32.xlu0 %v2121, 20
  %v2892 = vpop.permute.xlu0 %2891
  %2900 = vst.msk [vmem:[#allocation2 + $0x198] sm:$0xff] %vm2269, %v2880
  %2901 = vst.msk [vmem:[#allocation2 + $0x1a0] sm:$0xff] %vm2269, %v2882
  %2902 = vst.msk [vmem:[#allocation2 + $0x1a8] sm:$0xff] %vm2269, %v2884
  %2903 = vst.msk [vmem:[#allocation2 + $0x1b0] sm:$0xff] %vm2269, %v2886
  %2904 = vst.msk [vmem:[#allocation2 + $0x1b8] sm:$0xff] %vm2269, %v2888
  %2905 = vst.msk [vmem:[#allocation2 + $0x1c0] sm:$0xff] %vm2269, %v2890
  %2906 = vst.msk [vmem:[#allocation2 + $0x1c8] sm:$0xff] %vm2269, %v2892
  %2907 = vst.msk [vmem:[#allocation2 + $0x200] sm:$0xff] %vm2146, %v2122
  %2908 = vst.msk [vmem:[#allocation2 + $0x208] sm:$0xff] %vm2146, %v2123
  %2909 = vst.msk [vmem:[#allocation2 + $0x210] sm:$0xff] %vm2146, %v2124
  %2910 = vst.msk [vmem:[#allocation2 + $0x218] sm:$0xff] %vm2146, %v2125
  %2911 = vst.msk [vmem:[#allocation2 + $0x220] sm:$0xff] %vm2146, %v2126
  %2912 = vst.msk [vmem:[#allocation2 + $0x228] sm:$0xff] %vm2146, %v2127
  %2913 = vst.msk [vmem:[#allocation2 + $0x230] sm:$0xff] %vm2146, %v2128
  %2921 = vrot.lane.b32.xlu0 %v2122, 5
  %v2922 = vpop.permute.xlu0 %2921
  %2923 = vrot.lane.b32.xlu0 %v2123, 5
  %v2924 = vpop.permute.xlu0 %2923
  %2925 = vrot.lane.b32.xlu0 %v2124, 5
  %v2926 = vpop.permute.xlu0 %2925
  %2927 = vrot.lane.b32.xlu0 %v2125, 5
  %v2928 = vpop.permute.xlu0 %2927
  %2929 = vrot.lane.b32.xlu0 %v2126, 5
  %v2930 = vpop.permute.xlu0 %2929
  %2931 = vrot.lane.b32.xlu0 %v2127, 5
  %v2932 = vpop.permute.xlu0 %2931
  %2933 = vrot.lane.b32.xlu0 %v2128, 5
  %v2934 = vpop.permute.xlu0 %2933
  %2942 = vst.msk [vmem:[#allocation2 + $0x1f8] sm:$0xff] %vm2182, %v2922
  %2943 = vst.msk [vmem:[#allocation2 + $0x200] sm:$0xff] %vm2182, %v2924
  %2944 = vst.msk [vmem:[#allocation2 + $0x208] sm:$0xff] %vm2182, %v2926
  %2945 = vst.msk [vmem:[#allocation2 + $0x210] sm:$0xff] %vm2182, %v2928
  %2946 = vst.msk [vmem:[#allocation2 + $0x218] sm:$0xff] %vm2182, %v2930
  %2947 = vst.msk [vmem:[#allocation2 + $0x220] sm:$0xff] %vm2182, %v2932
  %2948 = vst.msk [vmem:[#allocation2 + $0x228] sm:$0xff] %vm2182, %v2934
  %2949 = vrot.lane.b32.xlu0 %v2122, 10
  %v2950 = vpop.permute.xlu0 %2949
  %2951 = vrot.lane.b32.xlu0 %v2123, 10
  %v2952 = vpop.permute.xlu0 %2951
  %2953 = vrot.lane.b32.xlu0 %v2124, 10
  %v2954 = vpop.permute.xlu0 %2953
  %2955 = vrot.lane.b32.xlu0 %v2125, 10
  %v2956 = vpop.permute.xlu0 %2955
  %2957 = vrot.lane.b32.xlu0 %v2126, 10
  %v2958 = vpop.permute.xlu0 %2957
  %2959 = vrot.lane.b32.xlu0 %v2127, 10
  %v2960 = vpop.permute.xlu0 %2959
  %2961 = vrot.lane.b32.xlu0 %v2128, 10
  %v2962 = vpop.permute.xlu0 %2961
  %2970 = vst.msk [vmem:[#allocation2 + $0x1f0] sm:$0xff] %vm2211, %v2950
  %2971 = vst.msk [vmem:[#allocation2 + $0x1f8] sm:$0xff] %vm2211, %v2952
  %2972 = vst.msk [vmem:[#allocation2 + $0x200] sm:$0xff] %vm2211, %v2954
  %2973 = vst.msk [vmem:[#allocation2 + $0x208] sm:$0xff] %vm2211, %v2956
  %2974 = vst.msk [vmem:[#allocation2 + $0x210] sm:$0xff] %vm2211, %v2958
  %2975 = vst.msk [vmem:[#allocation2 + $0x218] sm:$0xff] %vm2211, %v2960
  %2976 = vst.msk [vmem:[#allocation2 + $0x220] sm:$0xff] %vm2211, %v2962
  %2977 = vrot.lane.b32.xlu0 %v2122, 15
  %v2978 = vpop.permute.xlu0 %2977
  %2979 = vrot.lane.b32.xlu0 %v2123, 15
  %v2980 = vpop.permute.xlu0 %2979
  %2981 = vrot.lane.b32.xlu0 %v2124, 15
  %v2982 = vpop.permute.xlu0 %2981
  %2983 = vrot.lane.b32.xlu0 %v2125, 15
  %v2984 = vpop.permute.xlu0 %2983
  %2985 = vrot.lane.b32.xlu0 %v2126, 15
  %v2986 = vpop.permute.xlu0 %2985
  %2987 = vrot.lane.b32.xlu0 %v2127, 15
  %v2988 = vpop.permute.xlu0 %2987
  %2989 = vrot.lane.b32.xlu0 %v2128, 15
  %v2990 = vpop.permute.xlu0 %2989
  %2998 = vst.msk [vmem:[#allocation2 + $0x1e8] sm:$0xff] %vm2240, %v2978
  %2999 = vst.msk [vmem:[#allocation2 + $0x1f0] sm:$0xff] %vm2240, %v2980
  %3000 = vst.msk [vmem:[#allocation2 + $0x1f8] sm:$0xff] %vm2240, %v2982
  %3001 = vst.msk [vmem:[#allocation2 + $0x200] sm:$0xff] %vm2240, %v2984
  %3002 = vst.msk [vmem:[#allocation2 + $0x208] sm:$0xff] %vm2240, %v2986
  %3003 = vst.msk [vmem:[#allocation2 + $0x210] sm:$0xff] %vm2240, %v2988
  %3004 = vst.msk [vmem:[#allocation2 + $0x218] sm:$0xff] %vm2240, %v2990
  %3005 = vrot.lane.b32.xlu0 %v2122, 20
  %v3006 = vpop.permute.xlu0 %3005
  %3007 = vrot.lane.b32.xlu0 %v2123, 20
  %v3008 = vpop.permute.xlu0 %3007
  %3009 = vrot.lane.b32.xlu0 %v2124, 20
  %v3010 = vpop.permute.xlu0 %3009
  %3011 = vrot.lane.b32.xlu0 %v2125, 20
  %v3012 = vpop.permute.xlu0 %3011
  %3013 = vrot.lane.b32.xlu0 %v2126, 20
  %v3014 = vpop.permute.xlu0 %3013
  %3015 = vrot.lane.b32.xlu0 %v2127, 20
  %v3016 = vpop.permute.xlu0 %3015
  %3017 = vrot.lane.b32.xlu0 %v2128, 20
  %v3018 = vpop.permute.xlu0 %3017
  %3026 = vst.msk [vmem:[#allocation2 + $0x1e0] sm:$0xff] %vm2269, %v3006
  %3027 = vst.msk [vmem:[#allocation2 + $0x1e8] sm:$0xff] %vm2269, %v3008
  %3028 = vst.msk [vmem:[#allocation2 + $0x1f0] sm:$0xff] %vm2269, %v3010
  %3029 = vst.msk [vmem:[#allocation2 + $0x1f8] sm:$0xff] %vm2269, %v3012
  %3030 = vst.msk [vmem:[#allocation2 + $0x200] sm:$0xff] %vm2269, %v3014
  %3031 = vst.msk [vmem:[#allocation2 + $0x208] sm:$0xff] %vm2269, %v3016
  %3032 = vst.msk [vmem:[#allocation2 + $0x210] sm:$0xff] %vm2269, %v3018
  %v3033 = vld [vmem:[#allocation2] sm:$0xff]
  %v3034 = vld [vmem:[#allocation2 + $0x8] sm:$0xff]
  %v3035 = vld [vmem:[#allocation2 + $0x10] sm:$0xff]
  %v3036 = vld [vmem:[#allocation2 + $0x18] sm:$0xff]
  %v3037 = vld [vmem:[#allocation2 + $0x20] sm:$0xff]
  %v3038 = vld [vmem:[#allocation2 + $0x28] sm:$0xff]
  %v3039 = vld [vmem:[#allocation2 + $0x30] sm:$0xff]
  %v3040 = vld [vmem:[#allocation2 + $0x38] sm:$0xff]
  %v3041 = vld [vmem:[#allocation2 + $0x40] sm:$0xff]
  %v3042 = vld [vmem:[#allocation2 + $0x48] sm:$0xff]
  %v3043 = vld [vmem:[#allocation2 + $0x50] sm:$0xff]
  %v3044 = vld [vmem:[#allocation2 + $0x58] sm:$0xff]
  %v3045 = vld [vmem:[#allocation2 + $0x60] sm:$0xff]
  %v3046 = vld [vmem:[#allocation2 + $0x68] sm:$0xff]
  %v3047 = vld [vmem:[#allocation2 + $0x70] sm:$0xff]
  %v3048 = vld [vmem:[#allocation2 + $0x78] sm:$0xff]
  %v3049 = vld [vmem:[#allocation2 + $0x80] sm:$0xff]
  %v3050 = vld [vmem:[#allocation2 + $0x88] sm:$0xff]
  %v3051 = vld [vmem:[#allocation2 + $0x90] sm:$0xff]
  %v3052 = vld [vmem:[#allocation2 + $0x98] sm:$0xff]
  %v3053 = vld [vmem:[#allocation2 + $0xa0] sm:$0xff]
  %v3054 = vld [vmem:[#allocation2 + $0xa8] sm:$0xff]
  %v3055 = vld [vmem:[#allocation2 + $0xb0] sm:$0xff]
  %v3056 = vld [vmem:[#allocation2 + $0xb8] sm:$0xff]
  %v3057 = vld [vmem:[#allocation2 + $0xc0] sm:$0xff]
  %v3058 = vld [vmem:[#allocation2 + $0xc8] sm:$0xff]
  %v3059 = vld [vmem:[#allocation2 + $0xd0] sm:$0xff]
  %v3060 = vld [vmem:[#allocation2 + $0xd8] sm:$0xff]
  %v3061 = vld [vmem:[#allocation2 + $0xe0] sm:$0xff]
  %v3062 = vld [vmem:[#allocation2 + $0xe8] sm:$0xff]
  %v3063 = vld [vmem:[#allocation2 + $0xf0] sm:$0xff]
  %v3064 = vld [vmem:[#allocation2 + $0xf8] sm:$0xff]
  %v3065 = vld [vmem:[#allocation2 + $0x100] sm:$0xff]
  %v3066 = vld [vmem:[#allocation2 + $0x108] sm:$0xff]
  %v3067 = vld [vmem:[#allocation2 + $0x110] sm:$0xff]
  %v3068 = vld [vmem:[#allocation2 + $0x118] sm:$0xff]
  %v3069 = vpack.c.bf16 %v3034, %v3033
  %v3070 = vpack.c.bf16 %v3036, %v3035
  %v3071 = vpack.c.bf16 %v3038, %v3037
  %v3072 = vpack.c.bf16 %v3040, %v3039
  %v3073 = vpack.c.bf16 %v3042, %v3041
  %v3074 = vpack.c.bf16 %v3044, %v3043
  %v3075 = vpack.c.bf16 %v3046, %v3045
  %v3076 = vpack.c.bf16 %v3048, %v3047
  %v3077 = vpack.c.bf16 %v3050, %v3049
  %v3078 = vpack.c.bf16 %v3052, %v3051
  %v3079 = vpack.c.bf16 %v3054, %v3053
  %v3080 = vpack.c.bf16 %v3056, %v3055
  %v3081 = vpack.c.bf16 %v3058, %v3057
  %v3082 = vpack.c.bf16 %v3060, %v3059
  %v3083 = vpack.c.bf16 %v3062, %v3061
  %v3084 = vpack.c.bf16 %v3064, %v3063
  %v3085 = vpack.c.bf16 %v3066, %v3065
  %v3086 = vpack.c.bf16 %v3068, %v3067
  %v3087 = vld [vmem:[%s3] sm:$0xf]
  %v3088 = vld [vmem:[%s3 + $0x4] sm:$0xf]
  %v3089 = vld [vmem:[%s3 + $0x8] sm:$0xf]
  %v3090 = vld [vmem:[%s3 + $0xc] sm:$0x1]
  %v3091 = vld [vmem:[#allocation2 + $0x120] sm:$0xff]
  %v3092 = vld [vmem:[#allocation2 + $0x128] sm:$0xff]
  %v3093 = vld [vmem:[#allocation2 + $0x130] sm:$0xff]
  %v3094 = vld [vmem:[#allocation2 + $0x138] sm:$0xff]
  %v3095 = vld [vmem:[#allocation2 + $0x140] sm:$0xff]
  %v3096 = vld [vmem:[#allocation2 + $0x148] sm:$0xff]
  %v3097 = vld [vmem:[#allocation2 + $0x150] sm:$0xff]
  %v3098 = vld [vmem:[#allocation2 + $0x158] sm:$0xff]
  %v3099 = vld [vmem:[#allocation2 + $0x160] sm:$0xff]
  %v3100 = vpack.c.bf16 %v3043, %v3042
  %v3101 = vpack.c.bf16 %v3045, %v3044
  %v3102 = vpack.c.bf16 %v3047, %v3046
  %v3103 = vpack.c.bf16 %v3049, %v3048
  %v3104 = vpack.c.bf16 %v3051, %v3050
  %v3105 = vpack.c.bf16 %v3053, %v3052
  %v3106 = vpack.c.bf16 %v3055, %v3054
  %v3107 = vpack.c.bf16 %v3057, %v3056
  %v3108 = vpack.c.bf16 %v3059, %v3058
  %v3109 = vpack.c.bf16 %v3061, %v3060
  %v3110 = vpack.c.bf16 %v3063, %v3062
  %v3111 = vpack.c.bf16 %v3065, %v3064
  %v3112 = vpack.c.bf16 %v3067, %v3066
  %v3113 = vpack.c.bf16 %v3091, %v3068
  %v3114 = vpack.c.bf16 %v3093, %v3092
  %v3115 = vpack.c.bf16 %v3095, %v3094
  %v3116 = vpack.c.bf16 %v3097, %v3096
  %v3117 = vpack.c.bf16 %v3099, %v3098
  %s3118 = scalar_lea.vmem %s3, 16
  %v3119 = vld [vmem:[%s3118] sm:$0xf]
  %v3120 = vld [vmem:[%s3118 + $0x4] sm:$0xf]
  %v3121 = vld [vmem:[%s3118 + $0x8] sm:$0xf]
  %v3122 = vld [vmem:[%s3118 + $0xc] sm:$0x1]
  %v3127 = vunpack.c.l.b16 %v3119
  %v3128 = vunpack.c.l.b16 %v3120
  %v3129 = vunpack.c.l.b16 %v3121
  %v3130 = vunpack.c.l.b16 %v3122
  %v3131 = vpack.c.b16 %v3128, %v3127
  %v3132 = vpack.c.b16 %v3130, %v3129
  %v3135 = vsel %vm2129, %v3100, 0
  %v3138 = vsel %vm2129, %v3101, 0
  %v3141 = vsel %vm2129, %v3102, 0
  %v3144 = vsel %vm2129, %v3103, 0
  %v3147 = vsel %vm2129, %v3104, 0
  %v3150 = vsel %vm2129, %v3105, 0
  %v3153 = vsel %vm2129, %v3106, 0
  %v3156 = vsel %vm2129, %v3107, 0
  %v3159 = vsel %vm2129, %v3108, 0
  %v3162 = vsel %vm2129, %v3109, 0
  %v3165 = vsel %vm2129, %v3110, 0
  %v3168 = vsel %vm2129, %v3111, 0
  %v3171 = vsel %vm2129, %v3112, 0
  %v3174 = vsel %vm2129, %v3113, 0
  %v3177 = vsel %vm2129, %v3114, 0
  %v3180 = vsel %vm2129, %v3115, 0
  %v3183 = vsel %vm2129, %v3116, 0
  %v3186 = vsel %vm2129, %v3117, 0
  %vm3188 = vcmask 1043456
  %v3189 = vsel %vm3188, 4294967295, 65535
  %v3190 = vsel %vm1053, %v3189, 0
  %v3192 = vand.u32 %v3132, %v3190
  %3194 = vmatprep.subr.bf16.mxu0 0
  %3195 = vmatpush1.bf16.msra.mxu0 0
  %3196 = vmatprep.subr.bf16.mxu0 0
  %3197 = vmatpush1.bf16.msra.mxu0 0
  %3198 = vmatprep.subr.bf16.mxu0 0
  %3199 = vmatpush1.bf16.msra.mxu0 0
  %3200 = vmatprep.subr.bf16.mxu0 0
  %3201 = vmatpush1.bf16.msra.mxu0 0
  %3202 = vmatprep.subr.bf16.mxu0 0
  %3203 = vmatpush1.bf16.msra.mxu0 0
  %3204 = vmatprep.subr.bf16.mxu0 0
  %3205 = vmatpush1.bf16.msra.mxu0 0
  %3206 = vmatprep.subr.bf16.mxu0 0
  %3207 = vmatpush1.bf16.msra.mxu0 %v3192
  %3208 = vmatprep.subr.bf16.mxu0 0
  %3209 = vmatpush1.bf16.msra.mxu0 %v3131
  %3210 = vmatprep.subr.bf16.mxu0 0
  %3211 = vmatpush2.bf16.msra.mxu0 0
  %3212 = vmatprep.subr.bf16.mxu0 0
  %3213 = vmatpush2.bf16.msra.mxu0 0
  %3214 = vmatprep.subr.bf16.mxu0 0
  %3215 = vmatpush2.bf16.msra.mxu0 0
  %3216 = vmatprep.subr.bf16.mxu0 0
  %3217 = vmatpush2.bf16.msra.mxu0 0
  %3218 = vmatprep.subr.bf16.mxu0 0
  %3219 = vmatpush2.bf16.msra.mxu0 0
  %3220 = vmatprep.subr.bf16.mxu0 0
  %3221 = vmatpush2.bf16.msra.mxu0 0
  %3222 = vmatprep.subr.bf16.mxu0 0
  %3223 = vmatpush2.bf16.msra.mxu0 0
  %3224 = vmatprep.subr.bf16.mxu0 0
  %3225 = vmatpush2.bf16.msra.mxu0 0
  %3226 = vmatprep.mubr.bf16.mxu0 0
  %3227 = vmatmul.mubr.bf16.gmra.mxu0 %v3135
  %v3228 = vpop.f32.mrf.mxu0
  %v3229 = vadd.f32 0.0, %v3228
  %v3230 = vpop.f32.mrf.mxu0
  %v3231 = vpop.f32.mrf.mxu0
  %v3232 = vadd.f32 0.0, %v3231
  %v3233 = vpop.f32.mrf.mxu0
  %3234 = vmatprep.mubr.bf16.mxu0 0
  %3235 = vmatmul.mubr.bf16.gmra.mxu0 %v3138
  %v3236 = vpop.f32.mrf.mxu0
  %v3237 = vadd.f32 0.0, %v3236
  %v3238 = vpop.f32.mrf.mxu0
  %v3239 = vpop.f32.mrf.mxu0
  %v3240 = vadd.f32 0.0, %v3239
  %v3241 = vpop.f32.mrf.mxu0
  %3242 = vmatprep.mubr.bf16.mxu0 0
  %3243 = vmatmul.mubr.bf16.gmra.mxu0 %v3141
  %v3244 = vpop.f32.mrf.mxu0
  %v3245 = vpop.f32.mrf.mxu0
  %v3246 = vpop.f32.mrf.mxu0
  %v3247 = vpop.f32.mrf.mxu0
  %3248 = vmatprep.mubr.bf16.mxu0 0
  %3249 = vmatmul.mubr.bf16.gmra.mxu0 %v3144
  %v3250 = vpop.f32.mrf.mxu0
  %v3251 = vpop.f32.mrf.mxu0
  %v3252 = vpop.f32.mrf.mxu0
  %v3253 = vpop.f32.mrf.mxu0
  %3254 = vmatprep.mubr.bf16.mxu0 0
  %3255 = vmatmul.mubr.bf16.gmra.mxu0 %v3147
  %v3256 = vpop.f32.mrf.mxu0
  %v3257 = vpop.f32.mrf.mxu0
  %v3258 = vpop.f32.mrf.mxu0
  %v3259 = vadd.f32 0.0, %v3258
  %v3260 = vpop.f32.mrf.mxu0
  %3261 = vmatprep.mubr.bf16.mxu0 0
  %3262 = vmatmul.mubr.bf16.gmra.mxu0 %v3150
  %v3263 = vpop.f32.mrf.mxu0
  %v3264 = vadd.f32 0.0, %v3263
  %v3265 = vpop.f32.mrf.mxu0
  %v3266 = vpop.f32.mrf.mxu0
  %v3267 = vadd.f32 0.0, %v3266
  %v3268 = vpop.f32.mrf.mxu0
  %3269 = vmatprep.mubr.bf16.mxu0 0
  %3270 = vmatmul.mubr.bf16.gmra.mxu0 %v3153
  %v3271 = vpop.f32.mrf.mxu0
  %v3272 = vadd.f32 0.0, %v3271
  %v3273 = vpop.f32.mrf.mxu0
  %v3274 = vpop.f32.mrf.mxu0
  %v3275 = vpop.f32.mrf.mxu0
  %3276 = vmatprep.mubr.bf16.mxu0 0
  %3277 = vmatmul.mubr.bf16.gmra.mxu0 %v3156
  %v3278 = vpop.f32.mrf.mxu0
  %v3279 = vpop.f32.mrf.mxu0
  %v3280 = vpop.f32.mrf.mxu0
  %v3281 = vpop.f32.mrf.mxu0
  %3282 = vmatprep.mubr.bf16.mxu0 0
  %3283 = vmatmul.mubr.bf16.gmra.mxu0 %v3159
  %v3284 = vpop.f32.mrf.mxu0
  %v3285 = vpop.f32.mrf.mxu0
  %v3286 = vpop.f32.mrf.mxu0
  %v3287 = vpop.f32.mrf.mxu0
  %3288 = vmatprep.mubr.bf16.mxu0 0
  %3289 = vmatmul.mubr.bf16.gmra.mxu0 %v3162
  %v3290 = vpop.f32.mrf.mxu0
  %v3291 = vadd.f32 0.0, %v3290
  %v3292 = vpop.f32.mrf.mxu0
  %v3293 = vpop.f32.mrf.mxu0
  %v3294 = vadd.f32 0.0, %v3293
  %v3295 = vpop.f32.mrf.mxu0
  %3296 = vmatprep.mubr.bf16.mxu0 0
  %3297 = vmatmul.mubr.bf16.gmra.mxu0 %v3165
  %v3298 = vpop.f32.mrf.mxu0
  %v3299 = vadd.f32 0.0, %v3298
  %v3300 = vpop.f32.mrf.mxu0
  %v3301 = vpop.f32.mrf.mxu0
  %v3302 = vadd.f32 0.0, %v3301
  %v3303 = vpop.f32.mrf.mxu0
  %3304 = vmatprep.mubr.bf16.mxu0 0
  %3305 = vmatmul.mubr.bf16.gmra.mxu0 %v3168
  %v3306 = vpop.f32.mrf.mxu0
  %v3307 = vpop.f32.mrf.mxu0
  %v3308 = vpop.f32.mrf.mxu0
  %v3309 = vpop.f32.mrf.mxu0
  %3310 = vmatprep.mubr.bf16.mxu0 0
  %3311 = vmatmul.mubr.bf16.gmra.mxu0 %v3171
  %v3312 = vpop.f32.mrf.mxu0
  %v3313 = vpop.f32.mrf.mxu0
  %v3314 = vpop.f32.mrf.mxu0
  %v3315 = vpop.f32.mrf.mxu0
  %3316 = vmatprep.mubr.bf16.mxu0 0
  %3317 = vmatmul.mubr.bf16.gmra.mxu0 %v3174
  %v3318 = vpop.f32.mrf.mxu0
  %v3319 = vpop.f32.mrf.mxu0
  %v3320 = vpop.f32.mrf.mxu0
  %v3321 = vadd.f32 0.0, %v3320
  %v3322 = vpop.f32.mrf.mxu0
  %3323 = vmatprep.mubr.bf16.mxu0 0
  %3324 = vmatmul.mubr.bf16.gmra.mxu0 %v3177
  %v3325 = vpop.f32.mrf.mxu0
  %v3326 = vadd.f32 0.0, %v3325
  %v3327 = vpop.f32.mrf.mxu0
  %v3328 = vpop.f32.mrf.mxu0
  %v3329 = vadd.f32 0.0, %v3328
  %v3330 = vpop.f32.mrf.mxu0
  %3331 = vmatprep.mubr.bf16.mxu0 0
  %3332 = vmatmul.mubr.bf16.gmra.mxu0 %v3180
  %v3333 = vpop.f32.mrf.mxu0
  %v3334 = vadd.f32 0.0, %v3333
  %v3335 = vpop.f32.mrf.mxu0
  %v3336 = vpop.f32.mrf.mxu0
  %v3337 = vpop.f32.mrf.mxu0
  %3338 = vmatprep.mubr.bf16.mxu0 0
  %3339 = vmatmul.mubr.bf16.gmra.mxu0 %v3183
  %v3340 = vpop.f32.mrf.mxu0
  %v3341 = vpop.f32.mrf.mxu0
  %v3342 = vpop.f32.mrf.mxu0
  %v3343 = vpop.f32.mrf.mxu0
  %3344 = vmatprep.mubr.bf16.mxu0 0
  %3345 = vmatmul.mubr.bf16.gmra.mxu0 %v3186
  %v3346 = vpop.f32.mrf.mxu0
  %v3347 = vpop.f32.mrf.mxu0
  %v3348 = vpop.f32.mrf.mxu0
  %v3349 = vpop.f32.mrf.mxu0
  %3350 = vdwg.mxu0
  %v3355 = vunpack.c.l.b16 %v3087
  %v3356 = vunpack.c.l.b16 %v3088
  %v3357 = vunpack.c.l.b16 %v3089
  %v3358 = vunpack.c.l.b16 %v3090
  %v3359 = vpack.c.b16 %v3356, %v3355
  %v3360 = vpack.c.b16 %v3358, %v3357
  %v3363 = vsel %vm2129, %v3069, 0
  %v3366 = vsel %vm2129, %v3070, 0
  %v3369 = vsel %vm2129, %v3071, 0
  %v3372 = vsel %vm2129, %v3072, 0
  %v3375 = vsel %vm2129, %v3073, 0
  %v3378 = vsel %vm2129, %v3074, 0
  %v3381 = vsel %vm2129, %v3075, 0
  %v3384 = vsel %vm2129, %v3076, 0
  %v3387 = vsel %vm2129, %v3077, 0
  %v3390 = vsel %vm2129, %v3078, 0
  %v3393 = vsel %vm2129, %v3079, 0
  %v3396 = vsel %vm2129, %v3080, 0
  %v3399 = vsel %vm2129, %v3081, 0
  %v3402 = vsel %vm2129, %v3082, 0
  %v3405 = vsel %vm2129, %v3083, 0
  %v3408 = vsel %vm2129, %v3084, 0
  %v3411 = vsel %vm2129, %v3085, 0
  %v3414 = vsel %vm2129, %v3086, 0
  %v3417 = vand.u32 %v3360, %v3190
  %3419 = vmatprep.subr.bf16.mxu0 0
  %3420 = vmatpush1.bf16.msra.mxu0 0
  %3421 = vmatprep.subr.bf16.mxu0 0
  %3422 = vmatpush1.bf16.msra.mxu0 0
  %3423 = vmatprep.subr.bf16.mxu0 0
  %3424 = vmatpush1.bf16.msra.mxu0 0
  %3425 = vmatprep.subr.bf16.mxu0 0
  %3426 = vmatpush1.bf16.msra.mxu0 0
  %3427 = vmatprep.subr.bf16.mxu0 0
  %3428 = vmatpush1.bf16.msra.mxu0 0
  %3429 = vmatprep.subr.bf16.mxu0 0
  %3430 = vmatpush1.bf16.msra.mxu0 0
  %3431 = vmatprep.subr.bf16.mxu0 0
  %3432 = vmatpush1.bf16.msra.mxu0 %v3417
  %3433 = vmatprep.subr.bf16.mxu0 0
  %3434 = vmatpush1.bf16.msra.mxu0 %v3359
  %3435 = vmatprep.subr.bf16.mxu0 0
  %3436 = vmatpush2.bf16.msra.mxu0 0
  %3437 = vmatprep.subr.bf16.mxu0 0
  %3438 = vmatpush2.bf16.msra.mxu0 0
  %3439 = vmatprep.subr.bf16.mxu0 0
  %3440 = vmatpush2.bf16.msra.mxu0 0
  %3441 = vmatprep.subr.bf16.mxu0 0
  %3442 = vmatpush2.bf16.msra.mxu0 0
  %3443 = vmatprep.subr.bf16.mxu0 0
  %3444 = vmatpush2.bf16.msra.mxu0 0
  %3445 = vmatprep.subr.bf16.mxu0 0
  %3446 = vmatpush2.bf16.msra.mxu0 0
  %3447 = vmatprep.subr.bf16.mxu0 0
  %3448 = vmatpush2.bf16.msra.mxu0 0
  %3449 = vmatprep.subr.bf16.mxu0 0
  %3450 = vmatpush2.bf16.msra.mxu0 0
  %3451 = vmatprep.mubr.bf16.mxu0 0
  %3452 = vmatmul.mubr.bf16.gmra.mxu0 %v3363
  %v3453 = vpop.f32.mrf.mxu0
  %v3454 = vadd.f32 %v3229, %v3453
  %v3455 = vpop.f32.mrf.mxu0
  %v3456 = vpop.f32.mrf.mxu0
  %v3457 = vadd.f32 %v3232, %v3456
  %v3458 = vpop.f32.mrf.mxu0
  %3459 = vmatprep.mubr.bf16.mxu0 0
  %3460 = vmatmul.mubr.bf16.gmra.mxu0 %v3366
  %v3461 = vpop.f32.mrf.mxu0
  %v3462 = vadd.f32 %v3237, %v3461
  %v3463 = vpop.f32.mrf.mxu0
  %v3464 = vpop.f32.mrf.mxu0
  %v3465 = vadd.f32 %v3240, %v3464
  %v3466 = vpop.f32.mrf.mxu0
  %3467 = vmatprep.mubr.bf16.mxu0 0
  %3468 = vmatmul.mubr.bf16.gmra.mxu0 %v3369
  %v3469 = vpop.f32.mrf.mxu0
  %v3470 = vpop.f32.mrf.mxu0
  %v3471 = vpop.f32.mrf.mxu0
  %v3472 = vpop.f32.mrf.mxu0
  %3473 = vmatprep.mubr.bf16.mxu0 0
  %3474 = vmatmul.mubr.bf16.gmra.mxu0 %v3372
  %v3475 = vpop.f32.mrf.mxu0
  %v3476 = vpop.f32.mrf.mxu0
  %v3477 = vpop.f32.mrf.mxu0
  %v3478 = vpop.f32.mrf.mxu0
  %3479 = vmatprep.mubr.bf16.mxu0 0
  %3480 = vmatmul.mubr.bf16.gmra.mxu0 %v3375
  %v3481 = vpop.f32.mrf.mxu0
  %v3482 = vpop.f32.mrf.mxu0
  %v3483 = vpop.f32.mrf.mxu0
  %v3484 = vadd.f32 %v3259, %v3483
  %v3485 = vpop.f32.mrf.mxu0
  %3486 = vmatprep.mubr.bf16.mxu0 0
  %3487 = vmatmul.mubr.bf16.gmra.mxu0 %v3378
  %v3488 = vpop.f32.mrf.mxu0
  %v3489 = vadd.f32 %v3264, %v3488
  %v3490 = vpop.f32.mrf.mxu0
  %v3491 = vpop.f32.mrf.mxu0
  %v3492 = vadd.f32 %v3267, %v3491
  %v3493 = vpop.f32.mrf.mxu0
  %3494 = vmatprep.mubr.bf16.mxu0 0
  %3495 = vmatmul.mubr.bf16.gmra.mxu0 %v3381
  %v3496 = vpop.f32.mrf.mxu0
  %v3497 = vadd.f32 %v3272, %v3496
  %v3498 = vpop.f32.mrf.mxu0
  %v3499 = vpop.f32.mrf.mxu0
  %v3500 = vpop.f32.mrf.mxu0
  %3501 = vmatprep.mubr.bf16.mxu0 0
  %3502 = vmatmul.mubr.bf16.gmra.mxu0 %v3384
  %v3503 = vpop.f32.mrf.mxu0
  %v3504 = vpop.f32.mrf.mxu0
  %v3505 = vpop.f32.mrf.mxu0
  %v3506 = vpop.f32.mrf.mxu0
  %3507 = vmatprep.mubr.bf16.mxu0 0
  %3508 = vmatmul.mubr.bf16.gmra.mxu0 %v3387
  %v3509 = vpop.f32.mrf.mxu0
  %v3510 = vpop.f32.mrf.mxu0
  %v3511 = vpop.f32.mrf.mxu0
  %v3512 = vpop.f32.mrf.mxu0
  %3513 = vmatprep.mubr.bf16.mxu0 0
  %3514 = vmatmul.mubr.bf16.gmra.mxu0 %v3390
  %v3515 = vpop.f32.mrf.mxu0
  %v3516 = vadd.f32 %v3291, %v3515
  %v3517 = vpop.f32.mrf.mxu0
  %v3518 = vpop.f32.mrf.mxu0
  %v3519 = vadd.f32 %v3294, %v3518
  %v3520 = vpop.f32.mrf.mxu0
  %3521 = vmatprep.mubr.bf16.mxu0 0
  %3522 = vmatmul.mubr.bf16.gmra.mxu0 %v3393
  %v3523 = vpop.f32.mrf.mxu0
  %v3524 = vadd.f32 %v3299, %v3523
  %v3525 = vpop.f32.mrf.mxu0
  %v3526 = vpop.f32.mrf.mxu0
  %v3527 = vadd.f32 %v3302, %v3526
  %v3528 = vpop.f32.mrf.mxu0
  %3529 = vmatprep.mubr.bf16.mxu0 0
  %3530 = vmatmul.mubr.bf16.gmra.mxu0 %v3396
  %v3531 = vpop.f32.mrf.mxu0
  %v3532 = vpop.f32.mrf.mxu0
  %v3533 = vpop.f32.mrf.mxu0
  %v3534 = vpop.f32.mrf.mxu0
  %3535 = vmatprep.mubr.bf16.mxu0 0
  %3536 = vmatmul.mubr.bf16.gmra.mxu0 %v3399
  %v3537 = vpop.f32.mrf.mxu0
  %v3538 = vpop.f32.mrf.mxu0
  %v3539 = vpop.f32.mrf.mxu0
  %v3540 = vpop.f32.mrf.mxu0
  %3541 = vmatprep.mubr.bf16.mxu0 0
  %3542 = vmatmul.mubr.bf16.gmra.mxu0 %v3402
  %v3543 = vpop.f32.mrf.mxu0
  %v3544 = vpop.f32.mrf.mxu0
  %v3545 = vpop.f32.mrf.mxu0
  %v3546 = vadd.f32 %v3321, %v3545
  %v3547 = vpop.f32.mrf.mxu0
  %3548 = vmatprep.mubr.bf16.mxu0 0
  %3549 = vmatmul.mubr.bf16.gmra.mxu0 %v3405
  %v3550 = vpop.f32.mrf.mxu0
  %v3551 = vadd.f32 %v3326, %v3550
  %v3552 = vpop.f32.mrf.mxu0
  %v3553 = vpop.f32.mrf.mxu0
  %v3554 = vadd.f32 %v3329, %v3553
  %v3555 = vpop.f32.mrf.mxu0
  %3556 = vmatprep.mubr.bf16.mxu0 0
  %3557 = vmatmul.mubr.bf16.gmra.mxu0 %v3408
  %v3558 = vpop.f32.mrf.mxu0
  %v3559 = vadd.f32 %v3334, %v3558
  %v3560 = vpop.f32.mrf.mxu0
  %v3561 = vpop.f32.mrf.mxu0
  %v3562 = vpop.f32.mrf.mxu0
  %3563 = vmatprep.mubr.bf16.mxu0 0
  %3564 = vmatmul.mubr.bf16.gmra.mxu0 %v3411
  %v3565 = vpop.f32.mrf.mxu0
  %v3566 = vpop.f32.mrf.mxu0
  %v3567 = vpop.f32.mrf.mxu0
  %v3568 = vpop.f32.mrf.mxu0
  %3569 = vmatprep.mubr.bf16.mxu0 0
  %3570 = vmatmul.mubr.bf16.gmra.mxu0 %v3414
  %v3571 = vpop.f32.mrf.mxu0
  %v3572 = vpop.f32.mrf.mxu0
  %v3573 = vpop.f32.mrf.mxu0
  %v3574 = vpop.f32.mrf.mxu0
  %3575 = vdwg.mxu0
  %v3576 = vld [vmem:[#allocation2 + $0x90] sm:$0xff]
  %v3577 = vld [vmem:[#allocation2 + $0x98] sm:$0xff]
  %v3578 = vld [vmem:[#allocation2 + $0xa0] sm:$0xff]
  %v3579 = vld [vmem:[#allocation2 + $0xa8] sm:$0xff]
  %v3580 = vld [vmem:[#allocation2 + $0xb0] sm:$0xff]
  %v3581 = vld [vmem:[#allocation2 + $0xb8] sm:$0xff]
  %v3582 = vld [vmem:[#allocation2 + $0xc0] sm:$0xff]
  %v3583 = vld [vmem:[#allocation2 + $0xc8] sm:$0xff]
  %v3584 = vld [vmem:[#allocation2 + $0xd0] sm:$0xff]
  %v3585 = vld [vmem:[#allocation2 + $0xd8] sm:$0xff]
  %v3586 = vld [vmem:[#allocation2 + $0xe0] sm:$0xff]
  %v3587 = vld [vmem:[#allocation2 + $0xe8] sm:$0xff]
  %v3588 = vld [vmem:[#allocation2 + $0xf0] sm:$0xff]
  %v3589 = vld [vmem:[#allocation2 + $0xf8] sm:$0xff]
  %v3590 = vld [vmem:[#allocation2 + $0x100] sm:$0xff]
  %v3591 = vld [vmem:[#allocation2 + $0x108] sm:$0xff]
  %v3592 = vld [vmem:[#allocation2 + $0x110] sm:$0xff]
  %v3593 = vld [vmem:[#allocation2 + $0x118] sm:$0xff]
  %v3594 = vld [vmem:[#allocation2 + $0x120] sm:$0xff]
  %v3595 = vld [vmem:[#allocation2 + $0x128] sm:$0xff]
  %v3596 = vld [vmem:[#allocation2 + $0x130] sm:$0xff]
  %v3597 = vld [vmem:[#allocation2 + $0x138] sm:$0xff]
  %v3598 = vld [vmem:[#allocation2 + $0x140] sm:$0xff]
  %v3599 = vld [vmem:[#allocation2 + $0x148] sm:$0xff]
  %v3600 = vld [vmem:[#allocation2 + $0x150] sm:$0xff]
  %v3601 = vld [vmem:[#allocation2 + $0x158] sm:$0xff]
  %v3602 = vld [vmem:[#allocation2 + $0x160] sm:$0xff]
  %v3603 = vld [vmem:[#allocation2 + $0x168] sm:$0xff]
  %v3604 = vld [vmem:[#allocation2 + $0x170] sm:$0xff]
  %v3605 = vld [vmem:[#allocation2 + $0x178] sm:$0xff]
  %v3606 = vld [vmem:[#allocation2 + $0x180] sm:$0xff]
  %v3607 = vld [vmem:[#allocation2 + $0x188] sm:$0xff]
  %v3608 = vld [vmem:[#allocation2 + $0x190] sm:$0xff]
  %v3609 = vld [vmem:[#allocation2 + $0x198] sm:$0xff]
  %v3610 = vld [vmem:[#allocation2 + $0x1a0] sm:$0xff]
  %v3611 = vld [vmem:[#allocation2 + $0x1a8] sm:$0xff]
  %v3612 = vpack.c.bf16 %v3577, %v3576
  %v3613 = vpack.c.bf16 %v3579, %v3578
  %v3614 = vpack.c.bf16 %v3581, %v3580
  %v3615 = vpack.c.bf16 %v3583, %v3582
  %v3616 = vpack.c.bf16 %v3585, %v3584
  %v3617 = vpack.c.bf16 %v3587, %v3586
  %v3618 = vpack.c.bf16 %v3589, %v3588
  %v3619 = vpack.c.bf16 %v3591, %v3590
  %v3620 = vpack.c.bf16 %v3593, %v3592
  %v3621 = vpack.c.bf16 %v3595, %v3594
  %v3622 = vpack.c.bf16 %v3597, %v3596
  %v3623 = vpack.c.bf16 %v3599, %v3598
  %v3624 = vpack.c.bf16 %v3601, %v3600
  %v3625 = vpack.c.bf16 %v3603, %v3602
  %v3626 = vpack.c.bf16 %v3605, %v3604
  %v3627 = vpack.c.bf16 %v3607, %v3606
  %v3628 = vpack.c.bf16 %v3609, %v3608
  %v3629 = vpack.c.bf16 %v3611, %v3610
  %s3630 = scalar_lea.vmem %s3, 32
  %v3631 = vld [vmem:[%s3630] sm:$0xf]
  %v3632 = vld [vmem:[%s3630 + $0x4] sm:$0xf]
  %v3633 = vld [vmem:[%s3630 + $0x8] sm:$0xf]
  %v3634 = vld [vmem:[%s3630 + $0xc] sm:$0x1]
  %v3639 = vunpack.c.l.b16 %v3631
  %v3640 = vunpack.c.l.b16 %v3632
  %v3641 = vunpack.c.l.b16 %v3633
  %v3642 = vunpack.c.l.b16 %v3634
  %v3643 = vpack.c.b16 %v3640, %v3639
  %v3644 = vpack.c.b16 %v3642, %v3641
  %v3647 = vsel %vm2129, %v3612, 0
  %v3650 = vsel %vm2129, %v3613, 0
  %v3653 = vsel %vm2129, %v3614, 0
  %v3656 = vsel %vm2129, %v3615, 0
  %v3659 = vsel %vm2129, %v3616, 0
  %v3662 = vsel %vm2129, %v3617, 0
  %v3665 = vsel %vm2129, %v3618, 0
  %v3668 = vsel %vm2129, %v3619, 0
  %v3671 = vsel %vm2129, %v3620, 0
  %v3674 = vsel %vm2129, %v3621, 0
  %v3677 = vsel %vm2129, %v3622, 0
  %v3680 = vsel %vm2129, %v3623, 0
  %v3683 = vsel %vm2129, %v3624, 0
  %v3686 = vsel %vm2129, %v3625, 0
  %v3689 = vsel %vm2129, %v3626, 0
  %v3692 = vsel %vm2129, %v3627, 0
  %v3695 = vsel %vm2129, %v3628, 0
  %v3698 = vsel %vm2129, %v3629, 0
  %v3701 = vand.u32 %v3644, %v3190
  %3703 = vmatprep.subr.bf16.mxu0 0
  %3704 = vmatpush1.bf16.msra.mxu0 0
  %3705 = vmatprep.subr.bf16.mxu0 0
  %3706 = vmatpush1.bf16.msra.mxu0 0
  %3707 = vmatprep.subr.bf16.mxu0 0
  %3708 = vmatpush1.bf16.msra.mxu0 0
  %3709 = vmatprep.subr.bf16.mxu0 0
  %3710 = vmatpush1.bf16.msra.mxu0 0
  %3711 = vmatprep.subr.bf16.mxu0 0
  %3712 = vmatpush1.bf16.msra.mxu0 0
  %3713 = vmatprep.subr.bf16.mxu0 0
  %3714 = vmatpush1.bf16.msra.mxu0 0
  %3715 = vmatprep.subr.bf16.mxu0 0
  %3716 = vmatpush1.bf16.msra.mxu0 %v3701
  %3717 = vmatprep.subr.bf16.mxu0 0
  %3718 = vmatpush1.bf16.msra.mxu0 %v3643
  %3719 = vmatprep.subr.bf16.mxu0 0
  %3720 = vmatpush2.bf16.msra.mxu0 0
  %3721 = vmatprep.subr.bf16.mxu0 0
  %3722 = vmatpush2.bf16.msra.mxu0 0
  %3723 = vmatprep.subr.bf16.mxu0 0
  %3724 = vmatpush2.bf16.msra.mxu0 0
  %3725 = vmatprep.subr.bf16.mxu0 0
  %3726 = vmatpush2.bf16.msra.mxu0 0
  %3727 = vmatprep.subr.bf16.mxu0 0
  %3728 = vmatpush2.bf16.msra.mxu0 0
  %3729 = vmatprep.subr.bf16.mxu0 0
  %3730 = vmatpush2.bf16.msra.mxu0 0
  %3731 = vmatprep.subr.bf16.mxu0 0
  %3732 = vmatpush2.bf16.msra.mxu0 0
  %3733 = vmatprep.subr.bf16.mxu0 0
  %3734 = vmatpush2.bf16.msra.mxu0 0
  %3735 = vmatprep.mubr.bf16.mxu0 0
  %3736 = vmatmul.mubr.bf16.gmra.mxu0 %v3647
  %v3737 = vpop.f32.mrf.mxu0
  %v3738 = vadd.f32 0.0, %v3737
  %v3739 = vpop.f32.mrf.mxu0
  %v3740 = vpop.f32.mrf.mxu0
  %v3741 = vadd.f32 0.0, %v3740
  %v3742 = vpop.f32.mrf.mxu0
  %3743 = vmatprep.mubr.bf16.mxu0 0
  %3744 = vmatmul.mubr.bf16.gmra.mxu0 %v3650
  %v3745 = vpop.f32.mrf.mxu0
  %v3746 = vadd.f32 0.0, %v3745
  %v3747 = vpop.f32.mrf.mxu0
  %v3748 = vpop.f32.mrf.mxu0
  %v3749 = vadd.f32 0.0, %v3748
  %v3750 = vpop.f32.mrf.mxu0
  %3751 = vmatprep.mubr.bf16.mxu0 0
  %3752 = vmatmul.mubr.bf16.gmra.mxu0 %v3653
  %v3753 = vpop.f32.mrf.mxu0
  %v3754 = vpop.f32.mrf.mxu0
  %v3755 = vpop.f32.mrf.mxu0
  %v3756 = vpop.f32.mrf.mxu0
  %3757 = vmatprep.mubr.bf16.mxu0 0
  %3758 = vmatmul.mubr.bf16.gmra.mxu0 %v3656
  %v3759 = vpop.f32.mrf.mxu0
  %v3760 = vpop.f32.mrf.mxu0
  %v3761 = vpop.f32.mrf.mxu0
  %v3762 = vpop.f32.mrf.mxu0
  %3763 = vmatprep.mubr.bf16.mxu0 0
  %3764 = vmatmul.mubr.bf16.gmra.mxu0 %v3659
  %v3765 = vpop.f32.mrf.mxu0
  %v3766 = vpop.f32.mrf.mxu0
  %v3767 = vpop.f32.mrf.mxu0
  %v3768 = vadd.f32 0.0, %v3767
  %v3769 = vpop.f32.mrf.mxu0
  %3770 = vmatprep.mubr.bf16.mxu0 0
  %3771 = vmatmul.mubr.bf16.gmra.mxu0 %v3662
  %v3772 = vpop.f32.mrf.mxu0
  %v3773 = vadd.f32 0.0, %v3772
  %v3774 = vpop.f32.mrf.mxu0
  %v3775 = vpop.f32.mrf.mxu0
  %v3776 = vadd.f32 0.0, %v3775
  %v3777 = vpop.f32.mrf.mxu0
  %3778 = vmatprep.mubr.bf16.mxu0 0
  %3779 = vmatmul.mubr.bf16.gmra.mxu0 %v3665
  %v3780 = vpop.f32.mrf.mxu0
  %v3781 = vadd.f32 0.0, %v3780
  %v3782 = vpop.f32.mrf.mxu0
  %v3783 = vpop.f32.mrf.mxu0
  %v3784 = vpop.f32.mrf.mxu0
  %3785 = vmatprep.mubr.bf16.mxu0 0
  %3786 = vmatmul.mubr.bf16.gmra.mxu0 %v3668
  %v3787 = vpop.f32.mrf.mxu0
  %v3788 = vpop.f32.mrf.mxu0
  %v3789 = vpop.f32.mrf.mxu0
  %v3790 = vpop.f32.mrf.mxu0
  %3791 = vmatprep.mubr.bf16.mxu0 0
  %3792 = vmatmul.mubr.bf16.gmra.mxu0 %v3671
  %v3793 = vpop.f32.mrf.mxu0
  %v3794 = vpop.f32.mrf.mxu0
  %v3795 = vpop.f32.mrf.mxu0
  %v3796 = vpop.f32.mrf.mxu0
  %3797 = vmatprep.mubr.bf16.mxu0 0
  %3798 = vmatmul.mubr.bf16.gmra.mxu0 %v3674
  %v3799 = vpop.f32.mrf.mxu0
  %v3800 = vadd.f32 0.0, %v3799
  %v3801 = vpop.f32.mrf.mxu0
  %v3802 = vpop.f32.mrf.mxu0
  %v3803 = vadd.f32 0.0, %v3802
  %v3804 = vpop.f32.mrf.mxu0
  %3805 = vmatprep.mubr.bf16.mxu0 0
  %3806 = vmatmul.mubr.bf16.gmra.mxu0 %v3677
  %v3807 = vpop.f32.mrf.mxu0
  %v3808 = vadd.f32 0.0, %v3807
  %v3809 = vpop.f32.mrf.mxu0
  %v3810 = vpop.f32.mrf.mxu0
  %v3811 = vadd.f32 0.0, %v3810
  %v3812 = vpop.f32.mrf.mxu0
  %3813 = vmatprep.mubr.bf16.mxu0 0
  %3814 = vmatmul.mubr.bf16.gmra.mxu0 %v3680
  %v3815 = vpop.f32.mrf.mxu0
  %v3816 = vpop.f32.mrf.mxu0
  %v3817 = vpop.f32.mrf.mxu0
  %v3818 = vpop.f32.mrf.mxu0
  %3819 = vmatprep.mubr.bf16.mxu0 0
  %3820 = vmatmul.mubr.bf16.gmra.mxu0 %v3683
  %v3821 = vpop.f32.mrf.mxu0
  %v3822 = vpop.f32.mrf.mxu0
  %v3823 = vpop.f32.mrf.mxu0
  %v3824 = vpop.f32.mrf.mxu0
  %3825 = vmatprep.mubr.bf16.mxu0 0
  %3826 = vmatmul.mubr.bf16.gmra.mxu0 %v3686
  %v3827 = vpop.f32.mrf.mxu0
  %v3828 = vpop.f32.mrf.mxu0
  %v3829 = vpop.f32.mrf.mxu0
  %v3830 = vadd.f32 0.0, %v3829
  %v3831 = vpop.f32.mrf.mxu0
  %3832 = vmatprep.mubr.bf16.mxu0 0
  %3833 = vmatmul.mubr.bf16.gmra.mxu0 %v3689
  %v3834 = vpop.f32.mrf.mxu0
  %v3835 = vadd.f32 0.0, %v3834
  %v3836 = vpop.f32.mrf.mxu0
  %v3837 = vpop.f32.mrf.mxu0
  %v3838 = vadd.f32 0.0, %v3837
  %v3839 = vpop.f32.mrf.mxu0
  %3840 = vmatprep.mubr.bf16.mxu0 0
  %3841 = vmatmul.mubr.bf16.gmra.mxu0 %v3692
  %v3842 = vpop.f32.mrf.mxu0
  %v3843 = vadd.f32 0.0, %v3842
  %v3844 = vpop.f32.mrf.mxu0
  %v3845 = vpop.f32.mrf.mxu0
  %v3846 = vpop.f32.mrf.mxu0
  %3847 = vmatprep.mubr.bf16.mxu0 0
  %3848 = vmatmul.mubr.bf16.gmra.mxu0 %v3695
  %v3849 = vpop.f32.mrf.mxu0
  %v3850 = vpop.f32.mrf.mxu0
  %v3851 = vpop.f32.mrf.mxu0
  %v3852 = vpop.f32.mrf.mxu0
  %3853 = vmatprep.mubr.bf16.mxu0 0
  %3854 = vmatmul.mubr.bf16.gmra.mxu0 %v3698
  %v3855 = vpop.f32.mrf.mxu0
  %v3856 = vpop.f32.mrf.mxu0
  %v3857 = vpop.f32.mrf.mxu0
  %v3858 = vpop.f32.mrf.mxu0
  %3859 = vdwg.mxu0
  %v3860 = vadd.f32 %v3454, %v3738
  %v3861 = vadd.f32 %v3457, %v3741
  %v3862 = vadd.f32 %v3462, %v3746
  %v3863 = vadd.f32 %v3465, %v3749
  %v3864 = vadd.f32 %v3484, %v3768
  %v3865 = vadd.f32 %v3489, %v3773
  %v3866 = vadd.f32 %v3492, %v3776
  %v3867 = vadd.f32 %v3497, %v3781
  %v3868 = vadd.f32 %v3516, %v3800
  %v3869 = vadd.f32 %v3519, %v3803
  %v3870 = vadd.f32 %v3524, %v3808
  %v3871 = vadd.f32 %v3527, %v3811
  %v3872 = vadd.f32 %v3546, %v3830
  %v3873 = vadd.f32 %v3551, %v3835
  %v3874 = vadd.f32 %v3554, %v3838
  %v3875 = vadd.f32 %v3559, %v3843
  %v3876 = vld [vmem:[#allocation2 + $0xd8] sm:$0xff]
  %v3877 = vld [vmem:[#allocation2 + $0xe0] sm:$0xff]
  %v3878 = vld [vmem:[#allocation2 + $0xe8] sm:$0xff]
  %v3879 = vld [vmem:[#allocation2 + $0xf0] sm:$0xff]
  %v3880 = vld [vmem:[#allocation2 + $0xf8] sm:$0xff]
  %v3881 = vld [vmem:[#allocation2 + $0x100] sm:$0xff]
  %v3882 = vld [vmem:[#allocation2 + $0x108] sm:$0xff]
  %v3883 = vld [vmem:[#allocation2 + $0x110] sm:$0xff]
  %v3884 = vld [vmem:[#allocation2 + $0x118] sm:$0xff]
  %v3885 = vld [vmem:[#allocation2 + $0x120] sm:$0xff]
  %v3886 = vld [vmem:[#allocation2 + $0x128] sm:$0xff]
  %v3887 = vld [vmem:[#allocation2 + $0x130] sm:$0xff]
  %v3888 = vld [vmem:[#allocation2 + $0x138] sm:$0xff]
  %v3889 = vld [vmem:[#allocation2 + $0x140] sm:$0xff]
  %v3890 = vld [vmem:[#allocation2 + $0x148] sm:$0xff]
  %v3891 = vld [vmem:[#allocation2 + $0x150] sm:$0xff]
  %v3892 = vld [vmem:[#allocation2 + $0x158] sm:$0xff]
  %v3893 = vld [vmem:[#allocation2 + $0x160] sm:$0xff]
  %v3894 = vld [vmem:[#allocation2 + $0x168] sm:$0xff]
  %v3895 = vld [vmem:[#allocation2 + $0x170] sm:$0xff]
  %v3896 = vld [vmem:[#allocation2 + $0x178] sm:$0xff]
  %v3897 = vld [vmem:[#allocation2 + $0x180] sm:$0xff]
  %v3898 = vld [vmem:[#allocation2 + $0x188] sm:$0xff]
  %v3899 = vld [vmem:[#allocation2 + $0x190] sm:$0xff]
  %v3900 = vld [vmem:[#allocation2 + $0x198] sm:$0xff]
  %v3901 = vld [vmem:[#allocation2 + $0x1a0] sm:$0xff]
  %v3902 = vld [vmem:[#allocation2 + $0x1a8] sm:$0xff]
  %v3903 = vld [vmem:[#allocation2 + $0x1b0] sm:$0xff]
  %v3904 = vld [vmem:[#allocation2 + $0x1b8] sm:$0xff]
  %v3905 = vld [vmem:[#allocation2 + $0x1c0] sm:$0xff]
  %v3906 = vld [vmem:[#allocation2 + $0x1c8] sm:$0xff]
  %v3907 = vld [vmem:[#allocation2 + $0x1d0] sm:$0xff]
  %v3908 = vld [vmem:[#allocation2 + $0x1d8] sm:$0xff]
  %v3909 = vld [vmem:[#allocation2 + $0x1e0] sm:$0xff]
  %v3910 = vld [vmem:[#allocation2 + $0x1e8] sm:$0xff]
  %v3911 = vld [vmem:[#allocation2 + $0x1f0] sm:$0xff]
  %v3912 = vpack.c.bf16 %v3877, %v3876
  %v3913 = vpack.c.bf16 %v3879, %v3878
  %v3914 = vpack.c.bf16 %v3881, %v3880
  %v3915 = vpack.c.bf16 %v3883, %v3882
  %v3916 = vpack.c.bf16 %v3885, %v3884
  %v3917 = vpack.c.bf16 %v3887, %v3886
  %v3918 = vpack.c.bf16 %v3889, %v3888
  %v3919 = vpack.c.bf16 %v3891, %v3890
  %v3920 = vpack.c.bf16 %v3893, %v3892
  %v3921 = vpack.c.bf16 %v3895, %v3894
  %v3922 = vpack.c.bf16 %v3897, %v3896
  %v3923 = vpack.c.bf16 %v3899, %v3898
  %v3924 = vpack.c.bf16 %v3901, %v3900
  %v3925 = vpack.c.bf16 %v3903, %v3902
  %v3926 = vpack.c.bf16 %v3905, %v3904
  %v3927 = vpack.c.bf16 %v3907, %v3906
  %v3928 = vpack.c.bf16 %v3909, %v3908
  %v3929 = vpack.c.bf16 %v3911, %v3910
  %s3930 = scalar_lea.vmem %s3, 48
  %v3931 = vld [vmem:[%s3930] sm:$0xf]
  %v3932 = vld [vmem:[%s3930 + $0x4] sm:$0xf]
  %v3933 = vld [vmem:[%s3930 + $0x8] sm:$0xf]
  %v3934 = vld [vmem:[%s3930 + $0xc] sm:$0x1]
  %v3939 = vunpack.c.l.b16 %v3931
  %v3940 = vunpack.c.l.b16 %v3932
  %v3941 = vunpack.c.l.b16 %v3933
  %v3942 = vunpack.c.l.b16 %v3934
  %v3943 = vpack.c.b16 %v3940, %v3939
  %v3944 = vpack.c.b16 %v3942, %v3941
  %v3947 = vsel %vm2129, %v3912, 0
  %v3950 = vsel %vm2129, %v3913, 0
  %v3953 = vsel %vm2129, %v3914, 0
  %v3956 = vsel %vm2129, %v3915, 0
  %v3959 = vsel %vm2129, %v3916, 0
  %v3962 = vsel %vm2129, %v3917, 0
  %v3965 = vsel %vm2129, %v3918, 0
  %v3968 = vsel %vm2129, %v3919, 0
  %v3971 = vsel %vm2129, %v3920, 0
  %v3974 = vsel %vm2129, %v3921, 0
  %v3977 = vsel %vm2129, %v3922, 0
  %v3980 = vsel %vm2129, %v3923, 0
  %v3983 = vsel %vm2129, %v3924, 0
  %v3986 = vsel %vm2129, %v3925, 0
  %v3989 = vsel %vm2129, %v3926, 0
  %v3992 = vsel %vm2129, %v3927, 0
  %v3995 = vsel %vm2129, %v3928, 0
  %v3998 = vsel %vm2129, %v3929, 0
  %v4001 = vand.u32 %v3944, %v3190
  %4003 = vmatprep.subr.bf16.mxu0 0
  %4004 = vmatpush1.bf16.msra.mxu0 0
  %4005 = vmatprep.subr.bf16.mxu0 0
  %4006 = vmatpush1.bf16.msra.mxu0 0
  %4007 = vmatprep.subr.bf16.mxu0 0
  %4008 = vmatpush1.bf16.msra.mxu0 0
  %4009 = vmatprep.subr.bf16.mxu0 0
  %4010 = vmatpush1.bf16.msra.mxu0 0
  %4011 = vmatprep.subr.bf16.mxu0 0
  %4012 = vmatpush1.bf16.msra.mxu0 0
  %4013 = vmatprep.subr.bf16.mxu0 0
  %4014 = vmatpush1.bf16.msra.mxu0 0
  %4015 = vmatprep.subr.bf16.mxu0 0
  %4016 = vmatpush1.bf16.msra.mxu0 %v4001
  %4017 = vmatprep.subr.bf16.mxu0 0
  %4018 = vmatpush1.bf16.msra.mxu0 %v3943
  %4019 = vmatprep.subr.bf16.mxu0 0
  %4020 = vmatpush2.bf16.msra.mxu0 0
  %4021 = vmatprep.subr.bf16.mxu0 0
  %4022 = vmatpush2.bf16.msra.mxu0 0
  %4023 = vmatprep.subr.bf16.mxu0 0
  %4024 = vmatpush2.bf16.msra.mxu0 0
  %4025 = vmatprep.subr.bf16.mxu0 0
  %4026 = vmatpush2.bf16.msra.mxu0 0
  %4027 = vmatprep.subr.bf16.mxu0 0
  %4028 = vmatpush2.bf16.msra.mxu0 0
  %4029 = vmatprep.subr.bf16.mxu0 0
  %4030 = vmatpush2.bf16.msra.mxu0 0
  %4031 = vmatprep.subr.bf16.mxu0 0
  %4032 = vmatpush2.bf16.msra.mxu0 0
  %4033 = vmatprep.subr.bf16.mxu0 0
  %4034 = vmatpush2.bf16.msra.mxu0 0
  %4035 = vmatprep.mubr.bf16.mxu0 0
  %4036 = vmatmul.mubr.bf16.gmra.mxu0 %v3947
  %v4037 = vpop.f32.mrf.mxu0
  %v4038 = vadd.f32 0.0, %v4037
  %v4039 = vpop.f32.mrf.mxu0
  %v4040 = vpop.f32.mrf.mxu0
  %v4041 = vadd.f32 0.0, %v4040
  %v4042 = vpop.f32.mrf.mxu0
  %4043 = vmatprep.mubr.bf16.mxu0 0
  %4044 = vmatmul.mubr.bf16.gmra.mxu0 %v3950
  %v4045 = vpop.f32.mrf.mxu0
  %v4046 = vadd.f32 0.0, %v4045
  %v4047 = vpop.f32.mrf.mxu0
  %v4048 = vpop.f32.mrf.mxu0
  %v4049 = vadd.f32 0.0, %v4048
  %v4050 = vpop.f32.mrf.mxu0
  %4051 = vmatprep.mubr.bf16.mxu0 0
  %4052 = vmatmul.mubr.bf16.gmra.mxu0 %v3953
  %v4053 = vpop.f32.mrf.mxu0
  %v4054 = vpop.f32.mrf.mxu0
  %v4055 = vpop.f32.mrf.mxu0
  %v4056 = vpop.f32.mrf.mxu0
  %4057 = vmatprep.mubr.bf16.mxu0 0
  %4058 = vmatmul.mubr.bf16.gmra.mxu0 %v3956
  %v4059 = vpop.f32.mrf.mxu0
  %v4060 = vpop.f32.mrf.mxu0
  %v4061 = vpop.f32.mrf.mxu0
  %v4062 = vpop.f32.mrf.mxu0
  %4063 = vmatprep.mubr.bf16.mxu0 0
  %4064 = vmatmul.mubr.bf16.gmra.mxu0 %v3959
  %v4065 = vpop.f32.mrf.mxu0
  %v4066 = vpop.f32.mrf.mxu0
  %v4067 = vpop.f32.mrf.mxu0
  %v4068 = vadd.f32 0.0, %v4067
  %v4069 = vpop.f32.mrf.mxu0
  %4070 = vmatprep.mubr.bf16.mxu0 0
  %4071 = vmatmul.mubr.bf16.gmra.mxu0 %v3962
  %v4072 = vpop.f32.mrf.mxu0
  %v4073 = vadd.f32 0.0, %v4072
  %v4074 = vpop.f32.mrf.mxu0
  %v4075 = vpop.f32.mrf.mxu0
  %v4076 = vadd.f32 0.0, %v4075
  %v4077 = vpop.f32.mrf.mxu0
  %4078 = vmatprep.mubr.bf16.mxu0 0
  %4079 = vmatmul.mubr.bf16.gmra.mxu0 %v3965
  %v4080 = vpop.f32.mrf.mxu0
  %v4081 = vadd.f32 0.0, %v4080
  %v4082 = vpop.f32.mrf.mxu0
  %v4083 = vpop.f32.mrf.mxu0
  %v4084 = vpop.f32.mrf.mxu0
  %4085 = vmatprep.mubr.bf16.mxu0 0
  %4086 = vmatmul.mubr.bf16.gmra.mxu0 %v3968
  %v4087 = vpop.f32.mrf.mxu0
  %v4088 = vpop.f32.mrf.mxu0
  %v4089 = vpop.f32.mrf.mxu0
  %v4090 = vpop.f32.mrf.mxu0
  %4091 = vmatprep.mubr.bf16.mxu0 0
  %4092 = vmatmul.mubr.bf16.gmra.mxu0 %v3971
  %v4093 = vpop.f32.mrf.mxu0
  %v4094 = vpop.f32.mrf.mxu0
  %v4095 = vpop.f32.mrf.mxu0
  %v4096 = vpop.f32.mrf.mxu0
  %4097 = vmatprep.mubr.bf16.mxu0 0
  %4098 = vmatmul.mubr.bf16.gmra.mxu0 %v3974
  %v4099 = vpop.f32.mrf.mxu0
  %v4100 = vadd.f32 0.0, %v4099
  %v4101 = vpop.f32.mrf.mxu0
  %v4102 = vpop.f32.mrf.mxu0
  %v4103 = vadd.f32 0.0, %v4102
  %v4104 = vpop.f32.mrf.mxu0
  %4105 = vmatprep.mubr.bf16.mxu0 0
  %4106 = vmatmul.mubr.bf16.gmra.mxu0 %v3977
  %v4107 = vpop.f32.mrf.mxu0
  %v4108 = vadd.f32 0.0, %v4107
  %v4109 = vpop.f32.mrf.mxu0
  %v4110 = vpop.f32.mrf.mxu0
  %v4111 = vadd.f32 0.0, %v4110
  %v4112 = vpop.f32.mrf.mxu0
  %4113 = vmatprep.mubr.bf16.mxu0 0
  %4114 = vmatmul.mubr.bf16.gmra.mxu0 %v3980
  %v4115 = vpop.f32.mrf.mxu0
  %v4116 = vpop.f32.mrf.mxu0
  %v4117 = vpop.f32.mrf.mxu0
  %v4118 = vpop.f32.mrf.mxu0
  %4119 = vmatprep.mubr.bf16.mxu0 0
  %4120 = vmatmul.mubr.bf16.gmra.mxu0 %v3983
  %v4121 = vpop.f32.mrf.mxu0
  %v4122 = vpop.f32.mrf.mxu0
  %v4123 = vpop.f32.mrf.mxu0
  %v4124 = vpop.f32.mrf.mxu0
  %4125 = vmatprep.mubr.bf16.mxu0 0
  %4126 = vmatmul.mubr.bf16.gmra.mxu0 %v3986
  %v4127 = vpop.f32.mrf.mxu0
  %v4128 = vpop.f32.mrf.mxu0
  %v4129 = vpop.f32.mrf.mxu0
  %v4130 = vadd.f32 0.0, %v4129
  %v4131 = vpop.f32.mrf.mxu0
  %4132 = vmatprep.mubr.bf16.mxu0 0
  %4133 = vmatmul.mubr.bf16.gmra.mxu0 %v3989
  %v4134 = vpop.f32.mrf.mxu0
  %v4135 = vadd.f32 0.0, %v4134
  %v4136 = vpop.f32.mrf.mxu0
  %v4137 = vpop.f32.mrf.mxu0
  %v4138 = vadd.f32 0.0, %v4137
  %v4139 = vpop.f32.mrf.mxu0
  %4140 = vmatprep.mubr.bf16.mxu0 0
  %4141 = vmatmul.mubr.bf16.gmra.mxu0 %v3992
  %v4142 = vpop.f32.mrf.mxu0
  %v4143 = vadd.f32 0.0, %v4142
  %v4144 = vpop.f32.mrf.mxu0
  %v4145 = vpop.f32.mrf.mxu0
  %v4146 = vpop.f32.mrf.mxu0
  %4147 = vmatprep.mubr.bf16.mxu0 0
  %4148 = vmatmul.mubr.bf16.gmra.mxu0 %v3995
  %v4149 = vpop.f32.mrf.mxu0
  %v4150 = vpop.f32.mrf.mxu0
  %v4151 = vpop.f32.mrf.mxu0
  %v4152 = vpop.f32.mrf.mxu0
  %4153 = vmatprep.mubr.bf16.mxu0 0
  %4154 = vmatmul.mubr.bf16.gmra.mxu0 %v3998
  %v4155 = vpop.f32.mrf.mxu0
  %v4156 = vpop.f32.mrf.mxu0
  %v4157 = vpop.f32.mrf.mxu0
  %v4158 = vpop.f32.mrf.mxu0
  %4159 = vdwg.mxu0
  %v4160 = vadd.f32 %v3860, %v4038
  %v4161 = vadd.f32 %v3861, %v4041
  %v4162 = vadd.f32 %v3862, %v4046
  %v4163 = vadd.f32 %v3863, %v4049
  %v4164 = vadd.f32 %v3864, %v4068
  %v4165 = vadd.f32 %v3865, %v4073
  %v4166 = vadd.f32 %v3866, %v4076
  %v4167 = vadd.f32 %v3867, %v4081
  %v4168 = vadd.f32 %v3868, %v4100
  %v4169 = vadd.f32 %v3869, %v4103
  %v4170 = vadd.f32 %v3870, %v4108
  %v4171 = vadd.f32 %v3871, %v4111
  %v4172 = vadd.f32 %v3872, %v4130
  %v4173 = vadd.f32 %v3873, %v4135
  %v4174 = vadd.f32 %v3874, %v4138
  %v4175 = vadd.f32 %v3875, %v4143
  %v4176 = vld [vmem:[#allocation2 + $0x120] sm:$0xff]
  %v4177 = vld [vmem:[#allocation2 + $0x128] sm:$0xff]
  %v4178 = vld [vmem:[#allocation2 + $0x130] sm:$0xff]
  %v4179 = vld [vmem:[#allocation2 + $0x138] sm:$0xff]
  %v4180 = vld [vmem:[#allocation2 + $0x140] sm:$0xff]
  %v4181 = vld [vmem:[#allocation2 + $0x148] sm:$0xff]
  %v4182 = vld [vmem:[#allocation2 + $0x150] sm:$0xff]
  %v4183 = vld [vmem:[#allocation2 + $0x158] sm:$0xff]
  %v4184 = vld [vmem:[#allocation2 + $0x160] sm:$0xff]
  %v4185 = vld [vmem:[#allocation2 + $0x168] sm:$0xff]
  %v4186 = vld [vmem:[#allocation2 + $0x170] sm:$0xff]
  %v4187 = vld [vmem:[#allocation2 + $0x178] sm:$0xff]
  %v4188 = vld [vmem:[#allocation2 + $0x180] sm:$0xff]
  %v4189 = vld [vmem:[#allocation2 + $0x188] sm:$0xff]
  %v4190 = vld [vmem:[#allocation2 + $0x190] sm:$0xff]
  %v4191 = vld [vmem:[#allocation2 + $0x198] sm:$0xff]
  %v4192 = vld [vmem:[#allocation2 + $0x1a0] sm:$0xff]
  %v4193 = vld [vmem:[#allocation2 + $0x1a8] sm:$0xff]
  %v4194 = vld [vmem:[#allocation2 + $0x1b0] sm:$0xff]
  %v4195 = vld [vmem:[#allocation2 + $0x1b8] sm:$0xff]
  %v4196 = vld [vmem:[#allocation2 + $0x1c0] sm:$0xff]
  %v4197 = vld [vmem:[#allocation2 + $0x1c8] sm:$0xff]
  %v4198 = vld [vmem:[#allocation2 + $0x1d0] sm:$0xff]
  %v4199 = vld [vmem:[#allocation2 + $0x1d8] sm:$0xff]
  %v4200 = vld [vmem:[#allocation2 + $0x1e0] sm:$0xff]
  %v4201 = vld [vmem:[#allocation2 + $0x1e8] sm:$0xff]
  %v4202 = vld [vmem:[#allocation2 + $0x1f0] sm:$0xff]
  %v4203 = vld [vmem:[#allocation2 + $0x1f8] sm:$0xff]
  %v4204 = vld [vmem:[#allocation2 + $0x200] sm:$0xff]
  %v4205 = vld [vmem:[#allocation2 + $0x208] sm:$0xff]
  %v4206 = vld [vmem:[#allocation2 + $0x210] sm:$0xff]
  %v4207 = vld [vmem:[#allocation2 + $0x218] sm:$0xff]
  %v4208 = vld [vmem:[#allocation2 + $0x220] sm:$0xff]
  %v4209 = vld [vmem:[#allocation2 + $0x228] sm:$0xff]
  %v4210 = vld [vmem:[#allocation2 + $0x230] sm:$0xff]
  %v4211 = vld [vmem:[#allocation2 + $0x238] sm:$0xff]
  %v4212 = vpack.c.bf16 %v4177, %v4176
  %v4213 = vpack.c.bf16 %v4179, %v4178
  %v4214 = vpack.c.bf16 %v4181, %v4180
  %v4215 = vpack.c.bf16 %v4183, %v4182
  %v4216 = vpack.c.bf16 %v4185, %v4184
  %v4217 = vpack.c.bf16 %v4187, %v4186
  %v4218 = vpack.c.bf16 %v4189, %v4188
  %v4219 = vpack.c.bf16 %v4191, %v4190
  %v4220 = vpack.c.bf16 %v4193, %v4192
  %v4221 = vpack.c.bf16 %v4195, %v4194
  %v4222 = vpack.c.bf16 %v4197, %v4196
  %v4223 = vpack.c.bf16 %v4199, %v4198
  %v4224 = vpack.c.bf16 %v4201, %v4200
  %v4225 = vpack.c.bf16 %v4203, %v4202
  %v4226 = vpack.c.bf16 %v4205, %v4204
  %v4227 = vpack.c.bf16 %v4207, %v4206
  %v4228 = vpack.c.bf16 %v4209, %v4208
  %v4229 = vpack.c.bf16 %v4211, %v4210
  %s4230 = scalar_lea.vmem %s3, 64
  %v4231 = vld [vmem:[%s4230] sm:$0xf]
  %v4232 = vld [vmem:[%s4230 + $0x4] sm:$0xf]
  %v4233 = vld [vmem:[%s4230 + $0x8] sm:$0xf]
  %v4234 = vld [vmem:[%s4230 + $0xc] sm:$0x1]
  %v4239 = vunpack.c.l.b16 %v4231
  %v4240 = vunpack.c.l.b16 %v4232
  %v4241 = vunpack.c.l.b16 %v4233
  %v4242 = vunpack.c.l.b16 %v4234
  %v4243 = vpack.c.b16 %v4240, %v4239
  %v4244 = vpack.c.b16 %v4242, %v4241
  %v4247 = vsel %vm2129, %v4212, 0
  %v4250 = vsel %vm2129, %v4213, 0
  %v4253 = vsel %vm2129, %v4214, 0
  %v4256 = vsel %vm2129, %v4215, 0
  %v4259 = vsel %vm2129, %v4216, 0
  %v4262 = vsel %vm2129, %v4217, 0
  %v4265 = vsel %vm2129, %v4218, 0
  %v4268 = vsel %vm2129, %v4219, 0
  %v4271 = vsel %vm2129, %v4220, 0
  %v4274 = vsel %vm2129, %v4221, 0
  %v4277 = vsel %vm2129, %v4222, 0
  %v4280 = vsel %vm2129, %v4223, 0
  %v4283 = vsel %vm2129, %v4224, 0
  %v4286 = vsel %vm2129, %v4225, 0
  %v4289 = vsel %vm2129, %v4226, 0
  %v4292 = vsel %vm2129, %v4227, 0
  %v4295 = vsel %vm2129, %v4228, 0
  %v4298 = vsel %vm2129, %v4229, 0
  %v4301 = vand.u32 %v4244, %v3190
  %4303 = vmatprep.subr.bf16.mxu0 0
  %4304 = vmatpush1.bf16.msra.mxu0 0
  %4305 = vmatprep.subr.bf16.mxu0 0
  %4306 = vmatpush1.bf16.msra.mxu0 0
  %4307 = vmatprep.subr.bf16.mxu0 0
  %4308 = vmatpush1.bf16.msra.mxu0 0
  %4309 = vmatprep.subr.bf16.mxu0 0
  %4310 = vmatpush1.bf16.msra.mxu0 0
  %4311 = vmatprep.subr.bf16.mxu0 0
  %4312 = vmatpush1.bf16.msra.mxu0 0
  %4313 = vmatprep.subr.bf16.mxu0 0
  %4314 = vmatpush1.bf16.msra.mxu0 0
  %4315 = vmatprep.subr.bf16.mxu0 0
  %4316 = vmatpush1.bf16.msra.mxu0 %v4301
  %4317 = vmatprep.subr.bf16.mxu0 0
  %4318 = vmatpush1.bf16.msra.mxu0 %v4243
  %4319 = vmatprep.subr.bf16.mxu0 0
  %4320 = vmatpush2.bf16.msra.mxu0 0
  %4321 = vmatprep.subr.bf16.mxu0 0
  %4322 = vmatpush2.bf16.msra.mxu0 0
  %4323 = vmatprep.subr.bf16.mxu0 0
  %4324 = vmatpush2.bf16.msra.mxu0 0
  %4325 = vmatprep.subr.bf16.mxu0 0
  %4326 = vmatpush2.bf16.msra.mxu0 0
  %4327 = vmatprep.subr.bf16.mxu0 0
  %4328 = vmatpush2.bf16.msra.mxu0 0
  %4329 = vmatprep.subr.bf16.mxu0 0
  %4330 = vmatpush2.bf16.msra.mxu0 0
  %4331 = vmatprep.subr.bf16.mxu0 0
  %4332 = vmatpush2.bf16.msra.mxu0 0
  %4333 = vmatprep.subr.bf16.mxu0 0
  %4334 = vmatpush2.bf16.msra.mxu0 0
  %4335 = vmatprep.mubr.bf16.mxu0 0
  %4336 = vmatmul.mubr.bf16.gmra.mxu0 %v4247
  %v4337 = vpop.f32.mrf.mxu0
  %v4338 = vadd.f32 0.0, %v4337
  %v4339 = vpop.f32.mrf.mxu0
  %v4340 = vpop.f32.mrf.mxu0
  %v4341 = vadd.f32 0.0, %v4340
  %v4342 = vpop.f32.mrf.mxu0
  %4343 = vmatprep.mubr.bf16.mxu0 0
  %4344 = vmatmul.mubr.bf16.gmra.mxu0 %v4250
  %v4345 = vpop.f32.mrf.mxu0
  %v4346 = vadd.f32 0.0, %v4345
  %v4347 = vpop.f32.mrf.mxu0
  %v4348 = vpop.f32.mrf.mxu0
  %v4349 = vadd.f32 0.0, %v4348
  %v4350 = vpop.f32.mrf.mxu0
  %4351 = vmatprep.mubr.bf16.mxu0 0
  %4352 = vmatmul.mubr.bf16.gmra.mxu0 %v4253
  %v4353 = vpop.f32.mrf.mxu0
  %v4354 = vpop.f32.mrf.mxu0
  %v4355 = vpop.f32.mrf.mxu0
  %v4356 = vpop.f32.mrf.mxu0
  %4357 = vmatprep.mubr.bf16.mxu0 0
  %4358 = vmatmul.mubr.bf16.gmra.mxu0 %v4256
  %v4359 = vpop.f32.mrf.mxu0
  %v4360 = vpop.f32.mrf.mxu0
  %v4361 = vpop.f32.mrf.mxu0
  %v4362 = vpop.f32.mrf.mxu0
  %4363 = vmatprep.mubr.bf16.mxu0 0
  %4364 = vmatmul.mubr.bf16.gmra.mxu0 %v4259
  %v4365 = vpop.f32.mrf.mxu0
  %v4366 = vpop.f32.mrf.mxu0
  %v4367 = vpop.f32.mrf.mxu0
  %v4368 = vadd.f32 0.0, %v4367
  %v4369 = vpop.f32.mrf.mxu0
  %4370 = vmatprep.mubr.bf16.mxu0 0
  %4371 = vmatmul.mubr.bf16.gmra.mxu0 %v4262
  %v4372 = vpop.f32.mrf.mxu0
  %v4373 = vadd.f32 0.0, %v4372
  %v4374 = vpop.f32.mrf.mxu0
  %v4375 = vpop.f32.mrf.mxu0
  %v4376 = vadd.f32 0.0, %v4375
  %v4377 = vpop.f32.mrf.mxu0
  %4378 = vmatprep.mubr.bf16.mxu0 0
  %4379 = vmatmul.mubr.bf16.gmra.mxu0 %v4265
  %v4380 = vpop.f32.mrf.mxu0
  %v4381 = vadd.f32 0.0, %v4380
  %v4382 = vpop.f32.mrf.mxu0
  %v4383 = vpop.f32.mrf.mxu0
  %v4384 = vpop.f32.mrf.mxu0
  %4385 = vmatprep.mubr.bf16.mxu0 0
  %4386 = vmatmul.mubr.bf16.gmra.mxu0 %v4268
  %v4387 = vpop.f32.mrf.mxu0
  %v4388 = vpop.f32.mrf.mxu0
  %v4389 = vpop.f32.mrf.mxu0
  %v4390 = vpop.f32.mrf.mxu0
  %4391 = vmatprep.mubr.bf16.mxu0 0
  %4392 = vmatmul.mubr.bf16.gmra.mxu0 %v4271
  %v4393 = vpop.f32.mrf.mxu0
  %v4394 = vpop.f32.mrf.mxu0
  %v4395 = vpop.f32.mrf.mxu0
  %v4396 = vpop.f32.mrf.mxu0
  %4397 = vmatprep.mubr.bf16.mxu0 0
  %4398 = vmatmul.mubr.bf16.gmra.mxu0 %v4274
  %v4399 = vpop.f32.mrf.mxu0
  %v4400 = vadd.f32 0.0, %v4399
  %v4401 = vpop.f32.mrf.mxu0
  %v4402 = vpop.f32.mrf.mxu0
  %v4403 = vadd.f32 0.0, %v4402
  %v4404 = vpop.f32.mrf.mxu0
  %4405 = vmatprep.mubr.bf16.mxu0 0
  %4406 = vmatmul.mubr.bf16.gmra.mxu0 %v4277
  %v4407 = vpop.f32.mrf.mxu0
  %v4408 = vadd.f32 0.0, %v4407
  %v4409 = vpop.f32.mrf.mxu0
  %v4410 = vpop.f32.mrf.mxu0
  %v4411 = vadd.f32 0.0, %v4410
  %v4412 = vpop.f32.mrf.mxu0
  %4413 = vmatprep.mubr.bf16.mxu0 0
  %4414 = vmatmul.mubr.bf16.gmra.mxu0 %v4280
  %v4415 = vpop.f32.mrf.mxu0
  %v4416 = vpop.f32.mrf.mxu0
  %v4417 = vpop.f32.mrf.mxu0
  %v4418 = vpop.f32.mrf.mxu0
  %4419 = vmatprep.mubr.bf16.mxu0 0
  %4420 = vmatmul.mubr.bf16.gmra.mxu0 %v4283
  %v4421 = vpop.f32.mrf.mxu0
  %v4422 = vpop.f32.mrf.mxu0
  %v4423 = vpop.f32.mrf.mxu0
  %v4424 = vpop.f32.mrf.mxu0
  %4425 = vmatprep.mubr.bf16.mxu0 0
  %4426 = vmatmul.mubr.bf16.gmra.mxu0 %v4286
  %v4427 = vpop.f32.mrf.mxu0
  %v4428 = vpop.f32.mrf.mxu0
  %v4429 = vpop.f32.mrf.mxu0
  %v4430 = vadd.f32 0.0, %v4429
  %v4431 = vpop.f32.mrf.mxu0
  %4432 = vmatprep.mubr.bf16.mxu0 0
  %4433 = vmatmul.mubr.bf16.gmra.mxu0 %v4289
  %v4434 = vpop.f32.mrf.mxu0
  %v4435 = vadd.f32 0.0, %v4434
  %v4436 = vpop.f32.mrf.mxu0
  %v4437 = vpop.f32.mrf.mxu0
  %v4438 = vadd.f32 0.0, %v4437
  %v4439 = vpop.f32.mrf.mxu0
  %4440 = vmatprep.mubr.bf16.mxu0 0
  %4441 = vmatmul.mubr.bf16.gmra.mxu0 %v4292
  %v4442 = vpop.f32.mrf.mxu0
  %v4443 = vadd.f32 0.0, %v4442
  %v4444 = vpop.f32.mrf.mxu0
  %v4445 = vpop.f32.mrf.mxu0
  %v4446 = vpop.f32.mrf.mxu0
  %4447 = vmatprep.mubr.bf16.mxu0 0
  %4448 = vmatmul.mubr.bf16.gmra.mxu0 %v4295
  %v4449 = vpop.f32.mrf.mxu0
  %v4450 = vpop.f32.mrf.mxu0
  %v4451 = vpop.f32.mrf.mxu0
  %v4452 = vpop.f32.mrf.mxu0
  %4453 = vmatprep.mubr.bf16.mxu0 0
  %4454 = vmatmul.mubr.bf16.gmra.mxu0 %v4298
  %v4455 = vpop.f32.mrf.mxu0
  %v4456 = vpop.f32.mrf.mxu0
  %v4457 = vpop.f32.mrf.mxu0
  %v4458 = vpop.f32.mrf.mxu0
  %4459 = vdwg.mxu0
  %v4460 = vadd.f32 %v4160, %v4338
  %v4461 = vadd.f32 %v4161, %v4341
  %v4462 = vadd.f32 %v4162, %v4346
  %v4463 = vadd.f32 %v4163, %v4349
  %v4464 = vadd.f32 %v4164, %v4368
  %v4465 = vadd.f32 %v4165, %v4373
  %v4466 = vadd.f32 %v4166, %v4376
  %v4467 = vadd.f32 %v4167, %v4381
  %v4468 = vadd.f32 %v4168, %v4400
  %v4469 = vadd.f32 %v4169, %v4403
  %v4470 = vadd.f32 %v4170, %v4408
  %v4471 = vadd.f32 %v4171, %v4411
  %v4472 = vadd.f32 %v4172, %v4430
  %v4473 = vadd.f32 %v4173, %v4435
  %v4474 = vadd.f32 %v4174, %v4438
  %v4475 = vadd.f32 %v4175, %v4443
  %v4476 = vld [vmem:[%s4] sm:$0x1]
  %v4477 = vmax.f32 %v4460, %v4461
  %v4478 = vmax.f32 %v4464, %v4465
  %v4479 = vmax.f32 %v4477, %v4478
  %v4481 = vlaneseq
  %v4482 = vshrl.u32 %v4481, 7
  %v4483 = vsub.s32 0, %v4482
  %v4484 = vrot.slane %v4476, %v4483
  %v4486 = vadd.f32 %v4479, %v4484
  %v4487 = vmax.f32 %v4486, 0.0
  %v4488 = vpack.c.bf16 %v4487, %v4487
  %v4489 = vld [vmem:[%s5] sm:$0xf]
  %v4490 = vld [vmem:[%s5 + $0x4] sm:$0x1]
  %v4491 = vmax.f32 %v4462, %v4463
  %v4492 = vmax.f32 %v4466, %v4467
  %v4493 = vmax.f32 %v4491, %v4492
  %v4494 = vadd.f32 %v4493, %v4484
  %v4495 = vmax.f32 %v4494, 0.0
  %v4496 = vpack.c.bf16 %v4495, %v4495
  %s4497 = scalar_lea.vmem %s5, 8
  %v4498 = vld [vmem:[%s4497] sm:$0xf]
  %v4499 = vld [vmem:[%s4497 + $0x4] sm:$0x1]
  %v4502 = vunpack.c.l.b16 %v4498
  %v4503 = vunpack.c.l.b16 %v4499
  %v4504 = vpack.c.b16 %v4503, %v4502
  %vm4505 = vcmask 80896
  %v4507 = vsel %vm4505, %v4496, 0
  %v4510 = vsel %vm1053, %v4504, 0
  %4512 = vmatprep.subr.bf16.mxu0 0
  %4513 = vmatpush1.bf16.msra.mxu0 0
  %4514 = vmatprep.subr.bf16.mxu0 0
  %4515 = vmatpush1.bf16.msra.mxu0 0
  %4516 = vmatprep.subr.bf16.mxu0 0
  %4517 = vmatpush1.bf16.msra.mxu0 0
  %4518 = vmatprep.subr.bf16.mxu0 0
  %4519 = vmatpush1.bf16.msra.mxu0 0
  %4520 = vmatprep.subr.bf16.mxu0 0
  %4521 = vmatpush1.bf16.msra.mxu0 0
  %4522 = vmatprep.subr.bf16.mxu0 0
  %4523 = vmatpush1.bf16.msra.mxu0 0
  %4524 = vmatprep.subr.bf16.mxu0 0
  %4525 = vmatpush1.bf16.msra.mxu0 0
  %4526 = vmatprep.subr.bf16.mxu0 0
  %4527 = vmatpush1.bf16.msra.mxu0 %v4510
  %4528 = vmatprep.subr.bf16.mxu0 0
  %4529 = vmatpush2.bf16.msra.mxu0 0
  %4530 = vmatprep.subr.bf16.mxu0 0
  %4531 = vmatpush2.bf16.msra.mxu0 0
  %4532 = vmatprep.subr.bf16.mxu0 0
  %4533 = vmatpush2.bf16.msra.mxu0 0
  %4534 = vmatprep.subr.bf16.mxu0 0
  %4535 = vmatpush2.bf16.msra.mxu0 0
  %4536 = vmatprep.subr.bf16.mxu0 0
  %4537 = vmatpush2.bf16.msra.mxu0 0
  %4538 = vmatprep.subr.bf16.mxu0 0
  %4539 = vmatpush2.bf16.msra.mxu0 0
  %4540 = vmatprep.subr.bf16.mxu0 0
  %4541 = vmatpush2.bf16.msra.mxu0 0
  %4542 = vmatprep.subr.bf16.mxu0 0
  %4543 = vmatpush2.bf16.msra.mxu0 0
  %4544 = vmatprep.mubr.bf16.mxu0 0
  %4545 = vmatmul.mubr.bf16.gmra.mxu0 %v4507
  %v4546 = vpop.f32.mrf.mxu0
  %v4547 = vadd.f32 0.0, %v4546
  %v4548 = vpop.f32.mrf.mxu0
  %v4549 = vpop.f32.mrf.mxu0
  %v4550 = vpop.f32.mrf.mxu0
  %4551 = vdwg.mxu0
  %v4554 = vunpack.c.l.b16 %v4489
  %v4555 = vunpack.c.l.b16 %v4490
  %v4556 = vpack.c.b16 %v4555, %v4554
  %v4558 = vsel %vm4505, %v4488, 0
  %v4561 = vsel %vm1053, %v4556, 0
  %4563 = vmatprep.subr.bf16.mxu0 0
  %4564 = vmatpush1.bf16.msra.mxu0 0
  %4565 = vmatprep.subr.bf16.mxu0 0
  %4566 = vmatpush1.bf16.msra.mxu0 0
  %4567 = vmatprep.subr.bf16.mxu0 0
  %4568 = vmatpush1.bf16.msra.mxu0 0
  %4569 = vmatprep.subr.bf16.mxu0 0
  %4570 = vmatpush1.bf16.msra.mxu0 0
  %4571 = vmatprep.subr.bf16.mxu0 0
  %4572 = vmatpush1.bf16.msra.mxu0 0
  %4573 = vmatprep.subr.bf16.mxu0 0
  %4574 = vmatpush1.bf16.msra.mxu0 0
  %4575 = vmatprep.subr.bf16.mxu0 0
  %4576 = vmatpush1.bf16.msra.mxu0 0
  %4577 = vmatprep.subr.bf16.mxu0 0
  %4578 = vmatpush1.bf16.msra.mxu0 %v4561
  %4579 = vmatprep.subr.bf16.mxu0 0
  %4580 = vmatpush2.bf16.msra.mxu0 0
  %4581 = vmatprep.subr.bf16.mxu0 0
  %4582 = vmatpush2.bf16.msra.mxu0 0
  %4583 = vmatprep.subr.bf16.mxu0 0
  %4584 = vmatpush2.bf16.msra.mxu0 0
  %4585 = vmatprep.subr.bf16.mxu0 0
  %4586 = vmatpush2.bf16.msra.mxu0 0
  %4587 = vmatprep.subr.bf16.mxu0 0
  %4588 = vmatpush2.bf16.msra.mxu0 0
  %4589 = vmatprep.subr.bf16.mxu0 0
  %4590 = vmatpush2.bf16.msra.mxu0 0
  %4591 = vmatprep.subr.bf16.mxu0 0
  %4592 = vmatpush2.bf16.msra.mxu0 0
  %4593 = vmatprep.subr.bf16.mxu0 0
  %4594 = vmatpush2.bf16.msra.mxu0 0
  %4595 = vmatprep.mubr.bf16.mxu0 0
  %4596 = vmatmul.mubr.bf16.gmra.mxu0 %v4558
  %v4597 = vpop.f32.mrf.mxu0
  %v4598 = vadd.f32 %v4547, %v4597
  %v4599 = vpop.f32.mrf.mxu0
  %v4600 = vpop.f32.mrf.mxu0
  %v4601 = vpop.f32.mrf.mxu0
  %4602 = vdwg.mxu0
  %v4603 = vmax.f32 %v4468, %v4469
  %v4604 = vmax.f32 %v4472, %v4473
  %v4605 = vmax.f32 %v4603, %v4604
  %v4606 = vadd.f32 %v4605, %v4484
  %v4607 = vmax.f32 %v4606, 0.0
  %v4608 = vpack.c.bf16 %v4607, %v4607
  %s4609 = scalar_lea.vmem %s5, 16
  %v4610 = vld [vmem:[%s4609] sm:$0xf]
  %v4611 = vld [vmem:[%s4609 + $0x4] sm:$0x1]
  %v4614 = vunpack.c.l.b16 %v4610
  %v4615 = vunpack.c.l.b16 %v4611
  %v4616 = vpack.c.b16 %v4615, %v4614
  %v4618 = vsel %vm4505, %v4608, 0
  %v4621 = vsel %vm1053, %v4616, 0
  %4623 = vmatprep.subr.bf16.mxu0 0
  %4624 = vmatpush1.bf16.msra.mxu0 0
  %4625 = vmatprep.subr.bf16.mxu0 0
  %4626 = vmatpush1.bf16.msra.mxu0 0
  %4627 = vmatprep.subr.bf16.mxu0 0
  %4628 = vmatpush1.bf16.msra.mxu0 0
  %4629 = vmatprep.subr.bf16.mxu0 0
  %4630 = vmatpush1.bf16.msra.mxu0 0
  %4631 = vmatprep.subr.bf16.mxu0 0
  %4632 = vmatpush1.bf16.msra.mxu0 0
  %4633 = vmatprep.subr.bf16.mxu0 0
  %4634 = vmatpush1.bf16.msra.mxu0 0
  %4635 = vmatprep.subr.bf16.mxu0 0
  %4636 = vmatpush1.bf16.msra.mxu0 0
  %4637 = vmatprep.subr.bf16.mxu0 0
  %4638 = vmatpush1.bf16.msra.mxu0 %v4621
  %4639 = vmatprep.subr.bf16.mxu0 0
  %4640 = vmatpush2.bf16.msra.mxu0 0
  %4641 = vmatprep.subr.bf16.mxu0 0
  %4642 = vmatpush2.bf16.msra.mxu0 0
  %4643 = vmatprep.subr.bf16.mxu0 0
  %4644 = vmatpush2.bf16.msra.mxu0 0
  %4645 = vmatprep.subr.bf16.mxu0 0
  %4646 = vmatpush2.bf16.msra.mxu0 0
  %4647 = vmatprep.subr.bf16.mxu0 0
  %4648 = vmatpush2.bf16.msra.mxu0 0
  %4649 = vmatprep.subr.bf16.mxu0 0
  %4650 = vmatpush2.bf16.msra.mxu0 0
  %4651 = vmatprep.subr.bf16.mxu0 0
  %4652 = vmatpush2.bf16.msra.mxu0 0
  %4653 = vmatprep.subr.bf16.mxu0 0
  %4654 = vmatpush2.bf16.msra.mxu0 0
  %4655 = vmatprep.mubr.bf16.mxu0 0
  %4656 = vmatmul.mubr.bf16.gmra.mxu0 %v4618
  %v4657 = vpop.f32.mrf.mxu0
  %v4658 = vadd.f32 0.0, %v4657
  %v4659 = vpop.f32.mrf.mxu0
  %v4660 = vpop.f32.mrf.mxu0
  %v4661 = vpop.f32.mrf.mxu0
  %4662 = vdwg.mxu0
  %v4663 = vadd.f32 %v4598, %v4658
  %v4664 = vmax.f32 %v4470, %v4471
  %v4665 = vmax.f32 %v4474, %v4475
  %v4666 = vmax.f32 %v4664, %v4665
  %v4667 = vadd.f32 %v4666, %v4484
  %v4668 = vmax.f32 %v4667, 0.0
  %v4669 = vpack.c.bf16 %v4668, %v4668
  %s4670 = scalar_lea.vmem %s5, 24
  %v4671 = vld [vmem:[%s4670] sm:$0xf]
  %v4672 = vld [vmem:[%s4670 + $0x4] sm:$0x1]
  %v4675 = vunpack.c.l.b16 %v4671
  %v4676 = vunpack.c.l.b16 %v4672
  %v4677 = vpack.c.b16 %v4676, %v4675
  %v4679 = vsel %vm4505, %v4669, 0
  %v4682 = vsel %vm1053, %v4677, 0
  %4684 = vmatprep.subr.bf16.mxu0 0
  %4685 = vmatpush1.bf16.msra.mxu0 0
  %4686 = vmatprep.subr.bf16.mxu0 0
  %4687 = vmatpush1.bf16.msra.mxu0 0
  %4688 = vmatprep.subr.bf16.mxu0 0
  %4689 = vmatpush1.bf16.msra.mxu0 0
  %4690 = vmatprep.subr.bf16.mxu0 0
  %4691 = vmatpush1.bf16.msra.mxu0 0
  %4692 = vmatprep.subr.bf16.mxu0 0
  %4693 = vmatpush1.bf16.msra.mxu0 0
  %4694 = vmatprep.subr.bf16.mxu0 0
  %4695 = vmatpush1.bf16.msra.mxu0 0
  %4696 = vmatprep.subr.bf16.mxu0 0
  %4697 = vmatpush1.bf16.msra.mxu0 0
  %4698 = vmatprep.subr.bf16.mxu0 0
  %4699 = vmatpush1.bf16.msra.mxu0 %v4682
  %4700 = vmatprep.subr.bf16.mxu0 0
  %4701 = vmatpush2.bf16.msra.mxu0 0
  %4702 = vmatprep.subr.bf16.mxu0 0
  %4703 = vmatpush2.bf16.msra.mxu0 0
  %4704 = vmatprep.subr.bf16.mxu0 0
  %4705 = vmatpush2.bf16.msra.mxu0 0
  %4706 = vmatprep.subr.bf16.mxu0 0
  %4707 = vmatpush2.bf16.msra.mxu0 0
  %4708 = vmatprep.subr.bf16.mxu0 0
  %4709 = vmatpush2.bf16.msra.mxu0 0
  %4710 = vmatprep.subr.bf16.mxu0 0
  %4711 = vmatpush2.bf16.msra.mxu0 0
  %4712 = vmatprep.subr.bf16.mxu0 0
  %4713 = vmatpush2.bf16.msra.mxu0 0
  %4714 = vmatprep.subr.bf16.mxu0 0
  %4715 = vmatpush2.bf16.msra.mxu0 0
  %4716 = vmatprep.mubr.bf16.mxu0 0
  %4717 = vmatmul.mubr.bf16.gmra.mxu0 %v4679
  %v4718 = vpop.f32.mrf.mxu0
  %v4719 = vadd.f32 0.0, %v4718
  %v4720 = vpop.f32.mrf.mxu0
  %v4721 = vpop.f32.mrf.mxu0
  %v4722 = vpop.f32.mrf.mxu0
  %4723 = vdwg.mxu0
  %v4724 = vadd.f32 %v4663, %v4719
  %v4725 = vld [vmem:[%s6] sm:$0x1]
  %v4727 = vlaneseq
  %v4728 = vshrl.u32 %v4727, 7
  %v4729 = vsub.s32 0, %v4728
  %v4730 = vrot.slane %v4725, %v4729
  %v4732 = vadd.f32 %v4724, %v4730
  %v4733 = vmax.f32 %v4732, 0.0
  %v4734 = vpack.c.bf16 %v4733, %v4733
  %v4735 = vld [vmem:[%s7] sm:$0xf]
  %v4736 = vld [vmem:[%s7 + $0x4] sm:$0xf]
  %v4737 = vld [vmem:[%s8] sm:$0x1]
  %v4739 = vlaneseq
  %v4740 = vshrl.u32 %v4739, 7
  %v4741 = vsub.s32 0, %v4740
  %v4742 = vrot.slane %v4737, %v4741
  %v4746 = vunpack.c.l.b16 %v4735
  %v4747 = vunpack.c.l.b16 %v4736
  %v4748 = vpack.c.b16 %v4747, %v4746
  %vm4749 = vcmask 121856
  %v4751 = vsel %vm4749, %v4734, 0
  %vm4753 = vcmask 1046528
  %vm4754 = vcmask 1047552
  %v4755 = vsel %vm4753, 4294967295, 65535
  %v4756 = vsel %vm4754, %v4755, 0
  %v4758 = vand.u32 %v4748, %v4756
  %4760 = vmatprep.subr.bf16.mxu0 0
  %4761 = vmatpush1.bf16.msra.mxu0 0
  %4762 = vmatprep.subr.bf16.mxu0 0
  %4763 = vmatpush1.bf16.msra.mxu0 0
  %4764 = vmatprep.subr.bf16.mxu0 0
  %4765 = vmatpush1.bf16.msra.mxu0 0
  %4766 = vmatprep.subr.bf16.mxu0 0
  %4767 = vmatpush1.bf16.msra.mxu0 0
  %4768 = vmatprep.subr.bf16.mxu0 0
  %4769 = vmatpush1.bf16.msra.mxu0 0
  %4770 = vmatprep.subr.bf16.mxu0 0
  %4771 = vmatpush1.bf16.msra.mxu0 0
  %4772 = vmatprep.subr.bf16.mxu0 0
  %4773 = vmatpush1.bf16.msra.mxu0 0
  %4774 = vmatprep.subr.bf16.mxu0 0
  %4775 = vmatpush1.bf16.msra.mxu0 %v4758
  %4776 = vmatprep.subr.bf16.mxu0 0
  %4777 = vmatpush2.bf16.msra.mxu0 0
  %4778 = vmatprep.subr.bf16.mxu0 0
  %4779 = vmatpush2.bf16.msra.mxu0 0
  %4780 = vmatprep.subr.bf16.mxu0 0
  %4781 = vmatpush2.bf16.msra.mxu0 0
  %4782 = vmatprep.subr.bf16.mxu0 0
  %4783 = vmatpush2.bf16.msra.mxu0 0
  %4784 = vmatprep.subr.bf16.mxu0 0
  %4785 = vmatpush2.bf16.msra.mxu0 0
  %4786 = vmatprep.subr.bf16.mxu0 0
  %4787 = vmatpush2.bf16.msra.mxu0 0
  %4788 = vmatprep.subr.bf16.mxu0 0
  %4789 = vmatpush2.bf16.msra.mxu0 0
  %4790 = vmatprep.subr.bf16.mxu0 0
  %4791 = vmatpush2.bf16.msra.mxu0 0
  %4792 = vmatprep.mubr.bf16.mxu0 0
  %4793 = vmatmul.mubr.bf16.gmra.mxu0 %v4751
  %v4794 = vpop.f32.mrf.mxu0
  %v4795 = vadd.f32 %v4742, %v4794
  %v4796 = vpop.f32.mrf.mxu0
  %v4797 = vpop.f32.mrf.mxu0
  %v4798 = vpop.f32.mrf.mxu0
  %4799 = vdwg.mxu0
  %vm4800 = vcmask 23552
  %4801 = vst.msk [vmem:[%s9] sm:$0xff] %vm4800, %v4795
  // Predicated region
  $region38: #{prim_model_forward.1} parent=0 // pred_check
    _
  $region39: #{prim_model_forward.1} parent=0 // pred_check_branch
    %4803 = sbr.rel (0) target = $region41
  $region40: #{prim_model_forward.1} parent=0 // pred_region
    _
  $region41: #{prim_model_forward.1} parent=0 // pred_fallthru
    _
  // Predicated region
  $region42: #{prim_model_forward.1} parent=0 // pred_check
    _
  $region43: #{prim_model_forward.1} parent=0 // pred_check_branch
    %4805 = sbr.rel (0) target = $region45
  $region44: #{prim_model_forward.1} parent=0 // pred_region
    _
  $region45: #{prim_model_forward.1} parent=0 // pred_fallthru
    _

</llo_original>
